<compile_context>
chip_gen: v5e
topology: v5e:2x2
jax: 0.10.0
libtpu: 0.0.40
codegen_flags: <defaults>
</compile_context>

<pallas_src>
import jax
import jax.numpy as jnp
import numpy as np
from jax.experimental import pallas as pl
from jax.experimental.pallas import tpu as pltpu


# --------------------------------------------------------------------------- #
# Host-side weight preparation (done once, pure numpy, zero runtime cost).
# --------------------------------------------------------------------------- #
def prepare_params(params):
    """Torch-layout params -> kernel-ready banded matrices / permuted FC weights."""
    w1, b1, w2, b2, fw1, fb1, fw2, fb2 = (np.asarray(p, dtype=np.float32) for p in params)

    # conv1 banded matrices M1[dh]: (28, 256); output lanes col = jp*128 + j1*10 + co
    # with output W-position j = 2*j1 + jp (parity split -> W-pool is a 128-lane
    # block max).  Lanes 120..127 / 248..255 are zero padding.
    m1 = np.zeros((5, 28, 256), np.float32)
    for dh in range(5):
        for dw in range(5):
            for jp in range(2):
                for j1 in range(12):
                    w_in = 2 * j1 + jp + dw                      # input column
                    base = jp * 128 + j1 * 10
                    m1[dh, w_in, base:base + 10] = w1[:, 0, dh, dw]
    b1c = np.zeros((1, 256), np.float32)
    for jp in range(2):
        for j1 in range(12):
            b1c[0, jp * 128 + j1 * 10: jp * 128 + j1 * 10 + 10] = b1

    # conv2 banded matrices M2[dh]: (128, 256); input lanes j1*10 + ci (j1 < 12),
    # output lanes jp*128 + j3*20 + do with output W-position j2 = 2*j3 + jp.
    m2 = np.zeros((5, 128, 256), np.float32)
    for dh in range(5):
        for dw in range(5):
            blk = w2[:, :, dh, dw].T                             # (ci=10, do=20)
            for jp in range(2):
                for j3 in range(4):
                    j1 = 2 * j3 + jp + dw                        # input W-position
                    m2[dh, j1 * 10:(j1 + 1) * 10,
                       jp * 128 + j3 * 20: jp * 128 + (j3 + 1) * 20] = blk
    b2c = np.zeros((1, 256), np.float32)
    for jp in range(2):
        for j3 in range(4):
            b2c[0, jp * 128 + j3 * 20: jp * 128 + (j3 + 1) * 20] = b2

    # fc1: torch NCHW flatten index = do*16 + i3*4 + j3; the kernel presents the
    # pooled conv2 output as 4 row blocks p2[:, i3, :] with lane = j3*20 + do,
    # so fold the permutation into one (128, 128) weight block per i3.
    wf1k = np.zeros((4, 128, 128), np.float32)
    for i3 in range(4):
        for j3 in range(4):
            for do in range(20):
                wf1k[i3, j3 * 20 + do, :50] = fw1[:, do * 16 + i3 * 4 + j3]
    fb1k = np.zeros((1, 128), np.float32)
    fb1k[0, :50] = fb1

    # fc2 padded to 128 output lanes; padded classes get a -1e30 bias so the in-kernel
    # log_softmax over 128 lanes ignores them.
    wf2k = np.zeros((128, 128), np.float32)
    wf2k[:50, :10] = fw2.T
    fb2k = np.full((1, 128), -1e30, np.float32)
    fb2k[0, :10] = fb2

    bf = lambda a: jnp.asarray(a, jnp.bfloat16)
    f32 = lambda a: jnp.asarray(a, jnp.float32)
    return (bf(m1), f32(b1c), bf(m2), f32(b2c), bf(wf1k), f32(fb1k), bf(wf2k), f32(fb2k))


# --------------------------------------------------------------------------- #
# The fused Pallas kernel.
# --------------------------------------------------------------------------- #
def _net_pallas(xs, m1, b1c, m2, b2c, wf1, fb1, wf2, fb2, *, tb):
    bp = xs.shape[0]
    nb = bp // tb
    f32 = jnp.float32
    bf16 = jnp.bfloat16

    def kernel(x_ref, m1_ref, b1_ref, m2_ref, b2_ref, wf1_ref, bf1_ref,
               wf2_ref, bf2_ref, out_ref):
        xv = x_ref[...].astype(f32)                               # (tb, 28, 28)

        # ----- conv1: 5 banded matmuls over H offsets (fused bias + relu) -------
        y1 = None
        for dh in range(5):
            lhs = xv[:, dh:dh + 24, :].reshape(tb * 24, 28).astype(bf16)
            part = jnp.dot(lhs, m1_ref[dh], preferred_element_type=f32)
            y1 = part if y1 is None else y1 + part
        y1 = jnp.maximum(y1 + b1_ref[...], 0.0)                   # (tb*24, 256)
        # 2x2 max-pool: W pool = aligned parity-block max, H pool = row-pair max.
        y1 = jnp.maximum(y1[:, :128], y1[:, 128:])                # (tb*24, 128)
        y1 = y1.reshape(tb, 12, 2, 128)
        p1 = jnp.maximum(y1[:, :, 0, :], y1[:, :, 1, :])          # (tb, 12, 128)

        # ----- conv2 (Dropout2d = identity in eval): 5 banded matmuls ------------
        y2 = None
        for dh in range(5):
            lhs = p1[:, dh:dh + 8, :].reshape(tb * 8, 128).astype(bf16)
            part = jnp.dot(lhs, m2_ref[dh], preferred_element_type=f32)
            y2 = part if y2 is None else y2 + part
        y2 = jnp.maximum(y2 + b2_ref[...], 0.0)                   # (tb*8, 256)
        y2 = jnp.maximum(y2[:, :128], y2[:, 128:])                # (tb*8, 128)
        y2 = y2.reshape(tb, 4, 2, 128)
        p2 = jnp.maximum(y2[:, :, 0, :], y2[:, :, 1, :])          # (tb, 4, 128)

        # ----- fc1 + relu (NCHW flatten folded into per-i3 weight blocks) --------
        h = None
        for i3 in range(4):
            lhs = p2[:, i3, :].astype(bf16)
            part = jnp.dot(lhs, wf1_ref[i3], preferred_element_type=f32)
            h = part if h is None else h + part
        h = jnp.maximum(h + bf1_ref[...], 0.0)                    # (tb, 128)

        # ----- (dropout: identity) + fc2 + log_softmax over 128 padded lanes -----
        logits = jnp.dot(h.astype(bf16), wf2_ref[...],
                         preferred_element_type=f32) + bf2_ref[...]
        mx = jnp.max(logits, axis=-1, keepdims=True)
        sh = logits - mx
        lse = jnp.log(jnp.sum(jnp.exp(sh), axis=-1, keepdims=True))
        out_ref[...] = sh - lse                                   # lane-dense (tb, 128)

    const3 = lambda b: (0, 0, 0)
    const2 = lambda b: (0, 0)
    return pl.pallas_call(
        kernel,
        out_shape=jax.ShapeDtypeStruct((bp, 128), jnp.float32),
        grid=(nb,),
        in_specs=[
            pl.BlockSpec((tb, 28, 28), lambda b: (b, 0, 0)),   # input tile (varies)
            pl.BlockSpec((5, 28, 256), const3),                # conv1 banded weights
            pl.BlockSpec((1, 256), const2),                    # conv1 bias (per lane)
            pl.BlockSpec((5, 128, 256), const3),               # conv2 banded weights
            pl.BlockSpec((1, 256), const2),                    # conv2 bias (per lane)
            pl.BlockSpec((4, 128, 128), const3),               # fc1 weight blocks
            pl.BlockSpec((1, 128), const2),                    # fc1 bias
            pl.BlockSpec((128, 128), const2),                  # fc2 weight
            pl.BlockSpec((1, 128), const2),                    # fc2 bias (pad = -1e30)
        ],
        out_specs=pl.BlockSpec((tb, 128), lambda b: (b, 0)),
        compiler_params=pltpu.CompilerParams(
            dimension_semantics=("parallel",),
            vmem_limit_bytes=48 * 1024 * 1024,                 # <= v7x 64 MiB physical
        ),
    )(xs, m1, b1c, m2, b2c, wf1, fb1, wf2, fb2)


def _pick_tb(B: int) -> int:
    """Batch tile: large for throughput, >=2 grid steps when possible (v7x megacore),
    right-sized multiple of 8 for small batches so no full tile is wasted."""
    if B <= 8:
        return 8
    half = (B + 1) // 2
    return min(128, ((half + 7) // 8) * 8)


def net_forward(x, kernel_params):
    """x: (B, 1, 28, 28) float32 NCHW. Returns (B, 10) log-probabilities."""
    m1, b1c, m2, b2c, wf1, fb1, wf2, fb2 = kernel_params
    B = x.shape[0]
    tb = _pick_tb(B)
    bp = ((B + tb - 1) // tb) * tb                             # tail waste < tb images
    xs = x.reshape(B, 28, 28).astype(jnp.bfloat16)             # bf16 input DMA
    if bp != B:
        xs = jnp.pad(xs, ((0, bp - B), (0, 0), (0, 0)))
    out = _net_pallas(xs, m1, b1c, m2, b2c, wf1, fb1, wf2, fb2, tb=tb)
    return out[:B, :10]


def init_params(key):
    ks = jax.random.split(key, 8)
    w1 = 0.10 * jax.random.normal(ks[0], (10, 1, 5, 5), jnp.float32)
    b1 = 0.10 * jax.random.normal(ks[1], (10,), jnp.float32)
    w2 = 0.05 * jax.random.normal(ks[2], (20, 10, 5, 5), jnp.float32)
    b2 = 0.05 * jax.random.normal(ks[3], (20,), jnp.float32)
    fw1 = 0.05 * jax.random.normal(ks[4], (50, 320), jnp.float32)
    fb1 = 0.05 * jax.random.normal(ks[5], (50,), jnp.float32)
    fw2 = 0.10 * jax.random.normal(ks[6], (10, 50), jnp.float32)
    fb2 = 0.10 * jax.random.normal(ks[7], (10,), jnp.float32)
    return (w1, b1, w2, b2, fw1, fb1, fw2, fb2)


if __name__ == "__main__":
    key = jax.random.PRNGKey(0)
    pkey, xkey = jax.random.split(key)
    params = init_params(pkey)
    kparams = prepare_params(params)                           # host-side, once
    x = jax.random.normal(xkey, (2, 1, 28, 28), jnp.float32)   # MNIST-sized input
    fwd = jax.jit(net_forward)
    out = jax.block_until_ready(fwd(x, kparams))
    assert out.shape == (2, 10)
    # log_softmax rows must exponentiate-sum to 1
    assert bool(jnp.allclose(jnp.exp(out).sum(axis=1), 1.0, atol=1e-4))
    print("KERNEL_OK")
</pallas_src>

<mosaic_0001>
module attributes {stable_mosaic.version = 11 : i64} {
  func.func @kernel(%arg0: i32, %arg1: memref<8x28x28xbf16, #tpu.memory_space<vmem>>, %arg2: memref<5x28x256xbf16, #tpu.memory_space<vmem>>, %arg3: memref<1x256xf32, #tpu.memory_space<vmem>>, %arg4: memref<5x128x256xbf16, #tpu.memory_space<vmem>>, %arg5: memref<1x256xf32, #tpu.memory_space<vmem>>, %arg6: memref<4x128x128xbf16, #tpu.memory_space<vmem>>, %arg7: memref<1x128xf32, #tpu.memory_space<vmem>>, %arg8: memref<128x128xbf16, #tpu.memory_space<vmem>>, %arg9: memref<1x128xf32, #tpu.memory_space<vmem>>, %arg10: memref<8x128xf32, #tpu.memory_space<vmem>>) attributes {dimension_semantics = [#tpu.dimension_semantics<parallel>], iteration_bounds = array<i64: 1>, scalar_prefetch = 0 : i64, scratch_operands = 0 : i64, tpu.core_type = #tpu.core_type<tc>, window_params = [{transform_indices = @transform_0, window_bounds = array<i64: 8, 28, 28>}, {pipeline_mode = #tpu.pipeline_mode<synchronous>, transform_indices = @transform_1, window_bounds = array<i64: 5, 28, 256>}, {pipeline_mode = #tpu.pipeline_mode<synchronous>, transform_indices = @transform_2, window_bounds = array<i64: 1, 256>}, {pipeline_mode = #tpu.pipeline_mode<synchronous>, transform_indices = @transform_3, window_bounds = array<i64: 5, 128, 256>}, {pipeline_mode = #tpu.pipeline_mode<synchronous>, transform_indices = @transform_4, window_bounds = array<i64: 1, 256>}, {pipeline_mode = #tpu.pipeline_mode<synchronous>, transform_indices = @transform_5, window_bounds = array<i64: 4, 128, 128>}, {pipeline_mode = #tpu.pipeline_mode<synchronous>, transform_indices = @transform_6, window_bounds = array<i64: 1, 128>}, {pipeline_mode = #tpu.pipeline_mode<synchronous>, transform_indices = @transform_7, window_bounds = array<i64: 128, 128>}, {pipeline_mode = #tpu.pipeline_mode<synchronous>, transform_indices = @transform_8, window_bounds = array<i64: 1, 128>}, {transform_indices = @transform_9, window_bounds = array<i64: 8, 128>}]} {
    %c0 = arith.constant 0 : index
    %c0_0 = arith.constant 0 : index
    %c0_1 = arith.constant 0 : index
    %0 = vector.load %arg1[%c0, %c0_0, %c0_1] : memref<8x28x28xbf16, #tpu.memory_space<vmem>>, vector<8x28x28xbf16>
    %1 = arith.extf %0 : vector<8x28x28xbf16> to vector<8x28x28xf32>
    %2 = vector.extract_strided_slice %1 {offsets = [0, 0, 0], sizes = [8, 24, 28], strides = [1, 1, 1]} : vector<8x28x28xf32> to vector<8x24x28xf32>
    %3 = vector.shape_cast %2 : vector<8x24x28xf32> to vector<192x28xf32>
    %4 = arith.truncf %3 : vector<192x28xf32> to vector<192x28xbf16>
    %c0_2 = arith.constant 0 : index
    %c0_3 = arith.constant 0 : index
    %c0_4 = arith.constant 0 : index
    %5 = vector.load %arg2[%c0_2, %c0_3, %c0_4] : memref<5x28x256xbf16, #tpu.memory_space<vmem>>, vector<1x28x256xbf16>
    %6 = vector.shape_cast %5 : vector<1x28x256xbf16> to vector<28x256xbf16>
    %cst = arith.constant dense<0.000000e+00> : vector<192x256xf32>
    %7 = tpu.matmul %4, %6, %cst {dimension_numbers = #tpu.dot_dimension_numbers<[1], [0], [0], [1], [0, 0, 1, 1], [], []>} : vector<192x28xbf16>, vector<28x256xbf16>, vector<192x256xf32> -> vector<192x256xf32>
    %8 = vector.extract_strided_slice %1 {offsets = [0, 1, 0], sizes = [8, 24, 28], strides = [1, 1, 1]} : vector<8x28x28xf32> to vector<8x24x28xf32>
    %9 = vector.shape_cast %8 : vector<8x24x28xf32> to vector<192x28xf32>
    %10 = arith.truncf %9 : vector<192x28xf32> to vector<192x28xbf16>
    %c1 = arith.constant 1 : index
    %c0_5 = arith.constant 0 : index
    %c0_6 = arith.constant 0 : index
    %11 = vector.load %arg2[%c1, %c0_5, %c0_6] : memref<5x28x256xbf16, #tpu.memory_space<vmem>>, vector<1x28x256xbf16>
    %12 = vector.shape_cast %11 : vector<1x28x256xbf16> to vector<28x256xbf16>
    %cst_7 = arith.constant dense<0.000000e+00> : vector<192x256xf32>
    %13 = tpu.matmul %10, %12, %cst_7 {dimension_numbers = #tpu.dot_dimension_numbers<[1], [0], [0], [1], [0, 0, 1, 1], [], []>} : vector<192x28xbf16>, vector<28x256xbf16>, vector<192x256xf32> -> vector<192x256xf32>
    %14 = arith.addf %7, %13 : vector<192x256xf32>
    %15 = vector.extract_strided_slice %1 {offsets = [0, 2, 0], sizes = [8, 24, 28], strides = [1, 1, 1]} : vector<8x28x28xf32> to vector<8x24x28xf32>
    %16 = vector.shape_cast %15 : vector<8x24x28xf32> to vector<192x28xf32>
    %17 = arith.truncf %16 : vector<192x28xf32> to vector<192x28xbf16>
    %c2 = arith.constant 2 : index
    %c0_8 = arith.constant 0 : index
    %c0_9 = arith.constant 0 : index
    %18 = vector.load %arg2[%c2, %c0_8, %c0_9] : memref<5x28x256xbf16, #tpu.memory_space<vmem>>, vector<1x28x256xbf16>
    %19 = vector.shape_cast %18 : vector<1x28x256xbf16> to vector<28x256xbf16>
    %cst_10 = arith.constant dense<0.000000e+00> : vector<192x256xf32>
    %20 = tpu.matmul %17, %19, %cst_10 {dimension_numbers = #tpu.dot_dimension_numbers<[1], [0], [0], [1], [0, 0, 1, 1], [], []>} : vector<192x28xbf16>, vector<28x256xbf16>, vector<192x256xf32> -> vector<192x256xf32>
    %21 = arith.addf %14, %20 : vector<192x256xf32>
    %22 = vector.extract_strided_slice %1 {offsets = [0, 3, 0], sizes = [8, 24, 28], strides = [1, 1, 1]} : vector<8x28x28xf32> to vector<8x24x28xf32>
    %23 = vector.shape_cast %22 : vector<8x24x28xf32> to vector<192x28xf32>
    %24 = arith.truncf %23 : vector<192x28xf32> to vector<192x28xbf16>
    %c3 = arith.constant 3 : index
    %c0_11 = arith.constant 0 : index
    %c0_12 = arith.constant 0 : index
    %25 = vector.load %arg2[%c3, %c0_11, %c0_12] : memref<5x28x256xbf16, #tpu.memory_space<vmem>>, vector<1x28x256xbf16>
    %26 = vector.shape_cast %25 : vector<1x28x256xbf16> to vector<28x256xbf16>
    %cst_13 = arith.constant dense<0.000000e+00> : vector<192x256xf32>
    %27 = tpu.matmul %24, %26, %cst_13 {dimension_numbers = #tpu.dot_dimension_numbers<[1], [0], [0], [1], [0, 0, 1, 1], [], []>} : vector<192x28xbf16>, vector<28x256xbf16>, vector<192x256xf32> -> vector<192x256xf32>
    %28 = arith.addf %21, %27 : vector<192x256xf32>
    %29 = vector.extract_strided_slice %1 {offsets = [0, 4, 0], sizes = [8, 24, 28], strides = [1, 1, 1]} : vector<8x28x28xf32> to vector<8x24x28xf32>
    %30 = vector.shape_cast %29 : vector<8x24x28xf32> to vector<192x28xf32>
    %31 = arith.truncf %30 : vector<192x28xf32> to vector<192x28xbf16>
    %c4 = arith.constant 4 : index
    %c0_14 = arith.constant 0 : index
    %c0_15 = arith.constant 0 : index
    %32 = vector.load %arg2[%c4, %c0_14, %c0_15] : memref<5x28x256xbf16, #tpu.memory_space<vmem>>, vector<1x28x256xbf16>
    %33 = vector.shape_cast %32 : vector<1x28x256xbf16> to vector<28x256xbf16>
    %cst_16 = arith.constant dense<0.000000e+00> : vector<192x256xf32>
    %34 = tpu.matmul %31, %33, %cst_16 {dimension_numbers = #tpu.dot_dimension_numbers<[1], [0], [0], [1], [0, 0, 1, 1], [], []>} : vector<192x28xbf16>, vector<28x256xbf16>, vector<192x256xf32> -> vector<192x256xf32>
    %35 = arith.addf %28, %34 : vector<192x256xf32>
    %c0_17 = arith.constant 0 : index
    %c0_18 = arith.constant 0 : index
    %36 = vector.load %arg3[%c0_17, %c0_18] : memref<1x256xf32, #tpu.memory_space<vmem>>, vector<1x256xf32>
    %37 = vector.broadcast %36 : vector<1x256xf32> to vector<192x256xf32>
    %38 = arith.addf %35, %37 : vector<192x256xf32>
    %cst_19 = arith.constant 0.000000e+00 : f32
    %39 = vector.broadcast %cst_19 : f32 to vector<192x256xf32>
    %40 = arith.maximumf %38, %39 : vector<192x256xf32>
    %41 = vector.extract_strided_slice %40 {offsets = [0, 0], sizes = [192, 128], strides = [1, 1]} : vector<192x256xf32> to vector<192x128xf32>
    %42 = vector.extract_strided_slice %40 {offsets = [0, 128], sizes = [192, 128], strides = [1, 1]} : vector<192x256xf32> to vector<192x128xf32>
    %43 = arith.maximumf %41, %42 : vector<192x128xf32>
    %44 = vector.shape_cast %43 : vector<192x128xf32> to vector<8x12x2x128xf32>
    %45 = vector.extract_strided_slice %44 {offsets = [0, 0, 0, 0], sizes = [8, 12, 1, 128], strides = [1, 1, 1, 1]} : vector<8x12x2x128xf32> to vector<8x12x1x128xf32>
    %46 = vector.shape_cast %45 : vector<8x12x1x128xf32> to vector<8x12x128xf32>
    %47 = vector.extract_strided_slice %44 {offsets = [0, 0, 1, 0], sizes = [8, 12, 1, 128], strides = [1, 1, 1, 1]} : vector<8x12x2x128xf32> to vector<8x12x1x128xf32>
    %48 = vector.shape_cast %47 : vector<8x12x1x128xf32> to vector<8x12x128xf32>
    %49 = arith.maximumf %46, %48 : vector<8x12x128xf32>
    %50 = vector.extract_strided_slice %49 {offsets = [0, 0, 0], sizes = [8, 8, 128], strides = [1, 1, 1]} : vector<8x12x128xf32> to vector<8x8x128xf32>
    %51 = vector.shape_cast %50 : vector<8x8x128xf32> to vector<64x128xf32>
    %52 = arith.truncf %51 : vector<64x128xf32> to vector<64x128xbf16>
    %c0_20 = arith.constant 0 : index
    %c0_21 = arith.constant 0 : index
    %c0_22 = arith.constant 0 : index
    %53 = vector.load %arg4[%c0_20, %c0_21, %c0_22] : memref<5x128x256xbf16, #tpu.memory_space<vmem>>, vector<1x128x256xbf16>
    %54 = vector.shape_cast %53 : vector<1x128x256xbf16> to vector<128x256xbf16>
    %cst_23 = arith.constant dense<0.000000e+00> : vector<64x256xf32>
    %55 = tpu.matmul %52, %54, %cst_23 {dimension_numbers = #tpu.dot_dimension_numbers<[1], [0], [0], [1], [0, 0, 1, 1], [], []>} : vector<64x128xbf16>, vector<128x256xbf16>, vector<64x256xf32> -> vector<64x256xf32>
    %56 = vector.extract_strided_slice %49 {offsets = [0, 1, 0], sizes = [8, 8, 128], strides = [1, 1, 1]} : vector<8x12x128xf32> to vector<8x8x128xf32>
    %57 = vector.shape_cast %56 : vector<8x8x128xf32> to vector<64x128xf32>
    %58 = arith.truncf %57 : vector<64x128xf32> to vector<64x128xbf16>
    %c1_24 = arith.constant 1 : index
    %c0_25 = arith.constant 0 : index
    %c0_26 = arith.constant 0 : index
    %59 = vector.load %arg4[%c1_24, %c0_25, %c0_26] : memref<5x128x256xbf16, #tpu.memory_space<vmem>>, vector<1x128x256xbf16>
    %60 = vector.shape_cast %59 : vector<1x128x256xbf16> to vector<128x256xbf16>
    %cst_27 = arith.constant dense<0.000000e+00> : vector<64x256xf32>
    %61 = tpu.matmul %58, %60, %cst_27 {dimension_numbers = #tpu.dot_dimension_numbers<[1], [0], [0], [1], [0, 0, 1, 1], [], []>} : vector<64x128xbf16>, vector<128x256xbf16>, vector<64x256xf32> -> vector<64x256xf32>
    %62 = arith.addf %55, %61 : vector<64x256xf32>
    %63 = vector.extract_strided_slice %49 {offsets = [0, 2, 0], sizes = [8, 8, 128], strides = [1, 1, 1]} : vector<8x12x128xf32> to vector<8x8x128xf32>
    %64 = vector.shape_cast %63 : vector<8x8x128xf32> to vector<64x128xf32>
    %65 = arith.truncf %64 : vector<64x128xf32> to vector<64x128xbf16>
    %c2_28 = arith.constant 2 : index
    %c0_29 = arith.constant 0 : index
    %c0_30 = arith.constant 0 : index
    %66 = vector.load %arg4[%c2_28, %c0_29, %c0_30] : memref<5x128x256xbf16, #tpu.memory_space<vmem>>, vector<1x128x256xbf16>
    %67 = vector.shape_cast %66 : vector<1x128x256xbf16> to vector<128x256xbf16>
    %cst_31 = arith.constant dense<0.000000e+00> : vector<64x256xf32>
    %68 = tpu.matmul %65, %67, %cst_31 {dimension_numbers = #tpu.dot_dimension_numbers<[1], [0], [0], [1], [0, 0, 1, 1], [], []>} : vector<64x128xbf16>, vector<128x256xbf16>, vector<64x256xf32> -> vector<64x256xf32>
    %69 = arith.addf %62, %68 : vector<64x256xf32>
    %70 = vector.extract_strided_slice %49 {offsets = [0, 3, 0], sizes = [8, 8, 128], strides = [1, 1, 1]} : vector<8x12x128xf32> to vector<8x8x128xf32>
    %71 = vector.shape_cast %70 : vector<8x8x128xf32> to vector<64x128xf32>
    %72 = arith.truncf %71 : vector<64x128xf32> to vector<64x128xbf16>
    %c3_32 = arith.constant 3 : index
    %c0_33 = arith.constant 0 : index
    %c0_34 = arith.constant 0 : index
    %73 = vector.load %arg4[%c3_32, %c0_33, %c0_34] : memref<5x128x256xbf16, #tpu.memory_space<vmem>>, vector<1x128x256xbf16>
    %74 = vector.shape_cast %73 : vector<1x128x256xbf16> to vector<128x256xbf16>
    %cst_35 = arith.constant dense<0.000000e+00> : vector<64x256xf32>
    %75 = tpu.matmul %72, %74, %cst_35 {dimension_numbers = #tpu.dot_dimension_numbers<[1], [0], [0], [1], [0, 0, 1, 1], [], []>} : vector<64x128xbf16>, vector<128x256xbf16>, vector<64x256xf32> -> vector<64x256xf32>
    %76 = arith.addf %69, %75 : vector<64x256xf32>
    %77 = vector.extract_strided_slice %49 {offsets = [0, 4, 0], sizes = [8, 8, 128], strides = [1, 1, 1]} : vector<8x12x128xf32> to vector<8x8x128xf32>
    %78 = vector.shape_cast %77 : vector<8x8x128xf32> to vector<64x128xf32>
    %79 = arith.truncf %78 : vector<64x128xf32> to vector<64x128xbf16>
    %c4_36 = arith.constant 4 : index
    %c0_37 = arith.constant 0 : index
    %c0_38 = arith.constant 0 : index
    %80 = vector.load %arg4[%c4_36, %c0_37, %c0_38] : memref<5x128x256xbf16, #tpu.memory_space<vmem>>, vector<1x128x256xbf16>
    %81 = vector.shape_cast %80 : vector<1x128x256xbf16> to vector<128x256xbf16>
    %cst_39 = arith.constant dense<0.000000e+00> : vector<64x256xf32>
    %82 = tpu.matmul %79, %81, %cst_39 {dimension_numbers = #tpu.dot_dimension_numbers<[1], [0], [0], [1], [0, 0, 1, 1], [], []>} : vector<64x128xbf16>, vector<128x256xbf16>, vector<64x256xf32> -> vector<64x256xf32>
    %83 = arith.addf %76, %82 : vector<64x256xf32>
    %c0_40 = arith.constant 0 : index
    %c0_41 = arith.constant 0 : index
    %84 = vector.load %arg5[%c0_40, %c0_41] : memref<1x256xf32, #tpu.memory_space<vmem>>, vector<1x256xf32>
    %85 = vector.broadcast %84 : vector<1x256xf32> to vector<64x256xf32>
    %86 = arith.addf %83, %85 : vector<64x256xf32>
    %cst_42 = arith.constant 0.000000e+00 : f32
    %87 = vector.broadcast %cst_42 : f32 to vector<64x256xf32>
    %88 = arith.maximumf %86, %87 : vector<64x256xf32>
    %89 = vector.extract_strided_slice %88 {offsets = [0, 0], sizes = [64, 128], strides = [1, 1]} : vector<64x256xf32> to vector<64x128xf32>
    %90 = vector.extract_strided_slice %88 {offsets = [0, 128], sizes = [64, 128], strides = [1, 1]} : vector<64x256xf32> to vector<64x128xf32>
    %91 = arith.maximumf %89, %90 : vector<64x128xf32>
    %92 = vector.shape_cast %91 : vector<64x128xf32> to vector<8x4x2x128xf32>
    %93 = vector.extract_strided_slice %92 {offsets = [0, 0, 0, 0], sizes = [8, 4, 1, 128], strides = [1, 1, 1, 1]} : vector<8x4x2x128xf32> to vector<8x4x1x128xf32>
    %94 = vector.shape_cast %93 : vector<8x4x1x128xf32> to vector<8x4x128xf32>
    %95 = vector.extract_strided_slice %92 {offsets = [0, 0, 1, 0], sizes = [8, 4, 1, 128], strides = [1, 1, 1, 1]} : vector<8x4x2x128xf32> to vector<8x4x1x128xf32>
    %96 = vector.shape_cast %95 : vector<8x4x1x128xf32> to vector<8x4x128xf32>
    %97 = arith.maximumf %94, %96 : vector<8x4x128xf32>
    %98 = vector.extract_strided_slice %97 {offsets = [0, 0, 0], sizes = [8, 1, 128], strides = [1, 1, 1]} : vector<8x4x128xf32> to vector<8x1x128xf32>
    %99 = vector.shape_cast %98 : vector<8x1x128xf32> to vector<8x128xf32>
    %100 = arith.truncf %99 : vector<8x128xf32> to vector<8x128xbf16>
    %c0_43 = arith.constant 0 : index
    %c0_44 = arith.constant 0 : index
    %c0_45 = arith.constant 0 : index
    %101 = vector.load %arg6[%c0_43, %c0_44, %c0_45] : memref<4x128x128xbf16, #tpu.memory_space<vmem>>, vector<1x128x128xbf16>
    %102 = vector.shape_cast %101 : vector<1x128x128xbf16> to vector<128x128xbf16>
    %cst_46 = arith.constant dense<0.000000e+00> : vector<8x128xf32>
    %103 = tpu.matmul %100, %102, %cst_46 {dimension_numbers = #tpu.dot_dimension_numbers<[1], [0], [0], [1], [0, 0, 1, 1], [], []>} : vector<8x128xbf16>, vector<128x128xbf16>, vector<8x128xf32> -> vector<8x128xf32>
    %104 = vector.extract_strided_slice %97 {offsets = [0, 1, 0], sizes = [8, 1, 128], strides = [1, 1, 1]} : vector<8x4x128xf32> to vector<8x1x128xf32>
    %105 = vector.shape_cast %104 : vector<8x1x128xf32> to vector<8x128xf32>
    %106 = arith.truncf %105 : vector<8x128xf32> to vector<8x128xbf16>
    %c1_47 = arith.constant 1 : index
    %c0_48 = arith.constant 0 : index
    %c0_49 = arith.constant 0 : index
    %107 = vector.load %arg6[%c1_47, %c0_48, %c0_49] : memref<4x128x128xbf16, #tpu.memory_space<vmem>>, vector<1x128x128xbf16>
    %108 = vector.shape_cast %107 : vector<1x128x128xbf16> to vector<128x128xbf16>
    %cst_50 = arith.constant dense<0.000000e+00> : vector<8x128xf32>
    %109 = tpu.matmul %106, %108, %cst_50 {dimension_numbers = #tpu.dot_dimension_numbers<[1], [0], [0], [1], [0, 0, 1, 1], [], []>} : vector<8x128xbf16>, vector<128x128xbf16>, vector<8x128xf32> -> vector<8x128xf32>
    %110 = arith.addf %103, %109 : vector<8x128xf32>
    %111 = vector.extract_strided_slice %97 {offsets = [0, 2, 0], sizes = [8, 1, 128], strides = [1, 1, 1]} : vector<8x4x128xf32> to vector<8x1x128xf32>
    %112 = vector.shape_cast %111 : vector<8x1x128xf32> to vector<8x128xf32>
    %113 = arith.truncf %112 : vector<8x128xf32> to vector<8x128xbf16>
    %c2_51 = arith.constant 2 : index
    %c0_52 = arith.constant 0 : index
    %c0_53 = arith.constant 0 : index
    %114 = vector.load %arg6[%c2_51, %c0_52, %c0_53] : memref<4x128x128xbf16, #tpu.memory_space<vmem>>, vector<1x128x128xbf16>
    %115 = vector.shape_cast %114 : vector<1x128x128xbf16> to vector<128x128xbf16>
    %cst_54 = arith.constant dense<0.000000e+00> : vector<8x128xf32>
    %116 = tpu.matmul %113, %115, %cst_54 {dimension_numbers = #tpu.dot_dimension_numbers<[1], [0], [0], [1], [0, 0, 1, 1], [], []>} : vector<8x128xbf16>, vector<128x128xbf16>, vector<8x128xf32> -> vector<8x128xf32>
    %117 = arith.addf %110, %116 : vector<8x128xf32>
    %118 = vector.extract_strided_slice %97 {offsets = [0, 3, 0], sizes = [8, 1, 128], strides = [1, 1, 1]} : vector<8x4x128xf32> to vector<8x1x128xf32>
    %119 = vector.shape_cast %118 : vector<8x1x128xf32> to vector<8x128xf32>
    %120 = arith.truncf %119 : vector<8x128xf32> to vector<8x128xbf16>
    %c3_55 = arith.constant 3 : index
    %c0_56 = arith.constant 0 : index
    %c0_57 = arith.constant 0 : index
    %121 = vector.load %arg6[%c3_55, %c0_56, %c0_57] : memref<4x128x128xbf16, #tpu.memory_space<vmem>>, vector<1x128x128xbf16>
    %122 = vector.shape_cast %121 : vector<1x128x128xbf16> to vector<128x128xbf16>
    %cst_58 = arith.constant dense<0.000000e+00> : vector<8x128xf32>
    %123 = tpu.matmul %120, %122, %cst_58 {dimension_numbers = #tpu.dot_dimension_numbers<[1], [0], [0], [1], [0, 0, 1, 1], [], []>} : vector<8x128xbf16>, vector<128x128xbf16>, vector<8x128xf32> -> vector<8x128xf32>
    %124 = arith.addf %117, %123 : vector<8x128xf32>
    %c0_59 = arith.constant 0 : index
    %c0_60 = arith.constant 0 : index
    %125 = vector.load %arg7[%c0_59, %c0_60] : memref<1x128xf32, #tpu.memory_space<vmem>>, vector<1x128xf32>
    %126 = vector.broadcast %125 : vector<1x128xf32> to vector<8x128xf32>
    %127 = arith.addf %124, %126 : vector<8x128xf32>
    %cst_61 = arith.constant 0.000000e+00 : f32
    %128 = vector.broadcast %cst_61 : f32 to vector<8x128xf32>
    %129 = arith.maximumf %127, %128 : vector<8x128xf32>
    %130 = arith.truncf %129 : vector<8x128xf32> to vector<8x128xbf16>
    %c0_62 = arith.constant 0 : index
    %c0_63 = arith.constant 0 : index
    %131 = vector.load %arg8[%c0_62, %c0_63] : memref<128x128xbf16, #tpu.memory_space<vmem>>, vector<128x128xbf16>
    %cst_64 = arith.constant dense<0.000000e+00> : vector<8x128xf32>
    %132 = tpu.matmul %130, %131, %cst_64 {dimension_numbers = #tpu.dot_dimension_numbers<[1], [0], [0], [1], [0, 0, 1, 1], [], []>} : vector<8x128xbf16>, vector<128x128xbf16>, vector<8x128xf32> -> vector<8x128xf32>
    %c0_65 = arith.constant 0 : index
    %c0_66 = arith.constant 0 : index
    %133 = vector.load %arg9[%c0_65, %c0_66] : memref<1x128xf32, #tpu.memory_space<vmem>>, vector<1x128xf32>
    %134 = vector.broadcast %133 : vector<1x128xf32> to vector<8x128xf32>
    %135 = arith.addf %132, %134 : vector<8x128xf32>
    %cst_67 = arith.constant dense<0xFF800000> : vector<8xf32>
    %136 = vector.multi_reduction <maximumf>, %135, %cst_67 [1] : vector<8x128xf32> to vector<8xf32>
    %137 = vector.shape_cast %136 : vector<8xf32> to vector<8x1xf32>
    %138 = vector.broadcast %137 : vector<8x1xf32> to vector<8x128xf32>
    %139 = arith.subf %135, %138 : vector<8x128xf32>
    %140 = math.exp %139 : vector<8x128xf32>
    %cst_68 = arith.constant dense<0.000000e+00> : vector<8xf32>
    %141 = vector.multi_reduction <add>, %140, %cst_68 [1] : vector<8x128xf32> to vector<8xf32>
    %142 = vector.shape_cast %141 : vector<8xf32> to vector<8x1xf32>
    %143 = math.log %142 : vector<8x1xf32>
    %144 = vector.broadcast %143 : vector<8x1xf32> to vector<8x128xf32>
    %145 = arith.subf %139, %144 : vector<8x128xf32>
    %c0_69 = arith.constant 0 : index
    %c0_70 = arith.constant 0 : index
    %146 = vector.load %arg10[%c0_69, %c0_70] : memref<8x128xf32, #tpu.memory_space<vmem>>, vector<8x128xf32>
    tpu.vector_store %arg10[%c0_69, %c0_70], %145 {strides = array<i32>} : memref<8x128xf32, #tpu.memory_space<vmem>>, vector<8x128xf32>,
    return
  }
  func.func @transform_0(%arg0: i32) -> (i32, i32, i32) {
    %c0_i32 = arith.constant 0 : i32
    %c0_i32_0 = arith.constant 0 : i32
    %c0_i32_1 = arith.constant 0 : i32
    return %arg0, %c0_i32, %c0_i32_0 : i32, i32, i32
  }
  func.func @transform_1(%arg0: i32) -> (i32, i32, i32) {
    %c0_i32 = arith.constant 0 : i32
    %c0_i32_0 = arith.constant 0 : i32
    %c0_i32_1 = arith.constant 0 : i32
    %c0_i32_2 = arith.constant 0 : i32
    return %c0_i32, %c0_i32_0, %c0_i32_1 : i32, i32, i32
  }
  func.func @transform_2(%arg0: i32) -> (i32, i32) {
    %c0_i32 = arith.constant 0 : i32
    %c0_i32_0 = arith.constant 0 : i32
    %c0_i32_1 = arith.constant 0 : i32
    return %c0_i32, %c0_i32_0 : i32, i32
  }
  func.func @transform_3(%arg0: i32) -> (i32, i32, i32) {
    %c0_i32 = arith.constant 0 : i32
    %c0_i32_0 = arith.constant 0 : i32
    %c0_i32_1 = arith.constant 0 : i32
    %c0_i32_2 = arith.constant 0 : i32
    return %c0_i32, %c0_i32_0, %c0_i32_1 : i32, i32, i32
  }
  func.func @transform_4(%arg0: i32) -> (i32, i32) {
    %c0_i32 = arith.constant 0 : i32
    %c0_i32_0 = arith.constant 0 : i32
    %c0_i32_1 = arith.constant 0 : i32
    return %c0_i32, %c0_i32_0 : i32, i32
  }
  func.func @transform_5(%arg0: i32) -> (i32, i32, i32) {
    %c0_i32 = arith.constant 0 : i32
    %c0_i32_0 = arith.constant 0 : i32
    %c0_i32_1 = arith.constant 0 : i32
    %c0_i32_2 = arith.constant 0 : i32
    return %c0_i32, %c0_i32_0, %c0_i32_1 : i32, i32, i32
  }
  func.func @transform_6(%arg0: i32) -> (i32, i32) {
    %c0_i32 = arith.constant 0 : i32
    %c0_i32_0 = arith.constant 0 : i32
    %c0_i32_1 = arith.constant 0 : i32
    return %c0_i32, %c0_i32_0 : i32, i32
  }
  func.func @transform_7(%arg0: i32) -> (i32, i32) {
    %c0_i32 = arith.constant 0 : i32
    %c0_i32_0 = arith.constant 0 : i32
    %c0_i32_1 = arith.constant 0 : i32
    return %c0_i32, %c0_i32_0 : i32, i32
  }
  func.func @transform_8(%arg0: i32) -> (i32, i32) {
    %c0_i32 = arith.constant 0 : i32
    %c0_i32_0 = arith.constant 0 : i32
    %c0_i32_1 = arith.constant 0 : i32
    return %c0_i32, %c0_i32_0 : i32, i32
  }
  func.func @transform_9(%arg0: i32) -> (i32, i32) {
    %c0_i32 = arith.constant 0 : i32
    %c0_i32_0 = arith.constant 0 : i32
    return %arg0, %c0_i32 : i32, i32
  }
}

</mosaic_0001>

<llo_original>
// kernel: net_forward.1
$region0: #{net_forward.1}
  #allocation0 [shape = 'u32[]', space=smem, size = 0x4, offset = 0x4, fixed_abs, tag = 'smem constant byte address 0x4 - core index']
  #allocation1 [shape = 'u32[72,128]{1,0:T(1,128)}', space=vmem, size = 0x9000, scoped, tag = 'internal scratch']
  %s0 = inlined_call_operand.vmem [shape: bf16[8,28,28], index: 0, kind: input, shape index: {}]
  %s1 = inlined_call_operand.vmem [shape: bf16[5,28,256], index: 1, kind: input, shape index: {}]
  %s2 = inlined_call_operand.vmem [shape: f32[1,256], index: 2, kind: input, shape index: {}]
  %s3 = inlined_call_operand.hbm [shape: bf16[5,128,256], index: 3, kind: input, shape index: {}]
  %s4 = inlined_call_operand.vmem [shape: f32[1,256], index: 4, kind: input, shape index: {}]
  %s5 = inlined_call_operand.hbm [shape: bf16[4,128,128], index: 5, kind: input, shape index: {}]
  %s6 = inlined_call_operand.vmem [shape: f32[1,128], index: 6, kind: input, shape index: {}]
  %s7 = inlined_call_operand.vmem [shape: bf16[128,128], index: 7, kind: input, shape index: {}]
  %s8 = inlined_call_operand.vmem [shape: f32[1,128], index: 8, kind: input, shape index: {}]
  %s9 = inlined_call_operand.vmem [shape: f32[8,128], index: 9, kind: output, shape index: {}]
  %s10 = sld [smem:[#allocation0]]
  $region54: #{net_forward.1} parent=0
    _
  %s12 = ssub.s32 1, %s10
  %s13 = scalar_select 0, %s12, %s10
  $region1: #{net_forward.1} parent=0
    #allocation2 [shape = 'u8[327680]{0}', space=vmem, size = 0x50000, scoped, tag = 'input window, operand 3, single buffered']
    #allocation3 [shape = 's32[1]{0}', space=sflag, size = 0x4, scoped, tag = 'scoped memory for net_forward.1']
    #allocation4 [shape = 'u8[131072]{0}', space=vmem, size = 0x20000, scoped, tag = 'input window, operand 5, single buffered']
    #allocation5 [shape = 's32[1]{0}', space=sflag, size = 0x4, scoped, tag = 'scoped memory for net_forward.1']
    %14 = vsyncpa [#allocation3], 0
    %15 = vsyncpa [#allocation5], 0
    // Predicated region
    $region2: #{net_forward.1} parent=1 // pred_check
      _
    $region3: #{net_forward.1} parent=1 // pred_check_branch
      %17 = sbr.rel (0) target = $region5
    $region4: #{net_forward.1} parent=1 // pred_region
      _
    $region5: #{net_forward.1} parent=1 // pred_fallthru
      _
    // Predicated region
    $region6: #{net_forward.1} parent=1 // pred_check
      _
    $region7: #{net_forward.1} parent=1 // pred_check_branch
      %19 = sbr.rel (0) target = $region9
    $region8: #{net_forward.1} parent=1 // pred_region
      _
    $region9: #{net_forward.1} parent=1 // pred_fallthru
      _
    // Predicated region
    $region10: #{net_forward.1} parent=1 // pred_check
      _
    $region11: #{net_forward.1} parent=1 // pred_check_branch
      %21 = sbr.rel (0) target = $region13
    $region12: #{net_forward.1} parent=1 // pred_region
      _
    $region13: #{net_forward.1} parent=1 // pred_fallthru
      _
    // Predicated region
    $region14: #{net_forward.1} parent=1 // pred_check
      _
    $region15: #{net_forward.1} parent=1 // pred_check_branch
      %23 = sbr.rel (0) target = $region17
    $region16: #{net_forward.1} parent=1 // pred_region
      %25 = vsyncadd [#allocation3], 0
      %s26 = sshll.u32 %s3, 4
      %s27 = int_to_ptr.hbm [resolvable:$true] %s26
      %s28 = sshll.u32 [#allocation2], 4
      %s29 = int_to_ptr.vmem [resolvable:$true] %s28
      %34 = dma.hbm_to_vmem [thread:$0]  %s27, 10240, %s29, [#allocation3], 128, 128, 8
    $region17: #{net_forward.1} parent=1 // pred_fallthru
      _
    // Predicated region
    $region18: #{net_forward.1} parent=1 // pred_check
      _
    $region19: #{net_forward.1} parent=1 // pred_check_branch
      %36 = sbr.rel (0) target = $region21
    $region20: #{net_forward.1} parent=1 // pred_region
      _
    $region21: #{net_forward.1} parent=1 // pred_fallthru
      _
    // Predicated region
    $region22: #{net_forward.1} parent=1 // pred_check
      _
    $region23: #{net_forward.1} parent=1 // pred_check_branch
      %38 = sbr.rel (0) target = $region25
    $region24: #{net_forward.1} parent=1 // pred_region
      %40 = vsyncadd [#allocation5], 0
      %s41 = sshll.u32 %s5, 4
      %s42 = int_to_ptr.hbm [resolvable:$true] %s41
      %s43 = sshll.u32 [#allocation4], 4
      %s44 = int_to_ptr.vmem [resolvable:$true] %s43
      %49 = dma.hbm_to_vmem [thread:$0]  %s42, 4096, %s44, [#allocation5], 64, 64, 4
    $region25: #{net_forward.1} parent=1 // pred_fallthru
      _
    // Predicated region
    $region26: #{net_forward.1} parent=1 // pred_check
      _
    $region27: #{net_forward.1} parent=1 // pred_check_branch
      %51 = sbr.rel (0) target = $region29
    $region28: #{net_forward.1} parent=1 // pred_region
      _
    $region29: #{net_forward.1} parent=1 // pred_fallthru
      _
    // Predicated region
    $region30: #{net_forward.1} parent=1 // pred_check
      _
    $region31: #{net_forward.1} parent=1 // pred_check_branch
      %53 = sbr.rel (0) target = $region33
    $region32: #{net_forward.1} parent=1 // pred_region
      _
    $region33: #{net_forward.1} parent=1 // pred_fallthru
      _
    // Predicated region
    $region34: #{net_forward.1} parent=1 // pred_check
      _
    $region35: #{net_forward.1} parent=1 // pred_check_branch
      %55 = sbr.rel (0) target = $region37
    $region36: #{net_forward.1} parent=1 // pred_region
      _
    $region37: #{net_forward.1} parent=1 // pred_fallthru
      _
    // Predicated region
    $region38: #{net_forward.1} parent=1 // pred_check
      _
    $region39: #{net_forward.1} parent=1 // pred_check_branch
      %57 = sbr.rel (0) target = $region41
    $region40: #{net_forward.1} parent=1 // pred_region
      %59 = dma.done [#allocation3], 10240
    $region41: #{net_forward.1} parent=1 // pred_fallthru
      _
    // Predicated region
    $region42: #{net_forward.1} parent=1 // pred_check
      _
    $region43: #{net_forward.1} parent=1 // pred_check_branch
      %61 = sbr.rel (0) target = $region45
    $region44: #{net_forward.1} parent=1 // pred_region
      %63 = dma.done [#allocation5], 4096
    $region45: #{net_forward.1} parent=1 // pred_fallthru
      _
    %v65 = vld [vmem:[%s0] sm:$0xf]
    %v66 = vld [vmem:[%s0 + $0x4] sm:$0xf]
    %v67 = vld [vmem:[%s0 + $0x8] sm:$0xf]
    %v68 = vld [vmem:[%s0 + $0xc] sm:$0x3]
    %v69 = vld [vmem:[%s0 + $0x10] sm:$0xf]
    %v70 = vld [vmem:[%s0 + $0x14] sm:$0xf]
    %v71 = vld [vmem:[%s0 + $0x18] sm:$0xf]
    %v72 = vld [vmem:[%s0 + $0x1c] sm:$0x3]
    %v73 = vld [vmem:[%s0 + $0x20] sm:$0xf]
    %v74 = vld [vmem:[%s0 + $0x24] sm:$0xf]
    %v75 = vld [vmem:[%s0 + $0x28] sm:$0xf]
    %v76 = vld [vmem:[%s0 + $0x2c] sm:$0x3]
    %v77 = vld [vmem:[%s0 + $0x30] sm:$0xf]
    %v78 = vld [vmem:[%s0 + $0x34] sm:$0xf]
    %v79 = vld [vmem:[%s0 + $0x38] sm:$0xf]
    %v80 = vld [vmem:[%s0 + $0x3c] sm:$0x3]
    %v81 = vld [vmem:[%s0 + $0x40] sm:$0xf]
    %v82 = vld [vmem:[%s0 + $0x44] sm:$0xf]
    %v83 = vld [vmem:[%s0 + $0x48] sm:$0xf]
    %v84 = vld [vmem:[%s0 + $0x4c] sm:$0x3]
    %v85 = vld [vmem:[%s0 + $0x50] sm:$0xf]
    %v86 = vld [vmem:[%s0 + $0x54] sm:$0xf]
    %v87 = vld [vmem:[%s0 + $0x58] sm:$0xf]
    %v88 = vld [vmem:[%s0 + $0x5c] sm:$0x3]
    %v89 = vld [vmem:[%s0 + $0x60] sm:$0xf]
    %v90 = vld [vmem:[%s0 + $0x64] sm:$0xf]
    %v91 = vld [vmem:[%s0 + $0x68] sm:$0xf]
    %v92 = vld [vmem:[%s0 + $0x6c] sm:$0x3]
    %v93 = vld [vmem:[%s0 + $0x70] sm:$0xf]
    %v94 = vld [vmem:[%s0 + $0x74] sm:$0xf]
    %v95 = vld [vmem:[%s0 + $0x78] sm:$0xf]
    %v96 = vld [vmem:[%s0 + $0x7c] sm:$0x3]
    %v97 = vunpack.c.l.bf16 %v65
    %v98 = vunpack.c.l.bf16 %v66
    %v99 = vunpack.c.l.bf16 %v67
    %v100 = vunpack.c.l.bf16 %v68
    %v101 = vunpack.c.l.bf16 %v69
    %v102 = vunpack.c.l.bf16 %v70
    %v103 = vunpack.c.l.bf16 %v71
    %v104 = vunpack.c.l.bf16 %v72
    %v105 = vunpack.c.l.bf16 %v73
    %v106 = vunpack.c.l.bf16 %v74
    %v107 = vunpack.c.l.bf16 %v75
    %v108 = vunpack.c.l.bf16 %v76
    %v109 = vunpack.c.l.bf16 %v77
    %v110 = vunpack.c.l.bf16 %v78
    %v111 = vunpack.c.l.bf16 %v79
    %v112 = vunpack.c.l.bf16 %v80
    %v113 = vunpack.c.l.bf16 %v81
    %v114 = vunpack.c.l.bf16 %v82
    %v115 = vunpack.c.l.bf16 %v83
    %v116 = vunpack.c.l.bf16 %v84
    %v117 = vunpack.c.l.bf16 %v85
    %v118 = vunpack.c.l.bf16 %v86
    %v119 = vunpack.c.l.bf16 %v87
    %v120 = vunpack.c.l.bf16 %v88
    %v121 = vunpack.c.l.bf16 %v89
    %v122 = vunpack.c.l.bf16 %v90
    %v123 = vunpack.c.l.bf16 %v91
    %v124 = vunpack.c.l.bf16 %v92
    %v125 = vunpack.c.l.bf16 %v93
    %v126 = vunpack.c.l.bf16 %v94
    %v127 = vunpack.c.l.bf16 %v95
    %v128 = vunpack.c.l.bf16 %v96
    %v129 = vpack.c.bf16 %v98, %v97
    %v130 = vpack.c.bf16 %v101, %v99
    %v131 = vpack.c.bf16 %v103, %v102
    %v132 = vpack.c.bf16 %v106, %v105
    %v133 = vpack.c.bf16 %v109, %v107
    %v134 = vpack.c.bf16 %v111, %v110
    %v135 = vpack.c.bf16 %v114, %v113
    %v136 = vpack.c.bf16 %v117, %v115
    %v137 = vpack.c.bf16 %v119, %v118
    %v138 = vpack.c.bf16 %v122, %v121
    %v139 = vpack.c.bf16 %v125, %v123
    %v140 = vpack.c.bf16 %v127, %v126
    %v141 = vld [vmem:[%s1] sm:$0xff]
    %v142 = vld [vmem:[%s1 + $0x8] sm:$0xff]
    %v143 = vld [vmem:[%s1 + $0x10] sm:$0xff]
    %v144 = vld [vmem:[%s1 + $0x18] sm:$0x33]
    %vm177 = vcmask 1046528
    %v178 = vrot.slane %v97, 1
    %v179 = vrot.slane %v98, 1
    %v180 = vsel %vm177, %v178, %v179
    %v181 = vrot.slane %v99, 1
    %v182 = vsel %vm177, %v179, %v181
    %v183 = vrot.slane %v100, 1
    %v184 = vsel %vm177, %v181, %v183
    %v185 = vrot.slane %v101, 1
    %v186 = vrot.slane %v102, 1
    %v187 = vsel %vm177, %v185, %v186
    %v188 = vrot.slane %v103, 1
    %v189 = vsel %vm177, %v186, %v188
    %v190 = vrot.slane %v104, 1
    %v191 = vsel %vm177, %v188, %v190
    %v192 = vrot.slane %v105, 1
    %v193 = vrot.slane %v106, 1
    %v194 = vsel %vm177, %v192, %v193
    %v195 = vrot.slane %v107, 1
    %v196 = vsel %vm177, %v193, %v195
    %v197 = vrot.slane %v108, 1
    %v198 = vsel %vm177, %v195, %v197
    %v199 = vrot.slane %v109, 1
    %v200 = vrot.slane %v110, 1
    %v201 = vsel %vm177, %v199, %v200
    %v202 = vrot.slane %v111, 1
    %v203 = vsel %vm177, %v200, %v202
    %v204 = vrot.slane %v112, 1
    %v205 = vsel %vm177, %v202, %v204
    %v206 = vrot.slane %v113, 1
    %v207 = vrot.slane %v114, 1
    %v208 = vsel %vm177, %v206, %v207
    %v209 = vrot.slane %v115, 1
    %v210 = vsel %vm177, %v207, %v209
    %v211 = vrot.slane %v116, 1
    %v212 = vsel %vm177, %v209, %v211
    %v213 = vrot.slane %v117, 1
    %v214 = vrot.slane %v118, 1
    %v215 = vsel %vm177, %v213, %v214
    %v216 = vrot.slane %v119, 1
    %v217 = vsel %vm177, %v214, %v216
    %v218 = vrot.slane %v120, 1
    %v219 = vsel %vm177, %v216, %v218
    %v220 = vrot.slane %v121, 1
    %v221 = vrot.slane %v122, 1
    %v222 = vsel %vm177, %v220, %v221
    %v223 = vrot.slane %v123, 1
    %v224 = vsel %vm177, %v221, %v223
    %v225 = vrot.slane %v124, 1
    %v226 = vsel %vm177, %v223, %v225
    %v227 = vrot.slane %v125, 1
    %v228 = vrot.slane %v126, 1
    %v229 = vsel %vm177, %v227, %v228
    %v230 = vrot.slane %v127, 1
    %v231 = vsel %vm177, %v228, %v230
    %v232 = vrot.slane %v128, 1
    %v233 = vsel %vm177, %v230, %v232
    %v258 = vpack.c.bf16 %v182, %v180
    %v259 = vpack.c.bf16 %v187, %v184
    %v260 = vpack.c.bf16 %v191, %v189
    %v261 = vpack.c.bf16 %v196, %v194
    %v262 = vpack.c.bf16 %v201, %v198
    %v263 = vpack.c.bf16 %v205, %v203
    %v264 = vpack.c.bf16 %v210, %v208
    %v265 = vpack.c.bf16 %v215, %v212
    %v266 = vpack.c.bf16 %v219, %v217
    %v267 = vpack.c.bf16 %v224, %v222
    %v268 = vpack.c.bf16 %v229, %v226
    %v269 = vpack.c.bf16 %v233, %v231
    %s270 = scalar_lea.vmem %s1, 32
    %v271 = vld [vmem:[%s270] sm:$0xff]
    %v272 = vld [vmem:[%s270 + $0x8] sm:$0xff]
    %v273 = vld [vmem:[%s270 + $0x10] sm:$0xff]
    %v274 = vld [vmem:[%s270 + $0x18] sm:$0x33]
    %v279 = vunpack.c.l.b16 %v271
    %v280 = vunpack.c.h.b16 %v271
    %v281 = vunpack.c.l.b16 %v272
    %v282 = vunpack.c.h.b16 %v272
    %v283 = vunpack.c.l.b16 %v273
    %v284 = vunpack.c.h.b16 %v273
    %v285 = vunpack.c.l.b16 %v274
    %v286 = vunpack.c.h.b16 %v274
    %v287 = vpack.c.b16 %v281, %v279
    %v288 = vpack.c.b16 %v282, %v280
    %v289 = vpack.c.b16 %v285, %v283
    %v290 = vpack.c.b16 %v286, %v284
    %vm293 = vcmask 228352
    %v295 = vsel %vm293, %v258, 0
    %v298 = vsel %vm293, %v259, 0
    %v301 = vsel %vm293, %v260, 0
    %v304 = vsel %vm293, %v261, 0
    %v307 = vsel %vm293, %v262, 0
    %v310 = vsel %vm293, %v263, 0
    %v313 = vsel %vm293, %v264, 0
    %v316 = vsel %vm293, %v265, 0
    %v319 = vsel %vm293, %v266, 0
    %v322 = vsel %vm293, %v267, 0
    %v325 = vsel %vm293, %v268, 0
    %v328 = vsel %vm293, %v269, 0
    %vm330 = vcmask 1045504
    %v332 = vsel %vm330, %v289, 0
    %v335 = vsel %vm330, %v290, 0
    %337 = vmatpush.bf16.msra.mxu0 0
    %338 = vmatpush.bf16.msra.mxu0 0
    %339 = vmatpush.bf16.msra.mxu0 0
    %340 = vmatpush.bf16.msra.mxu0 0
    %341 = vmatpush.bf16.msra.mxu0 0
    %342 = vmatpush.bf16.msra.mxu0 0
    %343 = vmatpush.bf16.msra.mxu0 %v332
    %344 = vmatpush.bf16.msra.mxu0 %v287
    %345 = vmatmul.bf16.gmra.mxu0 %v295
    %v346 = vpop.f32.mrf.mxu0
    %v347 = vadd.f32 0.0, %v346
    %v348 = vpop.f32.mrf.mxu0
    %v349 = vadd.f32 0.0, %v348
    %350 = vmatmul.bf16.gmra.mxu0 %v298
    %v351 = vpop.f32.mrf.mxu0
    %v352 = vadd.f32 0.0, %v351
    %v353 = vpop.f32.mrf.mxu0
    %v354 = vadd.f32 0.0, %v353
    %355 = vmatmul.bf16.gmra.mxu0 %v301
    %v356 = vpop.f32.mrf.mxu0
    %v357 = vadd.f32 0.0, %v356
    %v358 = vpop.f32.mrf.mxu0
    %v359 = vadd.f32 0.0, %v358
    %360 = vmatmul.bf16.gmra.mxu0 %v304
    %v361 = vpop.f32.mrf.mxu0
    %v362 = vadd.f32 0.0, %v361
    %v363 = vpop.f32.mrf.mxu0
    %v364 = vadd.f32 0.0, %v363
    %365 = vmatmul.bf16.gmra.mxu0 %v307
    %v366 = vpop.f32.mrf.mxu0
    %v367 = vadd.f32 0.0, %v366
    %v368 = vpop.f32.mrf.mxu0
    %v369 = vadd.f32 0.0, %v368
    %370 = vmatmul.bf16.gmra.mxu0 %v310
    %v371 = vpop.f32.mrf.mxu0
    %v372 = vadd.f32 0.0, %v371
    %v373 = vpop.f32.mrf.mxu0
    %v374 = vadd.f32 0.0, %v373
    %375 = vmatmul.bf16.gmra.mxu0 %v313
    %v376 = vpop.f32.mrf.mxu0
    %v377 = vadd.f32 0.0, %v376
    %v378 = vpop.f32.mrf.mxu0
    %v379 = vadd.f32 0.0, %v378
    %380 = vmatmul.bf16.gmra.mxu0 %v316
    %v381 = vpop.f32.mrf.mxu0
    %v382 = vadd.f32 0.0, %v381
    %v383 = vpop.f32.mrf.mxu0
    %v384 = vadd.f32 0.0, %v383
    %385 = vmatmul.bf16.gmra.mxu0 %v319
    %v386 = vpop.f32.mrf.mxu0
    %v387 = vadd.f32 0.0, %v386
    %v388 = vpop.f32.mrf.mxu0
    %v389 = vadd.f32 0.0, %v388
    %390 = vmatmul.bf16.gmra.mxu0 %v322
    %v391 = vpop.f32.mrf.mxu0
    %v392 = vadd.f32 0.0, %v391
    %v393 = vpop.f32.mrf.mxu0
    %v394 = vadd.f32 0.0, %v393
    %395 = vmatmul.bf16.gmra.mxu0 %v325
    %v396 = vpop.f32.mrf.mxu0
    %v397 = vadd.f32 0.0, %v396
    %v398 = vpop.f32.mrf.mxu0
    %v399 = vadd.f32 0.0, %v398
    %400 = vmatmul.bf16.gmra.mxu0 %v328
    %v401 = vpop.f32.mrf.mxu0
    %v402 = vadd.f32 0.0, %v401
    %v403 = vpop.f32.mrf.mxu0
    %v404 = vadd.f32 0.0, %v403
    %405 = vdwg.mxu0
    %406 = vmatpush.bf16.msra.mxu0 0
    %407 = vmatpush.bf16.msra.mxu0 0
    %408 = vmatpush.bf16.msra.mxu0 0
    %409 = vmatpush.bf16.msra.mxu0 0
    %410 = vmatpush.bf16.msra.mxu0 0
    %411 = vmatpush.bf16.msra.mxu0 0
    %412 = vmatpush.bf16.msra.mxu0 %v335
    %413 = vmatpush.bf16.msra.mxu0 %v288
    %414 = vmatmul.bf16.gmra.mxu0 %v295
    %v415 = vpop.f32.mrf.mxu0
    %v416 = vadd.f32 0.0, %v415
    %v417 = vpop.f32.mrf.mxu0
    %v418 = vadd.f32 0.0, %v417
    %419 = vmatmul.bf16.gmra.mxu0 %v298
    %v420 = vpop.f32.mrf.mxu0
    %v421 = vadd.f32 0.0, %v420
    %v422 = vpop.f32.mrf.mxu0
    %v423 = vadd.f32 0.0, %v422
    %424 = vmatmul.bf16.gmra.mxu0 %v301
    %v425 = vpop.f32.mrf.mxu0
    %v426 = vadd.f32 0.0, %v425
    %v427 = vpop.f32.mrf.mxu0
    %v428 = vadd.f32 0.0, %v427
    %429 = vmatmul.bf16.gmra.mxu0 %v304
    %v430 = vpop.f32.mrf.mxu0
    %v431 = vadd.f32 0.0, %v430
    %v432 = vpop.f32.mrf.mxu0
    %v433 = vadd.f32 0.0, %v432
    %434 = vmatmul.bf16.gmra.mxu0 %v307
    %v435 = vpop.f32.mrf.mxu0
    %v436 = vadd.f32 0.0, %v435
    %v437 = vpop.f32.mrf.mxu0
    %v438 = vadd.f32 0.0, %v437
    %439 = vmatmul.bf16.gmra.mxu0 %v310
    %v440 = vpop.f32.mrf.mxu0
    %v441 = vadd.f32 0.0, %v440
    %v442 = vpop.f32.mrf.mxu0
    %v443 = vadd.f32 0.0, %v442
    %444 = vmatmul.bf16.gmra.mxu0 %v313
    %v445 = vpop.f32.mrf.mxu0
    %v446 = vadd.f32 0.0, %v445
    %v447 = vpop.f32.mrf.mxu0
    %v448 = vadd.f32 0.0, %v447
    %449 = vmatmul.bf16.gmra.mxu0 %v316
    %v450 = vpop.f32.mrf.mxu0
    %v451 = vadd.f32 0.0, %v450
    %v452 = vpop.f32.mrf.mxu0
    %v453 = vadd.f32 0.0, %v452
    %454 = vmatmul.bf16.gmra.mxu0 %v319
    %v455 = vpop.f32.mrf.mxu0
    %v456 = vadd.f32 0.0, %v455
    %v457 = vpop.f32.mrf.mxu0
    %v458 = vadd.f32 0.0, %v457
    %459 = vmatmul.bf16.gmra.mxu0 %v322
    %v460 = vpop.f32.mrf.mxu0
    %v461 = vadd.f32 0.0, %v460
    %v462 = vpop.f32.mrf.mxu0
    %v463 = vadd.f32 0.0, %v462
    %464 = vmatmul.bf16.gmra.mxu0 %v325
    %v465 = vpop.f32.mrf.mxu0
    %v466 = vadd.f32 0.0, %v465
    %v467 = vpop.f32.mrf.mxu0
    %v468 = vadd.f32 0.0, %v467
    %469 = vmatmul.bf16.gmra.mxu0 %v328
    %v470 = vpop.f32.mrf.mxu0
    %v471 = vadd.f32 0.0, %v470
    %v472 = vpop.f32.mrf.mxu0
    %v473 = vadd.f32 0.0, %v472
    %474 = vdwg.mxu0
    %v479 = vunpack.c.l.b16 %v141
    %v480 = vunpack.c.h.b16 %v141
    %v481 = vunpack.c.l.b16 %v142
    %v482 = vunpack.c.h.b16 %v142
    %v483 = vunpack.c.l.b16 %v143
    %v484 = vunpack.c.h.b16 %v143
    %v485 = vunpack.c.l.b16 %v144
    %v486 = vunpack.c.h.b16 %v144
    %v487 = vpack.c.b16 %v481, %v479
    %v488 = vpack.c.b16 %v482, %v480
    %v489 = vpack.c.b16 %v485, %v483
    %v490 = vpack.c.b16 %v486, %v484
    %v494 = vsel %vm293, %v129, 0
    %v497 = vsel %vm293, %v130, 0
    %v500 = vsel %vm293, %v131, 0
    %v503 = vsel %vm293, %v132, 0
    %v506 = vsel %vm293, %v133, 0
    %v509 = vsel %vm293, %v134, 0
    %v512 = vsel %vm293, %v135, 0
    %v515 = vsel %vm293, %v136, 0
    %v518 = vsel %vm293, %v137, 0
    %v521 = vsel %vm293, %v138, 0
    %v524 = vsel %vm293, %v139, 0
    %v527 = vsel %vm293, %v140, 0
    %v530 = vsel %vm330, %v489, 0
    %v533 = vsel %vm330, %v490, 0
    %535 = vmatpush.bf16.msra.mxu0 0
    %536 = vmatpush.bf16.msra.mxu0 0
    %537 = vmatpush.bf16.msra.mxu0 0
    %538 = vmatpush.bf16.msra.mxu0 0
    %539 = vmatpush.bf16.msra.mxu0 0
    %540 = vmatpush.bf16.msra.mxu0 0
    %541 = vmatpush.bf16.msra.mxu0 %v530
    %542 = vmatpush.bf16.msra.mxu0 %v487
    %543 = vmatmul.bf16.gmra.mxu0 %v494
    %v544 = vpop.f32.mrf.mxu0
    %v545 = vadd.f32 %v347, %v544
    %v546 = vpop.f32.mrf.mxu0
    %v547 = vadd.f32 %v349, %v546
    %548 = vmatmul.bf16.gmra.mxu0 %v497
    %v549 = vpop.f32.mrf.mxu0
    %v550 = vadd.f32 %v352, %v549
    %v551 = vpop.f32.mrf.mxu0
    %v552 = vadd.f32 %v354, %v551
    %553 = vmatmul.bf16.gmra.mxu0 %v500
    %v554 = vpop.f32.mrf.mxu0
    %v555 = vadd.f32 %v357, %v554
    %v556 = vpop.f32.mrf.mxu0
    %v557 = vadd.f32 %v359, %v556
    %558 = vmatmul.bf16.gmra.mxu0 %v503
    %v559 = vpop.f32.mrf.mxu0
    %v560 = vadd.f32 %v362, %v559
    %v561 = vpop.f32.mrf.mxu0
    %v562 = vadd.f32 %v364, %v561
    %563 = vmatmul.bf16.gmra.mxu0 %v506
    %v564 = vpop.f32.mrf.mxu0
    %v565 = vadd.f32 %v367, %v564
    %v566 = vpop.f32.mrf.mxu0
    %v567 = vadd.f32 %v369, %v566
    %568 = vmatmul.bf16.gmra.mxu0 %v509
    %v569 = vpop.f32.mrf.mxu0
    %v570 = vadd.f32 %v372, %v569
    %v571 = vpop.f32.mrf.mxu0
    %v572 = vadd.f32 %v374, %v571
    %573 = vmatmul.bf16.gmra.mxu0 %v512
    %v574 = vpop.f32.mrf.mxu0
    %v575 = vadd.f32 %v377, %v574
    %v576 = vpop.f32.mrf.mxu0
    %v577 = vadd.f32 %v379, %v576
    %578 = vmatmul.bf16.gmra.mxu0 %v515
    %v579 = vpop.f32.mrf.mxu0
    %v580 = vadd.f32 %v382, %v579
    %v581 = vpop.f32.mrf.mxu0
    %v582 = vadd.f32 %v384, %v581
    %583 = vmatmul.bf16.gmra.mxu0 %v518
    %v584 = vpop.f32.mrf.mxu0
    %v585 = vadd.f32 %v387, %v584
    %v586 = vpop.f32.mrf.mxu0
    %v587 = vadd.f32 %v389, %v586
    %588 = vmatmul.bf16.gmra.mxu0 %v521
    %v589 = vpop.f32.mrf.mxu0
    %v590 = vadd.f32 %v392, %v589
    %v591 = vpop.f32.mrf.mxu0
    %v592 = vadd.f32 %v394, %v591
    %593 = vmatmul.bf16.gmra.mxu0 %v524
    %v594 = vpop.f32.mrf.mxu0
    %v595 = vadd.f32 %v397, %v594
    %v596 = vpop.f32.mrf.mxu0
    %v597 = vadd.f32 %v399, %v596
    %598 = vmatmul.bf16.gmra.mxu0 %v527
    %v599 = vpop.f32.mrf.mxu0
    %v600 = vadd.f32 %v402, %v599
    %v601 = vpop.f32.mrf.mxu0
    %v602 = vadd.f32 %v404, %v601
    %603 = vdwg.mxu0
    %604 = vmatpush.bf16.msra.mxu0 0
    %605 = vmatpush.bf16.msra.mxu0 0
    %606 = vmatpush.bf16.msra.mxu0 0
    %607 = vmatpush.bf16.msra.mxu0 0
    %608 = vmatpush.bf16.msra.mxu0 0
    %609 = vmatpush.bf16.msra.mxu0 0
    %610 = vmatpush.bf16.msra.mxu0 %v533
    %611 = vmatpush.bf16.msra.mxu0 %v488
    %612 = vmatmul.bf16.gmra.mxu0 %v494
    %v613 = vpop.f32.mrf.mxu0
    %v614 = vadd.f32 %v416, %v613
    %v615 = vpop.f32.mrf.mxu0
    %v616 = vadd.f32 %v418, %v615
    %617 = vmatmul.bf16.gmra.mxu0 %v497
    %v618 = vpop.f32.mrf.mxu0
    %v619 = vadd.f32 %v421, %v618
    %v620 = vpop.f32.mrf.mxu0
    %v621 = vadd.f32 %v423, %v620
    %622 = vmatmul.bf16.gmra.mxu0 %v500
    %v623 = vpop.f32.mrf.mxu0
    %v624 = vadd.f32 %v426, %v623
    %v625 = vpop.f32.mrf.mxu0
    %v626 = vadd.f32 %v428, %v625
    %627 = vmatmul.bf16.gmra.mxu0 %v503
    %v628 = vpop.f32.mrf.mxu0
    %v629 = vadd.f32 %v431, %v628
    %v630 = vpop.f32.mrf.mxu0
    %v631 = vadd.f32 %v433, %v630
    %632 = vmatmul.bf16.gmra.mxu0 %v506
    %v633 = vpop.f32.mrf.mxu0
    %v634 = vadd.f32 %v436, %v633
    %v635 = vpop.f32.mrf.mxu0
    %v636 = vadd.f32 %v438, %v635
    %637 = vmatmul.bf16.gmra.mxu0 %v509
    %v638 = vpop.f32.mrf.mxu0
    %v639 = vadd.f32 %v441, %v638
    %v640 = vpop.f32.mrf.mxu0
    %v641 = vadd.f32 %v443, %v640
    %642 = vmatmul.bf16.gmra.mxu0 %v512
    %v643 = vpop.f32.mrf.mxu0
    %v644 = vadd.f32 %v446, %v643
    %v645 = vpop.f32.mrf.mxu0
    %v646 = vadd.f32 %v448, %v645
    %647 = vmatmul.bf16.gmra.mxu0 %v515
    %v648 = vpop.f32.mrf.mxu0
    %v649 = vadd.f32 %v451, %v648
    %v650 = vpop.f32.mrf.mxu0
    %v651 = vadd.f32 %v453, %v650
    %652 = vmatmul.bf16.gmra.mxu0 %v518
    %v653 = vpop.f32.mrf.mxu0
    %v654 = vadd.f32 %v456, %v653
    %v655 = vpop.f32.mrf.mxu0
    %v656 = vadd.f32 %v458, %v655
    %657 = vmatmul.bf16.gmra.mxu0 %v521
    %v658 = vpop.f32.mrf.mxu0
    %v659 = vadd.f32 %v461, %v658
    %v660 = vpop.f32.mrf.mxu0
    %v661 = vadd.f32 %v463, %v660
    %662 = vmatmul.bf16.gmra.mxu0 %v524
    %v663 = vpop.f32.mrf.mxu0
    %v664 = vadd.f32 %v466, %v663
    %v665 = vpop.f32.mrf.mxu0
    %v666 = vadd.f32 %v468, %v665
    %667 = vmatmul.bf16.gmra.mxu0 %v527
    %v668 = vpop.f32.mrf.mxu0
    %v669 = vadd.f32 %v471, %v668
    %v670 = vpop.f32.mrf.mxu0
    %v671 = vadd.f32 %v473, %v670
    %672 = vdwg.mxu0
    %v673 = vrot.slane %v97, 2
    %v674 = vrot.slane %v98, 2
    %v675 = vsel %vm330, %v673, %v674
    %v676 = vrot.slane %v99, 2
    %v677 = vsel %vm330, %v674, %v676
    %v678 = vrot.slane %v100, 2
    %v679 = vsel %vm330, %v676, %v678
    %v680 = vrot.slane %v101, 2
    %v681 = vrot.slane %v102, 2
    %v682 = vsel %vm330, %v680, %v681
    %v683 = vrot.slane %v103, 2
    %v684 = vsel %vm330, %v681, %v683
    %v685 = vrot.slane %v104, 2
    %v686 = vsel %vm330, %v683, %v685
    %v687 = vrot.slane %v105, 2
    %v688 = vrot.slane %v106, 2
    %v689 = vsel %vm330, %v687, %v688
    %v690 = vrot.slane %v107, 2
    %v691 = vsel %vm330, %v688, %v690
    %v692 = vrot.slane %v108, 2
    %v693 = vsel %vm330, %v690, %v692
    %v694 = vrot.slane %v109, 2
    %v695 = vrot.slane %v110, 2
    %v696 = vsel %vm330, %v694, %v695
    %v697 = vrot.slane %v111, 2
    %v698 = vsel %vm330, %v695, %v697
    %v699 = vrot.slane %v112, 2
    %v700 = vsel %vm330, %v697, %v699
    %v701 = vrot.slane %v113, 2
    %v702 = vrot.slane %v114, 2
    %v703 = vsel %vm330, %v701, %v702
    %v704 = vrot.slane %v115, 2
    %v705 = vsel %vm330, %v702, %v704
    %v706 = vrot.slane %v116, 2
    %v707 = vsel %vm330, %v704, %v706
    %v708 = vrot.slane %v117, 2
    %v709 = vrot.slane %v118, 2
    %v710 = vsel %vm330, %v708, %v709
    %v711 = vrot.slane %v119, 2
    %v712 = vsel %vm330, %v709, %v711
    %v713 = vrot.slane %v120, 2
    %v714 = vsel %vm330, %v711, %v713
    %v715 = vrot.slane %v121, 2
    %v716 = vrot.slane %v122, 2
    %v717 = vsel %vm330, %v715, %v716
    %v718 = vrot.slane %v123, 2
    %v719 = vsel %vm330, %v716, %v718
    %v720 = vrot.slane %v124, 2
    %v721 = vsel %vm330, %v718, %v720
    %v722 = vrot.slane %v125, 2
    %v723 = vrot.slane %v126, 2
    %v724 = vsel %vm330, %v722, %v723
    %v725 = vrot.slane %v127, 2
    %v726 = vsel %vm330, %v723, %v725
    %v727 = vrot.slane %v128, 2
    %v728 = vsel %vm330, %v725, %v727
    %v753 = vpack.c.bf16 %v677, %v675
    %v754 = vpack.c.bf16 %v682, %v679
    %v755 = vpack.c.bf16 %v686, %v684
    %v756 = vpack.c.bf16 %v691, %v689
    %v757 = vpack.c.bf16 %v696, %v693
    %v758 = vpack.c.bf16 %v700, %v698
    %v759 = vpack.c.bf16 %v705, %v703
    %v760 = vpack.c.bf16 %v710, %v707
    %v761 = vpack.c.bf16 %v714, %v712
    %v762 = vpack.c.bf16 %v719, %v717
    %v763 = vpack.c.bf16 %v724, %v721
    %v764 = vpack.c.bf16 %v728, %v726
    %s765 = scalar_lea.vmem %s1, 64
    %v766 = vld [vmem:[%s765] sm:$0xff]
    %v767 = vld [vmem:[%s765 + $0x8] sm:$0xff]
    %v768 = vld [vmem:[%s765 + $0x10] sm:$0xff]
    %v769 = vld [vmem:[%s765 + $0x18] sm:$0x33]
    %v774 = vunpack.c.l.b16 %v766
    %v775 = vunpack.c.h.b16 %v766
    %v776 = vunpack.c.l.b16 %v767
    %v777 = vunpack.c.h.b16 %v767
    %v778 = vunpack.c.l.b16 %v768
    %v779 = vunpack.c.h.b16 %v768
    %v780 = vunpack.c.l.b16 %v769
    %v781 = vunpack.c.h.b16 %v769
    %v782 = vpack.c.b16 %v776, %v774
    %v783 = vpack.c.b16 %v777, %v775
    %v784 = vpack.c.b16 %v780, %v778
    %v785 = vpack.c.b16 %v781, %v779
    %v789 = vsel %vm293, %v753, 0
    %v792 = vsel %vm293, %v754, 0
    %v795 = vsel %vm293, %v755, 0
    %v798 = vsel %vm293, %v756, 0
    %v801 = vsel %vm293, %v757, 0
    %v804 = vsel %vm293, %v758, 0
    %v807 = vsel %vm293, %v759, 0
    %v810 = vsel %vm293, %v760, 0
    %v813 = vsel %vm293, %v761, 0
    %v816 = vsel %vm293, %v762, 0
    %v819 = vsel %vm293, %v763, 0
    %v822 = vsel %vm293, %v764, 0
    %v825 = vsel %vm330, %v784, 0
    %v828 = vsel %vm330, %v785, 0
    %830 = vmatpush.bf16.msra.mxu0 0
    %831 = vmatpush.bf16.msra.mxu0 0
    %832 = vmatpush.bf16.msra.mxu0 0
    %833 = vmatpush.bf16.msra.mxu0 0
    %834 = vmatpush.bf16.msra.mxu0 0
    %835 = vmatpush.bf16.msra.mxu0 0
    %836 = vmatpush.bf16.msra.mxu0 %v825
    %837 = vmatpush.bf16.msra.mxu0 %v782
    %838 = vmatmul.bf16.gmra.mxu0 %v789
    %v839 = vpop.f32.mrf.mxu0
    %v840 = vadd.f32 0.0, %v839
    %v841 = vpop.f32.mrf.mxu0
    %v842 = vadd.f32 0.0, %v841
    %843 = vmatmul.bf16.gmra.mxu0 %v792
    %v844 = vpop.f32.mrf.mxu0
    %v845 = vadd.f32 0.0, %v844
    %v846 = vpop.f32.mrf.mxu0
    %v847 = vadd.f32 0.0, %v846
    %848 = vmatmul.bf16.gmra.mxu0 %v795
    %v849 = vpop.f32.mrf.mxu0
    %v850 = vadd.f32 0.0, %v849
    %v851 = vpop.f32.mrf.mxu0
    %v852 = vadd.f32 0.0, %v851
    %853 = vmatmul.bf16.gmra.mxu0 %v798
    %v854 = vpop.f32.mrf.mxu0
    %v855 = vadd.f32 0.0, %v854
    %v856 = vpop.f32.mrf.mxu0
    %v857 = vadd.f32 0.0, %v856
    %858 = vmatmul.bf16.gmra.mxu0 %v801
    %v859 = vpop.f32.mrf.mxu0
    %v860 = vadd.f32 0.0, %v859
    %v861 = vpop.f32.mrf.mxu0
    %v862 = vadd.f32 0.0, %v861
    %863 = vmatmul.bf16.gmra.mxu0 %v804
    %v864 = vpop.f32.mrf.mxu0
    %v865 = vadd.f32 0.0, %v864
    %v866 = vpop.f32.mrf.mxu0
    %v867 = vadd.f32 0.0, %v866
    %868 = vmatmul.bf16.gmra.mxu0 %v807
    %v869 = vpop.f32.mrf.mxu0
    %v870 = vadd.f32 0.0, %v869
    %v871 = vpop.f32.mrf.mxu0
    %v872 = vadd.f32 0.0, %v871
    %873 = vmatmul.bf16.gmra.mxu0 %v810
    %v874 = vpop.f32.mrf.mxu0
    %v875 = vadd.f32 0.0, %v874
    %v876 = vpop.f32.mrf.mxu0
    %v877 = vadd.f32 0.0, %v876
    %878 = vmatmul.bf16.gmra.mxu0 %v813
    %v879 = vpop.f32.mrf.mxu0
    %v880 = vadd.f32 0.0, %v879
    %v881 = vpop.f32.mrf.mxu0
    %v882 = vadd.f32 0.0, %v881
    %883 = vmatmul.bf16.gmra.mxu0 %v816
    %v884 = vpop.f32.mrf.mxu0
    %v885 = vadd.f32 0.0, %v884
    %v886 = vpop.f32.mrf.mxu0
    %v887 = vadd.f32 0.0, %v886
    %888 = vmatmul.bf16.gmra.mxu0 %v819
    %v889 = vpop.f32.mrf.mxu0
    %v890 = vadd.f32 0.0, %v889
    %v891 = vpop.f32.mrf.mxu0
    %v892 = vadd.f32 0.0, %v891
    %893 = vmatmul.bf16.gmra.mxu0 %v822
    %v894 = vpop.f32.mrf.mxu0
    %v895 = vadd.f32 0.0, %v894
    %v896 = vpop.f32.mrf.mxu0
    %v897 = vadd.f32 0.0, %v896
    %898 = vdwg.mxu0
    %899 = vmatpush.bf16.msra.mxu0 0
    %900 = vmatpush.bf16.msra.mxu0 0
    %901 = vmatpush.bf16.msra.mxu0 0
    %902 = vmatpush.bf16.msra.mxu0 0
    %903 = vmatpush.bf16.msra.mxu0 0
    %904 = vmatpush.bf16.msra.mxu0 0
    %905 = vmatpush.bf16.msra.mxu0 %v828
    %906 = vmatpush.bf16.msra.mxu0 %v783
    %907 = vmatmul.bf16.gmra.mxu0 %v789
    %v908 = vpop.f32.mrf.mxu0
    %v909 = vadd.f32 0.0, %v908
    %v910 = vpop.f32.mrf.mxu0
    %v911 = vadd.f32 0.0, %v910
    %912 = vmatmul.bf16.gmra.mxu0 %v792
    %v913 = vpop.f32.mrf.mxu0
    %v914 = vadd.f32 0.0, %v913
    %v915 = vpop.f32.mrf.mxu0
    %v916 = vadd.f32 0.0, %v915
    %917 = vmatmul.bf16.gmra.mxu0 %v795
    %v918 = vpop.f32.mrf.mxu0
    %v919 = vadd.f32 0.0, %v918
    %v920 = vpop.f32.mrf.mxu0
    %v921 = vadd.f32 0.0, %v920
    %922 = vmatmul.bf16.gmra.mxu0 %v798
    %v923 = vpop.f32.mrf.mxu0
    %v924 = vadd.f32 0.0, %v923
    %v925 = vpop.f32.mrf.mxu0
    %v926 = vadd.f32 0.0, %v925
    %927 = vmatmul.bf16.gmra.mxu0 %v801
    %v928 = vpop.f32.mrf.mxu0
    %v929 = vadd.f32 0.0, %v928
    %v930 = vpop.f32.mrf.mxu0
    %v931 = vadd.f32 0.0, %v930
    %932 = vmatmul.bf16.gmra.mxu0 %v804
    %v933 = vpop.f32.mrf.mxu0
    %v934 = vadd.f32 0.0, %v933
    %v935 = vpop.f32.mrf.mxu0
    %v936 = vadd.f32 0.0, %v935
    %937 = vmatmul.bf16.gmra.mxu0 %v807
    %v938 = vpop.f32.mrf.mxu0
    %v939 = vadd.f32 0.0, %v938
    %v940 = vpop.f32.mrf.mxu0
    %v941 = vadd.f32 0.0, %v940
    %942 = vmatmul.bf16.gmra.mxu0 %v810
    %v943 = vpop.f32.mrf.mxu0
    %v944 = vadd.f32 0.0, %v943
    %v945 = vpop.f32.mrf.mxu0
    %v946 = vadd.f32 0.0, %v945
    %947 = vmatmul.bf16.gmra.mxu0 %v813
    %v948 = vpop.f32.mrf.mxu0
    %v949 = vadd.f32 0.0, %v948
    %v950 = vpop.f32.mrf.mxu0
    %v951 = vadd.f32 0.0, %v950
    %952 = vmatmul.bf16.gmra.mxu0 %v816
    %v953 = vpop.f32.mrf.mxu0
    %v954 = vadd.f32 0.0, %v953
    %v955 = vpop.f32.mrf.mxu0
    %v956 = vadd.f32 0.0, %v955
    %957 = vmatmul.bf16.gmra.mxu0 %v819
    %v958 = vpop.f32.mrf.mxu0
    %v959 = vadd.f32 0.0, %v958
    %v960 = vpop.f32.mrf.mxu0
    %v961 = vadd.f32 0.0, %v960
    %962 = vmatmul.bf16.gmra.mxu0 %v822
    %v963 = vpop.f32.mrf.mxu0
    %v964 = vadd.f32 0.0, %v963
    %v965 = vpop.f32.mrf.mxu0
    %v966 = vadd.f32 0.0, %v965
    %967 = vdwg.mxu0
    %v968 = vadd.f32 %v545, %v840
    %v969 = vadd.f32 %v614, %v909
    %v970 = vadd.f32 %v547, %v842
    %v971 = vadd.f32 %v616, %v911
    %v972 = vadd.f32 %v550, %v845
    %v973 = vadd.f32 %v619, %v914
    %v974 = vadd.f32 %v552, %v847
    %v975 = vadd.f32 %v621, %v916
    %v976 = vadd.f32 %v555, %v850
    %v977 = vadd.f32 %v624, %v919
    %v978 = vadd.f32 %v557, %v852
    %v979 = vadd.f32 %v626, %v921
    %v980 = vadd.f32 %v560, %v855
    %v981 = vadd.f32 %v629, %v924
    %v982 = vadd.f32 %v562, %v857
    %v983 = vadd.f32 %v631, %v926
    %v984 = vadd.f32 %v565, %v860
    %v985 = vadd.f32 %v634, %v929
    %v986 = vadd.f32 %v567, %v862
    %v987 = vadd.f32 %v636, %v931
    %v988 = vadd.f32 %v570, %v865
    %v989 = vadd.f32 %v639, %v934
    %v990 = vadd.f32 %v572, %v867
    %v991 = vadd.f32 %v641, %v936
    %v992 = vadd.f32 %v575, %v870
    %v993 = vadd.f32 %v644, %v939
    %v994 = vadd.f32 %v577, %v872
    %v995 = vadd.f32 %v646, %v941
    %v996 = vadd.f32 %v580, %v875
    %v997 = vadd.f32 %v649, %v944
    %v998 = vadd.f32 %v582, %v877
    %v999 = vadd.f32 %v651, %v946
    %v1000 = vadd.f32 %v585, %v880
    %v1001 = vadd.f32 %v654, %v949
    %v1002 = vadd.f32 %v587, %v882
    %v1003 = vadd.f32 %v656, %v951
    %v1004 = vadd.f32 %v590, %v885
    %v1005 = vadd.f32 %v659, %v954
    %v1006 = vadd.f32 %v592, %v887
    %v1007 = vadd.f32 %v661, %v956
    %v1008 = vadd.f32 %v595, %v890
    %v1009 = vadd.f32 %v664, %v959
    %v1010 = vadd.f32 %v597, %v892
    %v1011 = vadd.f32 %v666, %v961
    %v1012 = vadd.f32 %v600, %v895
    %v1013 = vadd.f32 %v669, %v964
    %v1014 = vadd.f32 %v602, %v897
    %v1015 = vadd.f32 %v671, %v966
    %vm1016 = vcmask 1044480
    %v1017 = vrot.slane %v97, 3
    %v1018 = vrot.slane %v98, 3
    %v1019 = vsel %vm1016, %v1017, %v1018
    %v1020 = vrot.slane %v99, 3
    %v1021 = vsel %vm1016, %v1018, %v1020
    %v1022 = vrot.slane %v100, 3
    %v1023 = vsel %vm1016, %v1020, %v1022
    %v1024 = vrot.slane %v101, 3
    %v1025 = vrot.slane %v102, 3
    %v1026 = vsel %vm1016, %v1024, %v1025
    %v1027 = vrot.slane %v103, 3
    %v1028 = vsel %vm1016, %v1025, %v1027
    %v1029 = vrot.slane %v104, 3
    %v1030 = vsel %vm1016, %v1027, %v1029
    %v1031 = vrot.slane %v105, 3
    %v1032 = vrot.slane %v106, 3
    %v1033 = vsel %vm1016, %v1031, %v1032
    %v1034 = vrot.slane %v107, 3
    %v1035 = vsel %vm1016, %v1032, %v1034
    %v1036 = vrot.slane %v108, 3
    %v1037 = vsel %vm1016, %v1034, %v1036
    %v1038 = vrot.slane %v109, 3
    %v1039 = vrot.slane %v110, 3
    %v1040 = vsel %vm1016, %v1038, %v1039
    %v1041 = vrot.slane %v111, 3
    %v1042 = vsel %vm1016, %v1039, %v1041
    %v1043 = vrot.slane %v112, 3
    %v1044 = vsel %vm1016, %v1041, %v1043
    %v1045 = vrot.slane %v113, 3
    %v1046 = vrot.slane %v114, 3
    %v1047 = vsel %vm1016, %v1045, %v1046
    %v1048 = vrot.slane %v115, 3
    %v1049 = vsel %vm1016, %v1046, %v1048
    %v1050 = vrot.slane %v116, 3
    %v1051 = vsel %vm1016, %v1048, %v1050
    %v1052 = vrot.slane %v117, 3
    %v1053 = vrot.slane %v118, 3
    %v1054 = vsel %vm1016, %v1052, %v1053
    %v1055 = vrot.slane %v119, 3
    %v1056 = vsel %vm1016, %v1053, %v1055
    %v1057 = vrot.slane %v120, 3
    %v1058 = vsel %vm1016, %v1055, %v1057
    %v1059 = vrot.slane %v121, 3
    %v1060 = vrot.slane %v122, 3
    %v1061 = vsel %vm1016, %v1059, %v1060
    %v1062 = vrot.slane %v123, 3
    %v1063 = vsel %vm1016, %v1060, %v1062
    %v1064 = vrot.slane %v124, 3
    %v1065 = vsel %vm1016, %v1062, %v1064
    %v1066 = vrot.slane %v125, 3
    %v1067 = vrot.slane %v126, 3
    %v1068 = vsel %vm1016, %v1066, %v1067
    %v1069 = vrot.slane %v127, 3
    %v1070 = vsel %vm1016, %v1067, %v1069
    %v1071 = vrot.slane %v128, 3
    %v1072 = vsel %vm1016, %v1069, %v1071
    %v1097 = vpack.c.bf16 %v1021, %v1019
    %v1098 = vpack.c.bf16 %v1026, %v1023
    %v1099 = vpack.c.bf16 %v1030, %v1028
    %v1100 = vpack.c.bf16 %v1035, %v1033
    %v1101 = vpack.c.bf16 %v1040, %v1037
    %v1102 = vpack.c.bf16 %v1044, %v1042
    %v1103 = vpack.c.bf16 %v1049, %v1047
    %v1104 = vpack.c.bf16 %v1054, %v1051
    %v1105 = vpack.c.bf16 %v1058, %v1056
    %v1106 = vpack.c.bf16 %v1063, %v1061
    %v1107 = vpack.c.bf16 %v1068, %v1065
    %v1108 = vpack.c.bf16 %v1072, %v1070
    %s1109 = scalar_lea.vmem %s1, 96
    %v1110 = vld [vmem:[%s1109] sm:$0xff]
    %v1111 = vld [vmem:[%s1109 + $0x8] sm:$0xff]
    %v1112 = vld [vmem:[%s1109 + $0x10] sm:$0xff]
    %v1113 = vld [vmem:[%s1109 + $0x18] sm:$0x33]
    %v1118 = vunpack.c.l.b16 %v1110
    %v1119 = vunpack.c.h.b16 %v1110
    %v1120 = vunpack.c.l.b16 %v1111
    %v1121 = vunpack.c.h.b16 %v1111
    %v1122 = vunpack.c.l.b16 %v1112
    %v1123 = vunpack.c.h.b16 %v1112
    %v1124 = vunpack.c.l.b16 %v1113
    %v1125 = vunpack.c.h.b16 %v1113
    %v1126 = vpack.c.b16 %v1120, %v1118
    %v1127 = vpack.c.b16 %v1121, %v1119
    %v1128 = vpack.c.b16 %v1124, %v1122
    %v1129 = vpack.c.b16 %v1125, %v1123
    %v1133 = vsel %vm293, %v1097, 0
    %v1136 = vsel %vm293, %v1098, 0
    %v1139 = vsel %vm293, %v1099, 0
    %v1142 = vsel %vm293, %v1100, 0
    %v1145 = vsel %vm293, %v1101, 0
    %v1148 = vsel %vm293, %v1102, 0
    %v1151 = vsel %vm293, %v1103, 0
    %v1154 = vsel %vm293, %v1104, 0
    %v1157 = vsel %vm293, %v1105, 0
    %v1160 = vsel %vm293, %v1106, 0
    %v1163 = vsel %vm293, %v1107, 0
    %v1166 = vsel %vm293, %v1108, 0
    %v1169 = vsel %vm330, %v1128, 0
    %v1172 = vsel %vm330, %v1129, 0
    %1174 = vmatpush.bf16.msra.mxu0 0
    %1175 = vmatpush.bf16.msra.mxu0 0
    %1176 = vmatpush.bf16.msra.mxu0 0
    %1177 = vmatpush.bf16.msra.mxu0 0
    %1178 = vmatpush.bf16.msra.mxu0 0
    %1179 = vmatpush.bf16.msra.mxu0 0
    %1180 = vmatpush.bf16.msra.mxu0 %v1169
    %1181 = vmatpush.bf16.msra.mxu0 %v1126
    %1182 = vmatmul.bf16.gmra.mxu0 %v1133
    %v1183 = vpop.f32.mrf.mxu0
    %v1184 = vadd.f32 0.0, %v1183
    %v1185 = vpop.f32.mrf.mxu0
    %v1186 = vadd.f32 0.0, %v1185
    %1187 = vmatmul.bf16.gmra.mxu0 %v1136
    %v1188 = vpop.f32.mrf.mxu0
    %v1189 = vadd.f32 0.0, %v1188
    %v1190 = vpop.f32.mrf.mxu0
    %v1191 = vadd.f32 0.0, %v1190
    %1192 = vmatmul.bf16.gmra.mxu0 %v1139
    %v1193 = vpop.f32.mrf.mxu0
    %v1194 = vadd.f32 0.0, %v1193
    %v1195 = vpop.f32.mrf.mxu0
    %v1196 = vadd.f32 0.0, %v1195
    %1197 = vmatmul.bf16.gmra.mxu0 %v1142
    %v1198 = vpop.f32.mrf.mxu0
    %v1199 = vadd.f32 0.0, %v1198
    %v1200 = vpop.f32.mrf.mxu0
    %v1201 = vadd.f32 0.0, %v1200
    %1202 = vmatmul.bf16.gmra.mxu0 %v1145
    %v1203 = vpop.f32.mrf.mxu0
    %v1204 = vadd.f32 0.0, %v1203
    %v1205 = vpop.f32.mrf.mxu0
    %v1206 = vadd.f32 0.0, %v1205
    %1207 = vmatmul.bf16.gmra.mxu0 %v1148
    %v1208 = vpop.f32.mrf.mxu0
    %v1209 = vadd.f32 0.0, %v1208
    %v1210 = vpop.f32.mrf.mxu0
    %v1211 = vadd.f32 0.0, %v1210
    %1212 = vmatmul.bf16.gmra.mxu0 %v1151
    %v1213 = vpop.f32.mrf.mxu0
    %v1214 = vadd.f32 0.0, %v1213
    %v1215 = vpop.f32.mrf.mxu0
    %v1216 = vadd.f32 0.0, %v1215
    %1217 = vmatmul.bf16.gmra.mxu0 %v1154
    %v1218 = vpop.f32.mrf.mxu0
    %v1219 = vadd.f32 0.0, %v1218
    %v1220 = vpop.f32.mrf.mxu0
    %v1221 = vadd.f32 0.0, %v1220
    %1222 = vmatmul.bf16.gmra.mxu0 %v1157
    %v1223 = vpop.f32.mrf.mxu0
    %v1224 = vadd.f32 0.0, %v1223
    %v1225 = vpop.f32.mrf.mxu0
    %v1226 = vadd.f32 0.0, %v1225
    %1227 = vmatmul.bf16.gmra.mxu0 %v1160
    %v1228 = vpop.f32.mrf.mxu0
    %v1229 = vadd.f32 0.0, %v1228
    %v1230 = vpop.f32.mrf.mxu0
    %v1231 = vadd.f32 0.0, %v1230
    %1232 = vmatmul.bf16.gmra.mxu0 %v1163
    %v1233 = vpop.f32.mrf.mxu0
    %v1234 = vadd.f32 0.0, %v1233
    %v1235 = vpop.f32.mrf.mxu0
    %v1236 = vadd.f32 0.0, %v1235
    %1237 = vmatmul.bf16.gmra.mxu0 %v1166
    %v1238 = vpop.f32.mrf.mxu0
    %v1239 = vadd.f32 0.0, %v1238
    %v1240 = vpop.f32.mrf.mxu0
    %v1241 = vadd.f32 0.0, %v1240
    %1242 = vdwg.mxu0
    %1243 = vmatpush.bf16.msra.mxu0 0
    %1244 = vmatpush.bf16.msra.mxu0 0
    %1245 = vmatpush.bf16.msra.mxu0 0
    %1246 = vmatpush.bf16.msra.mxu0 0
    %1247 = vmatpush.bf16.msra.mxu0 0
    %1248 = vmatpush.bf16.msra.mxu0 0
    %1249 = vmatpush.bf16.msra.mxu0 %v1172
    %1250 = vmatpush.bf16.msra.mxu0 %v1127
    %1251 = vmatmul.bf16.gmra.mxu0 %v1133
    %v1252 = vpop.f32.mrf.mxu0
    %v1253 = vadd.f32 0.0, %v1252
    %v1254 = vpop.f32.mrf.mxu0
    %v1255 = vadd.f32 0.0, %v1254
    %1256 = vmatmul.bf16.gmra.mxu0 %v1136
    %v1257 = vpop.f32.mrf.mxu0
    %v1258 = vadd.f32 0.0, %v1257
    %v1259 = vpop.f32.mrf.mxu0
    %v1260 = vadd.f32 0.0, %v1259
    %1261 = vmatmul.bf16.gmra.mxu0 %v1139
    %v1262 = vpop.f32.mrf.mxu0
    %v1263 = vadd.f32 0.0, %v1262
    %v1264 = vpop.f32.mrf.mxu0
    %v1265 = vadd.f32 0.0, %v1264
    %1266 = vmatmul.bf16.gmra.mxu0 %v1142
    %v1267 = vpop.f32.mrf.mxu0
    %v1268 = vadd.f32 0.0, %v1267
    %v1269 = vpop.f32.mrf.mxu0
    %v1270 = vadd.f32 0.0, %v1269
    %1271 = vmatmul.bf16.gmra.mxu0 %v1145
    %v1272 = vpop.f32.mrf.mxu0
    %v1273 = vadd.f32 0.0, %v1272
    %v1274 = vpop.f32.mrf.mxu0
    %v1275 = vadd.f32 0.0, %v1274
    %1276 = vmatmul.bf16.gmra.mxu0 %v1148
    %v1277 = vpop.f32.mrf.mxu0
    %v1278 = vadd.f32 0.0, %v1277
    %v1279 = vpop.f32.mrf.mxu0
    %v1280 = vadd.f32 0.0, %v1279
    %1281 = vmatmul.bf16.gmra.mxu0 %v1151
    %v1282 = vpop.f32.mrf.mxu0
    %v1283 = vadd.f32 0.0, %v1282
    %v1284 = vpop.f32.mrf.mxu0
    %v1285 = vadd.f32 0.0, %v1284
    %1286 = vmatmul.bf16.gmra.mxu0 %v1154
    %v1287 = vpop.f32.mrf.mxu0
    %v1288 = vadd.f32 0.0, %v1287
    %v1289 = vpop.f32.mrf.mxu0
    %v1290 = vadd.f32 0.0, %v1289
    %1291 = vmatmul.bf16.gmra.mxu0 %v1157
    %v1292 = vpop.f32.mrf.mxu0
    %v1293 = vadd.f32 0.0, %v1292
    %v1294 = vpop.f32.mrf.mxu0
    %v1295 = vadd.f32 0.0, %v1294
    %1296 = vmatmul.bf16.gmra.mxu0 %v1160
    %v1297 = vpop.f32.mrf.mxu0
    %v1298 = vadd.f32 0.0, %v1297
    %v1299 = vpop.f32.mrf.mxu0
    %v1300 = vadd.f32 0.0, %v1299
    %1301 = vmatmul.bf16.gmra.mxu0 %v1163
    %v1302 = vpop.f32.mrf.mxu0
    %v1303 = vadd.f32 0.0, %v1302
    %v1304 = vpop.f32.mrf.mxu0
    %v1305 = vadd.f32 0.0, %v1304
    %1306 = vmatmul.bf16.gmra.mxu0 %v1166
    %v1307 = vpop.f32.mrf.mxu0
    %v1308 = vadd.f32 0.0, %v1307
    %v1309 = vpop.f32.mrf.mxu0
    %v1310 = vadd.f32 0.0, %v1309
    %1311 = vdwg.mxu0
    %v1312 = vadd.f32 %v968, %v1184
    %v1313 = vadd.f32 %v969, %v1253
    %v1314 = vadd.f32 %v970, %v1186
    %v1315 = vadd.f32 %v971, %v1255
    %v1316 = vadd.f32 %v972, %v1189
    %v1317 = vadd.f32 %v973, %v1258
    %v1318 = vadd.f32 %v974, %v1191
    %v1319 = vadd.f32 %v975, %v1260
    %v1320 = vadd.f32 %v976, %v1194
    %v1321 = vadd.f32 %v977, %v1263
    %v1322 = vadd.f32 %v978, %v1196
    %v1323 = vadd.f32 %v979, %v1265
    %v1324 = vadd.f32 %v980, %v1199
    %v1325 = vadd.f32 %v981, %v1268
    %v1326 = vadd.f32 %v982, %v1201
    %v1327 = vadd.f32 %v983, %v1270
    %v1328 = vadd.f32 %v984, %v1204
    %v1329 = vadd.f32 %v985, %v1273
    %v1330 = vadd.f32 %v986, %v1206
    %v1331 = vadd.f32 %v987, %v1275
    %v1332 = vadd.f32 %v988, %v1209
    %v1333 = vadd.f32 %v989, %v1278
    %v1334 = vadd.f32 %v990, %v1211
    %v1335 = vadd.f32 %v991, %v1280
    %v1336 = vadd.f32 %v992, %v1214
    %v1337 = vadd.f32 %v993, %v1283
    %v1338 = vadd.f32 %v994, %v1216
    %v1339 = vadd.f32 %v995, %v1285
    %v1340 = vadd.f32 %v996, %v1219
    %v1341 = vadd.f32 %v997, %v1288
    %v1342 = vadd.f32 %v998, %v1221
    %v1343 = vadd.f32 %v999, %v1290
    %v1344 = vadd.f32 %v1000, %v1224
    %v1345 = vadd.f32 %v1001, %v1293
    %v1346 = vadd.f32 %v1002, %v1226
    %v1347 = vadd.f32 %v1003, %v1295
    %v1348 = vadd.f32 %v1004, %v1229
    %v1349 = vadd.f32 %v1005, %v1298
    %v1350 = vadd.f32 %v1006, %v1231
    %v1351 = vadd.f32 %v1007, %v1300
    %v1352 = vadd.f32 %v1008, %v1234
    %v1353 = vadd.f32 %v1009, %v1303
    %v1354 = vadd.f32 %v1010, %v1236
    %v1355 = vadd.f32 %v1011, %v1305
    %v1356 = vadd.f32 %v1012, %v1239
    %v1357 = vadd.f32 %v1013, %v1308
    %v1358 = vadd.f32 %v1014, %v1241
    %v1359 = vadd.f32 %v1015, %v1310
    %vm1360 = vcmask 1043456
    %v1361 = vrot.slane %v97, 4
    %v1362 = vrot.slane %v98, 4
    %v1363 = vsel %vm1360, %v1361, %v1362
    %v1364 = vrot.slane %v99, 4
    %v1365 = vsel %vm1360, %v1362, %v1364
    %v1366 = vrot.slane %v100, 4
    %v1367 = vsel %vm1360, %v1364, %v1366
    %v1368 = vrot.slane %v101, 4
    %v1369 = vrot.slane %v102, 4
    %v1370 = vsel %vm1360, %v1368, %v1369
    %v1371 = vrot.slane %v103, 4
    %v1372 = vsel %vm1360, %v1369, %v1371
    %v1373 = vrot.slane %v104, 4
    %v1374 = vsel %vm1360, %v1371, %v1373
    %v1375 = vrot.slane %v105, 4
    %v1376 = vrot.slane %v106, 4
    %v1377 = vsel %vm1360, %v1375, %v1376
    %v1378 = vrot.slane %v107, 4
    %v1379 = vsel %vm1360, %v1376, %v1378
    %v1380 = vrot.slane %v108, 4
    %v1381 = vsel %vm1360, %v1378, %v1380
    %v1382 = vrot.slane %v109, 4
    %v1383 = vrot.slane %v110, 4
    %v1384 = vsel %vm1360, %v1382, %v1383
    %v1385 = vrot.slane %v111, 4
    %v1386 = vsel %vm1360, %v1383, %v1385
    %v1387 = vrot.slane %v112, 4
    %v1388 = vsel %vm1360, %v1385, %v1387
    %v1389 = vrot.slane %v113, 4
    %v1390 = vrot.slane %v114, 4
    %v1391 = vsel %vm1360, %v1389, %v1390
    %v1392 = vrot.slane %v115, 4
    %v1393 = vsel %vm1360, %v1390, %v1392
    %v1394 = vrot.slane %v116, 4
    %v1395 = vsel %vm1360, %v1392, %v1394
    %v1396 = vrot.slane %v117, 4
    %v1397 = vrot.slane %v118, 4
    %v1398 = vsel %vm1360, %v1396, %v1397
    %v1399 = vrot.slane %v119, 4
    %v1400 = vsel %vm1360, %v1397, %v1399
    %v1401 = vrot.slane %v120, 4
    %v1402 = vsel %vm1360, %v1399, %v1401
    %v1403 = vrot.slane %v121, 4
    %v1404 = vrot.slane %v122, 4
    %v1405 = vsel %vm1360, %v1403, %v1404
    %v1406 = vrot.slane %v123, 4
    %v1407 = vsel %vm1360, %v1404, %v1406
    %v1408 = vrot.slane %v124, 4
    %v1409 = vsel %vm1360, %v1406, %v1408
    %v1410 = vrot.slane %v125, 4
    %v1411 = vrot.slane %v126, 4
    %v1412 = vsel %vm1360, %v1410, %v1411
    %v1413 = vrot.slane %v127, 4
    %v1414 = vsel %vm1360, %v1411, %v1413
    %v1415 = vrot.slane %v128, 4
    %v1416 = vsel %vm1360, %v1413, %v1415
    %v1441 = vpack.c.bf16 %v1365, %v1363
    %v1442 = vpack.c.bf16 %v1370, %v1367
    %v1443 = vpack.c.bf16 %v1374, %v1372
    %v1444 = vpack.c.bf16 %v1379, %v1377
    %v1445 = vpack.c.bf16 %v1384, %v1381
    %v1446 = vpack.c.bf16 %v1388, %v1386
    %v1447 = vpack.c.bf16 %v1393, %v1391
    %v1448 = vpack.c.bf16 %v1398, %v1395
    %v1449 = vpack.c.bf16 %v1402, %v1400
    %v1450 = vpack.c.bf16 %v1407, %v1405
    %v1451 = vpack.c.bf16 %v1412, %v1409
    %v1452 = vpack.c.bf16 %v1416, %v1414
    %s1453 = scalar_lea.vmem %s1, 128
    %v1454 = vld [vmem:[%s1453] sm:$0xff]
    %v1455 = vld [vmem:[%s1453 + $0x8] sm:$0xff]
    %v1456 = vld [vmem:[%s1453 + $0x10] sm:$0xff]
    %v1457 = vld [vmem:[%s1453 + $0x18] sm:$0x33]
    %v1462 = vunpack.c.l.b16 %v1454
    %v1463 = vunpack.c.h.b16 %v1454
    %v1464 = vunpack.c.l.b16 %v1455
    %v1465 = vunpack.c.h.b16 %v1455
    %v1466 = vunpack.c.l.b16 %v1456
    %v1467 = vunpack.c.h.b16 %v1456
    %v1468 = vunpack.c.l.b16 %v1457
    %v1469 = vunpack.c.h.b16 %v1457
    %v1470 = vpack.c.b16 %v1464, %v1462
    %v1471 = vpack.c.b16 %v1465, %v1463
    %v1472 = vpack.c.b16 %v1468, %v1466
    %v1473 = vpack.c.b16 %v1469, %v1467
    %v1477 = vsel %vm293, %v1441, 0
    %v1480 = vsel %vm293, %v1442, 0
    %v1483 = vsel %vm293, %v1443, 0
    %v1486 = vsel %vm293, %v1444, 0
    %v1489 = vsel %vm293, %v1445, 0
    %v1492 = vsel %vm293, %v1446, 0
    %v1495 = vsel %vm293, %v1447, 0
    %v1498 = vsel %vm293, %v1448, 0
    %v1501 = vsel %vm293, %v1449, 0
    %v1504 = vsel %vm293, %v1450, 0
    %v1507 = vsel %vm293, %v1451, 0
    %v1510 = vsel %vm293, %v1452, 0
    %v1513 = vsel %vm330, %v1472, 0
    %v1516 = vsel %vm330, %v1473, 0
    %1518 = vmatpush.bf16.msra.mxu0 0
    %1519 = vmatpush.bf16.msra.mxu0 0
    %1520 = vmatpush.bf16.msra.mxu0 0
    %1521 = vmatpush.bf16.msra.mxu0 0
    %1522 = vmatpush.bf16.msra.mxu0 0
    %1523 = vmatpush.bf16.msra.mxu0 0
    %1524 = vmatpush.bf16.msra.mxu0 %v1513
    %1525 = vmatpush.bf16.msra.mxu0 %v1470
    %1526 = vmatmul.bf16.gmra.mxu0 %v1477
    %v1527 = vpop.f32.mrf.mxu0
    %v1528 = vadd.f32 0.0, %v1527
    %v1529 = vpop.f32.mrf.mxu0
    %v1530 = vadd.f32 0.0, %v1529
    %1531 = vmatmul.bf16.gmra.mxu0 %v1480
    %v1532 = vpop.f32.mrf.mxu0
    %v1533 = vadd.f32 0.0, %v1532
    %v1534 = vpop.f32.mrf.mxu0
    %v1535 = vadd.f32 0.0, %v1534
    %1536 = vmatmul.bf16.gmra.mxu0 %v1483
    %v1537 = vpop.f32.mrf.mxu0
    %v1538 = vadd.f32 0.0, %v1537
    %v1539 = vpop.f32.mrf.mxu0
    %v1540 = vadd.f32 0.0, %v1539
    %1541 = vmatmul.bf16.gmra.mxu0 %v1486
    %v1542 = vpop.f32.mrf.mxu0
    %v1543 = vadd.f32 0.0, %v1542
    %v1544 = vpop.f32.mrf.mxu0
    %v1545 = vadd.f32 0.0, %v1544
    %1546 = vmatmul.bf16.gmra.mxu0 %v1489
    %v1547 = vpop.f32.mrf.mxu0
    %v1548 = vadd.f32 0.0, %v1547
    %v1549 = vpop.f32.mrf.mxu0
    %v1550 = vadd.f32 0.0, %v1549
    %1551 = vmatmul.bf16.gmra.mxu0 %v1492
    %v1552 = vpop.f32.mrf.mxu0
    %v1553 = vadd.f32 0.0, %v1552
    %v1554 = vpop.f32.mrf.mxu0
    %v1555 = vadd.f32 0.0, %v1554
    %1556 = vmatmul.bf16.gmra.mxu0 %v1495
    %v1557 = vpop.f32.mrf.mxu0
    %v1558 = vadd.f32 0.0, %v1557
    %v1559 = vpop.f32.mrf.mxu0
    %v1560 = vadd.f32 0.0, %v1559
    %1561 = vmatmul.bf16.gmra.mxu0 %v1498
    %v1562 = vpop.f32.mrf.mxu0
    %v1563 = vadd.f32 0.0, %v1562
    %v1564 = vpop.f32.mrf.mxu0
    %v1565 = vadd.f32 0.0, %v1564
    %1566 = vmatmul.bf16.gmra.mxu0 %v1501
    %v1567 = vpop.f32.mrf.mxu0
    %v1568 = vadd.f32 0.0, %v1567
    %v1569 = vpop.f32.mrf.mxu0
    %v1570 = vadd.f32 0.0, %v1569
    %1571 = vmatmul.bf16.gmra.mxu0 %v1504
    %v1572 = vpop.f32.mrf.mxu0
    %v1573 = vadd.f32 0.0, %v1572
    %v1574 = vpop.f32.mrf.mxu0
    %v1575 = vadd.f32 0.0, %v1574
    %1576 = vmatmul.bf16.gmra.mxu0 %v1507
    %v1577 = vpop.f32.mrf.mxu0
    %v1578 = vadd.f32 0.0, %v1577
    %v1579 = vpop.f32.mrf.mxu0
    %v1580 = vadd.f32 0.0, %v1579
    %1581 = vmatmul.bf16.gmra.mxu0 %v1510
    %v1582 = vpop.f32.mrf.mxu0
    %v1583 = vadd.f32 0.0, %v1582
    %v1584 = vpop.f32.mrf.mxu0
    %v1585 = vadd.f32 0.0, %v1584
    %1586 = vdwg.mxu0
    %1587 = vmatpush.bf16.msra.mxu0 0
    %1588 = vmatpush.bf16.msra.mxu0 0
    %1589 = vmatpush.bf16.msra.mxu0 0
    %1590 = vmatpush.bf16.msra.mxu0 0
    %1591 = vmatpush.bf16.msra.mxu0 0
    %1592 = vmatpush.bf16.msra.mxu0 0
    %1593 = vmatpush.bf16.msra.mxu0 %v1516
    %1594 = vmatpush.bf16.msra.mxu0 %v1471
    %1595 = vmatmul.bf16.gmra.mxu0 %v1477
    %v1596 = vpop.f32.mrf.mxu0
    %v1597 = vadd.f32 0.0, %v1596
    %v1598 = vpop.f32.mrf.mxu0
    %v1599 = vadd.f32 0.0, %v1598
    %1600 = vmatmul.bf16.gmra.mxu0 %v1480
    %v1601 = vpop.f32.mrf.mxu0
    %v1602 = vadd.f32 0.0, %v1601
    %v1603 = vpop.f32.mrf.mxu0
    %v1604 = vadd.f32 0.0, %v1603
    %1605 = vmatmul.bf16.gmra.mxu0 %v1483
    %v1606 = vpop.f32.mrf.mxu0
    %v1607 = vadd.f32 0.0, %v1606
    %v1608 = vpop.f32.mrf.mxu0
    %v1609 = vadd.f32 0.0, %v1608
    %1610 = vmatmul.bf16.gmra.mxu0 %v1486
    %v1611 = vpop.f32.mrf.mxu0
    %v1612 = vadd.f32 0.0, %v1611
    %v1613 = vpop.f32.mrf.mxu0
    %v1614 = vadd.f32 0.0, %v1613
    %1615 = vmatmul.bf16.gmra.mxu0 %v1489
    %v1616 = vpop.f32.mrf.mxu0
    %v1617 = vadd.f32 0.0, %v1616
    %v1618 = vpop.f32.mrf.mxu0
    %v1619 = vadd.f32 0.0, %v1618
    %1620 = vmatmul.bf16.gmra.mxu0 %v1492
    %v1621 = vpop.f32.mrf.mxu0
    %v1622 = vadd.f32 0.0, %v1621
    %v1623 = vpop.f32.mrf.mxu0
    %v1624 = vadd.f32 0.0, %v1623
    %1625 = vmatmul.bf16.gmra.mxu0 %v1495
    %v1626 = vpop.f32.mrf.mxu0
    %v1627 = vadd.f32 0.0, %v1626
    %v1628 = vpop.f32.mrf.mxu0
    %v1629 = vadd.f32 0.0, %v1628
    %1630 = vmatmul.bf16.gmra.mxu0 %v1498
    %v1631 = vpop.f32.mrf.mxu0
    %v1632 = vadd.f32 0.0, %v1631
    %v1633 = vpop.f32.mrf.mxu0
    %v1634 = vadd.f32 0.0, %v1633
    %1635 = vmatmul.bf16.gmra.mxu0 %v1501
    %v1636 = vpop.f32.mrf.mxu0
    %v1637 = vadd.f32 0.0, %v1636
    %v1638 = vpop.f32.mrf.mxu0
    %v1639 = vadd.f32 0.0, %v1638
    %1640 = vmatmul.bf16.gmra.mxu0 %v1504
    %v1641 = vpop.f32.mrf.mxu0
    %v1642 = vadd.f32 0.0, %v1641
    %v1643 = vpop.f32.mrf.mxu0
    %v1644 = vadd.f32 0.0, %v1643
    %1645 = vmatmul.bf16.gmra.mxu0 %v1507
    %v1646 = vpop.f32.mrf.mxu0
    %v1647 = vadd.f32 0.0, %v1646
    %v1648 = vpop.f32.mrf.mxu0
    %v1649 = vadd.f32 0.0, %v1648
    %1650 = vmatmul.bf16.gmra.mxu0 %v1510
    %v1651 = vpop.f32.mrf.mxu0
    %v1652 = vadd.f32 0.0, %v1651
    %v1653 = vpop.f32.mrf.mxu0
    %v1654 = vadd.f32 0.0, %v1653
    %1655 = vdwg.mxu0
    %v1656 = vadd.f32 %v1312, %v1528
    %v1657 = vadd.f32 %v1313, %v1597
    %v1658 = vadd.f32 %v1314, %v1530
    %v1659 = vadd.f32 %v1315, %v1599
    %v1660 = vadd.f32 %v1316, %v1533
    %v1661 = vadd.f32 %v1317, %v1602
    %v1662 = vadd.f32 %v1318, %v1535
    %v1663 = vadd.f32 %v1319, %v1604
    %v1664 = vadd.f32 %v1320, %v1538
    %v1665 = vadd.f32 %v1321, %v1607
    %v1666 = vadd.f32 %v1322, %v1540
    %v1667 = vadd.f32 %v1323, %v1609
    %v1668 = vadd.f32 %v1324, %v1543
    %v1669 = vadd.f32 %v1325, %v1612
    %v1670 = vadd.f32 %v1326, %v1545
    %v1671 = vadd.f32 %v1327, %v1614
    %v1672 = vadd.f32 %v1328, %v1548
    %v1673 = vadd.f32 %v1329, %v1617
    %v1674 = vadd.f32 %v1330, %v1550
    %v1675 = vadd.f32 %v1331, %v1619
    %v1676 = vadd.f32 %v1332, %v1553
    %v1677 = vadd.f32 %v1333, %v1622
    %v1678 = vadd.f32 %v1334, %v1555
    %v1679 = vadd.f32 %v1335, %v1624
    %v1680 = vadd.f32 %v1336, %v1558
    %v1681 = vadd.f32 %v1337, %v1627
    %v1682 = vadd.f32 %v1338, %v1560
    %v1683 = vadd.f32 %v1339, %v1629
    %v1684 = vadd.f32 %v1340, %v1563
    %v1685 = vadd.f32 %v1341, %v1632
    %v1686 = vadd.f32 %v1342, %v1565
    %v1687 = vadd.f32 %v1343, %v1634
    %v1688 = vadd.f32 %v1344, %v1568
    %v1689 = vadd.f32 %v1345, %v1637
    %v1690 = vadd.f32 %v1346, %v1570
    %v1691 = vadd.f32 %v1347, %v1639
    %v1692 = vadd.f32 %v1348, %v1573
    %v1693 = vadd.f32 %v1349, %v1642
    %v1694 = vadd.f32 %v1350, %v1575
    %v1695 = vadd.f32 %v1351, %v1644
    %v1696 = vadd.f32 %v1352, %v1578
    %v1697 = vadd.f32 %v1353, %v1647
    %v1698 = vadd.f32 %v1354, %v1580
    %v1699 = vadd.f32 %v1355, %v1649
    %v1700 = vadd.f32 %v1356, %v1583
    %v1701 = vadd.f32 %v1357, %v1652
    %v1702 = vadd.f32 %v1358, %v1585
    %v1703 = vadd.f32 %v1359, %v1654
    %v1704 = vld [vmem:[%s2] sm:$0x3]
    %v1706 = vperm.slane %v1704, 0
    %v1707 = vperm.slane %v1704, 1
    %v1710 = vadd.f32 %v1656, %v1706
    %v1711 = vadd.f32 %v1657, %v1707
    %v1712 = vadd.f32 %v1658, %v1706
    %v1713 = vadd.f32 %v1659, %v1707
    %v1714 = vadd.f32 %v1660, %v1706
    %v1715 = vadd.f32 %v1661, %v1707
    %v1716 = vadd.f32 %v1662, %v1706
    %v1717 = vadd.f32 %v1663, %v1707
    %v1718 = vadd.f32 %v1664, %v1706
    %v1719 = vadd.f32 %v1665, %v1707
    %v1720 = vadd.f32 %v1666, %v1706
    %v1721 = vadd.f32 %v1667, %v1707
    %v1722 = vadd.f32 %v1668, %v1706
    %v1723 = vadd.f32 %v1669, %v1707
    %v1724 = vadd.f32 %v1670, %v1706
    %v1725 = vadd.f32 %v1671, %v1707
    %v1726 = vadd.f32 %v1672, %v1706
    %v1727 = vadd.f32 %v1673, %v1707
    %v1728 = vadd.f32 %v1674, %v1706
    %v1729 = vadd.f32 %v1675, %v1707
    %v1730 = vadd.f32 %v1676, %v1706
    %v1731 = vadd.f32 %v1677, %v1707
    %v1732 = vadd.f32 %v1678, %v1706
    %v1733 = vadd.f32 %v1679, %v1707
    %v1734 = vadd.f32 %v1680, %v1706
    %v1735 = vadd.f32 %v1681, %v1707
    %v1736 = vadd.f32 %v1682, %v1706
    %v1737 = vadd.f32 %v1683, %v1707
    %v1738 = vadd.f32 %v1684, %v1706
    %v1739 = vadd.f32 %v1685, %v1707
    %v1740 = vadd.f32 %v1686, %v1706
    %v1741 = vadd.f32 %v1687, %v1707
    %v1742 = vadd.f32 %v1688, %v1706
    %v1743 = vadd.f32 %v1689, %v1707
    %v1744 = vadd.f32 %v1690, %v1706
    %v1745 = vadd.f32 %v1691, %v1707
    %v1746 = vadd.f32 %v1692, %v1706
    %v1747 = vadd.f32 %v1693, %v1707
    %v1748 = vadd.f32 %v1694, %v1706
    %v1749 = vadd.f32 %v1695, %v1707
    %v1750 = vadd.f32 %v1696, %v1706
    %v1751 = vadd.f32 %v1697, %v1707
    %v1752 = vadd.f32 %v1698, %v1706
    %v1753 = vadd.f32 %v1699, %v1707
    %v1754 = vadd.f32 %v1700, %v1706
    %v1755 = vadd.f32 %v1701, %v1707
    %v1756 = vadd.f32 %v1702, %v1706
    %v1757 = vadd.f32 %v1703, %v1707
    %v1758 = vmax.f32 %v1710, 0.0
    %v1759 = vmax.f32 %v1711, 0.0
    %v1760 = vmax.f32 %v1712, 0.0
    %v1761 = vmax.f32 %v1713, 0.0
    %v1762 = vmax.f32 %v1714, 0.0
    %v1763 = vmax.f32 %v1715, 0.0
    %v1764 = vmax.f32 %v1716, 0.0
    %v1765 = vmax.f32 %v1717, 0.0
    %v1766 = vmax.f32 %v1718, 0.0
    %v1767 = vmax.f32 %v1719, 0.0
    %v1768 = vmax.f32 %v1720, 0.0
    %v1769 = vmax.f32 %v1721, 0.0
    %v1770 = vmax.f32 %v1722, 0.0
    %v1771 = vmax.f32 %v1723, 0.0
    %v1772 = vmax.f32 %v1724, 0.0
    %v1773 = vmax.f32 %v1725, 0.0
    %v1774 = vmax.f32 %v1726, 0.0
    %v1775 = vmax.f32 %v1727, 0.0
    %v1776 = vmax.f32 %v1728, 0.0
    %v1777 = vmax.f32 %v1729, 0.0
    %v1778 = vmax.f32 %v1730, 0.0
    %v1779 = vmax.f32 %v1731, 0.0
    %v1780 = vmax.f32 %v1732, 0.0
    %v1781 = vmax.f32 %v1733, 0.0
    %v1782 = vmax.f32 %v1734, 0.0
    %v1783 = vmax.f32 %v1735, 0.0
    %v1784 = vmax.f32 %v1736, 0.0
    %v1785 = vmax.f32 %v1737, 0.0
    %v1786 = vmax.f32 %v1738, 0.0
    %v1787 = vmax.f32 %v1739, 0.0
    %v1788 = vmax.f32 %v1740, 0.0
    %v1789 = vmax.f32 %v1741, 0.0
    %v1790 = vmax.f32 %v1742, 0.0
    %v1791 = vmax.f32 %v1743, 0.0
    %v1792 = vmax.f32 %v1744, 0.0
    %v1793 = vmax.f32 %v1745, 0.0
    %v1794 = vmax.f32 %v1746, 0.0
    %v1795 = vmax.f32 %v1747, 0.0
    %v1796 = vmax.f32 %v1748, 0.0
    %v1797 = vmax.f32 %v1749, 0.0
    %v1798 = vmax.f32 %v1750, 0.0
    %v1799 = vmax.f32 %v1751, 0.0
    %v1800 = vmax.f32 %v1752, 0.0
    %v1801 = vmax.f32 %v1753, 0.0
    %v1802 = vmax.f32 %v1754, 0.0
    %v1803 = vmax.f32 %v1755, 0.0
    %v1804 = vmax.f32 %v1756, 0.0
    %v1805 = vmax.f32 %v1757, 0.0
    %v1806 = vmax.f32 %v1758, %v1759
    %v1807 = vmax.f32 %v1760, %v1761
    %v1808 = vmax.f32 %v1762, %v1763
    %v1809 = vmax.f32 %v1764, %v1765
    %v1810 = vmax.f32 %v1766, %v1767
    %v1811 = vmax.f32 %v1768, %v1769
    %v1812 = vmax.f32 %v1770, %v1771
    %v1813 = vmax.f32 %v1772, %v1773
    %v1814 = vmax.f32 %v1774, %v1775
    %v1815 = vmax.f32 %v1776, %v1777
    %v1816 = vmax.f32 %v1778, %v1779
    %v1817 = vmax.f32 %v1780, %v1781
    %v1818 = vmax.f32 %v1782, %v1783
    %v1819 = vmax.f32 %v1784, %v1785
    %v1820 = vmax.f32 %v1786, %v1787
    %v1821 = vmax.f32 %v1788, %v1789
    %v1822 = vmax.f32 %v1790, %v1791
    %v1823 = vmax.f32 %v1792, %v1793
    %v1824 = vmax.f32 %v1794, %v1795
    %v1825 = vmax.f32 %v1796, %v1797
    %v1826 = vmax.f32 %v1798, %v1799
    %v1827 = vmax.f32 %v1800, %v1801
    %v1828 = vmax.f32 %v1802, %v1803
    %v1829 = vmax.f32 %v1804, %v1805
    %v1854 = vrot.slane %v1806, 2
    %v1855 = vrot.slane %v1806, 4
    %v1856 = vrot.slane %v1806, 6
    %v1857 = vrot.slane %v1807, 2
    %v1858 = vrot.slane %v1807, 4
    %v1859 = vrot.slane %v1807, 6
    %v1860 = vrot.slane %v1808, 2
    %v1861 = vrot.slane %v1808, 4
    %v1862 = vrot.slane %v1808, 6
    %v1863 = vrot.slane %v1809, 2
    %v1864 = vrot.slane %v1809, 4
    %v1865 = vrot.slane %v1809, 6
    %v1866 = vrot.slane %v1810, 2
    %v1867 = vrot.slane %v1810, 4
    %v1868 = vrot.slane %v1810, 6
    %v1869 = vrot.slane %v1811, 2
    %v1870 = vrot.slane %v1811, 4
    %v1871 = vrot.slane %v1811, 6
    %v1872 = vrot.slane %v1812, 2
    %v1873 = vrot.slane %v1812, 4
    %v1874 = vrot.slane %v1812, 6
    %v1875 = vrot.slane %v1813, 2
    %v1876 = vrot.slane %v1813, 4
    %v1877 = vrot.slane %v1813, 6
    %v1878 = vrot.slane %v1814, 2
    %v1879 = vrot.slane %v1814, 4
    %v1880 = vrot.slane %v1814, 6
    %v1881 = vrot.slane %v1815, 2
    %v1882 = vrot.slane %v1815, 4
    %v1883 = vrot.slane %v1815, 6
    %v1884 = vrot.slane %v1816, 2
    %v1885 = vrot.slane %v1816, 4
    %v1886 = vrot.slane %v1816, 6
    %v1887 = vrot.slane %v1817, 2
    %v1888 = vrot.slane %v1817, 4
    %v1889 = vrot.slane %v1817, 6
    %v1890 = vrot.slane %v1818, 2
    %v1891 = vrot.slane %v1818, 4
    %v1892 = vrot.slane %v1818, 6
    %v1893 = vrot.slane %v1819, 2
    %v1894 = vrot.slane %v1819, 4
    %v1895 = vrot.slane %v1819, 6
    %v1896 = vrot.slane %v1820, 2
    %v1897 = vrot.slane %v1820, 4
    %v1898 = vrot.slane %v1820, 6
    %v1899 = vrot.slane %v1821, 2
    %v1900 = vrot.slane %v1821, 4
    %v1901 = vrot.slane %v1821, 6
    %v1902 = vrot.slane %v1822, 2
    %v1903 = vrot.slane %v1822, 4
    %v1904 = vrot.slane %v1822, 6
    %v1905 = vrot.slane %v1823, 2
    %v1906 = vrot.slane %v1823, 4
    %v1907 = vrot.slane %v1823, 6
    %v1908 = vrot.slane %v1824, 2
    %v1909 = vrot.slane %v1824, 4
    %v1910 = vrot.slane %v1824, 6
    %v1911 = vrot.slane %v1825, 2
    %v1912 = vrot.slane %v1825, 4
    %v1913 = vrot.slane %v1825, 6
    %v1914 = vrot.slane %v1826, 2
    %v1915 = vrot.slane %v1826, 4
    %v1916 = vrot.slane %v1826, 6
    %v1917 = vrot.slane %v1827, 2
    %v1918 = vrot.slane %v1827, 4
    %v1919 = vrot.slane %v1827, 6
    %v1920 = vrot.slane %v1828, 2
    %v1921 = vrot.slane %v1828, 4
    %v1922 = vrot.slane %v1828, 6
    %v1923 = vrot.slane %v1829, 2
    %v1924 = vrot.slane %v1829, 4
    %v1925 = vrot.slane %v1829, 6
    %v1998 = vrot.slane %v1806, 7
    %v1999 = vrot.slane %v1998, 2
    %v2000 = vrot.slane %v1854, 7
    %v2001 = vrot.slane %v2000, 2
    %v2002 = vrot.slane %v1855, 7
    %v2003 = vrot.slane %v2002, 2
    %v2004 = vrot.slane %v1856, 7
    %v2005 = vrot.slane %v2004, 2
    %v2006 = vrot.slane %v1807, 7
    %v2007 = vrot.slane %v2006, 2
    %v2008 = vrot.slane %v1857, 7
    %v2009 = vrot.slane %v2008, 2
    %v2010 = vrot.slane %v1858, 7
    %v2011 = vrot.slane %v2010, 2
    %v2012 = vrot.slane %v1859, 7
    %v2013 = vrot.slane %v2012, 2
    %v2014 = vrot.slane %v1808, 7
    %v2015 = vrot.slane %v2014, 2
    %v2016 = vrot.slane %v1860, 7
    %v2017 = vrot.slane %v2016, 2
    %v2018 = vrot.slane %v1861, 7
    %v2019 = vrot.slane %v2018, 2
    %v2020 = vrot.slane %v1862, 7
    %v2021 = vrot.slane %v2020, 2
    %v2022 = vrot.slane %v1809, 7
    %v2023 = vrot.slane %v2022, 2
    %v2024 = vrot.slane %v1863, 7
    %v2025 = vrot.slane %v2024, 2
    %v2026 = vrot.slane %v1864, 7
    %v2027 = vrot.slane %v2026, 2
    %v2028 = vrot.slane %v1865, 7
    %v2029 = vrot.slane %v2028, 2
    %v2030 = vrot.slane %v1810, 7
    %v2031 = vrot.slane %v2030, 2
    %v2032 = vrot.slane %v1866, 7
    %v2033 = vrot.slane %v2032, 2
    %v2034 = vrot.slane %v1867, 7
    %v2035 = vrot.slane %v2034, 2
    %v2036 = vrot.slane %v1868, 7
    %v2037 = vrot.slane %v2036, 2
    %v2038 = vrot.slane %v1811, 7
    %v2039 = vrot.slane %v2038, 2
    %v2040 = vrot.slane %v1869, 7
    %v2041 = vrot.slane %v2040, 2
    %v2042 = vrot.slane %v1870, 7
    %v2043 = vrot.slane %v2042, 2
    %v2044 = vrot.slane %v1871, 7
    %v2045 = vrot.slane %v2044, 2
    %v2046 = vrot.slane %v1812, 7
    %v2047 = vrot.slane %v2046, 2
    %v2048 = vrot.slane %v1872, 7
    %v2049 = vrot.slane %v2048, 2
    %v2050 = vrot.slane %v1873, 7
    %v2051 = vrot.slane %v2050, 2
    %v2052 = vrot.slane %v1874, 7
    %v2053 = vrot.slane %v2052, 2
    %v2054 = vrot.slane %v1813, 7
    %v2055 = vrot.slane %v2054, 2
    %v2056 = vrot.slane %v1875, 7
    %v2057 = vrot.slane %v2056, 2
    %v2058 = vrot.slane %v1876, 7
    %v2059 = vrot.slane %v2058, 2
    %v2060 = vrot.slane %v1877, 7
    %v2061 = vrot.slane %v2060, 2
    %v2062 = vrot.slane %v1814, 7
    %v2063 = vrot.slane %v2062, 2
    %v2064 = vrot.slane %v1878, 7
    %v2065 = vrot.slane %v2064, 2
    %v2066 = vrot.slane %v1879, 7
    %v2067 = vrot.slane %v2066, 2
    %v2068 = vrot.slane %v1880, 7
    %v2069 = vrot.slane %v2068, 2
    %v2070 = vrot.slane %v1815, 7
    %v2071 = vrot.slane %v2070, 2
    %v2072 = vrot.slane %v1881, 7
    %v2073 = vrot.slane %v2072, 2
    %v2074 = vrot.slane %v1882, 7
    %v2075 = vrot.slane %v2074, 2
    %v2076 = vrot.slane %v1883, 7
    %v2077 = vrot.slane %v2076, 2
    %v2078 = vrot.slane %v1816, 7
    %v2079 = vrot.slane %v2078, 2
    %v2080 = vrot.slane %v1884, 7
    %v2081 = vrot.slane %v2080, 2
    %v2082 = vrot.slane %v1885, 7
    %v2083 = vrot.slane %v2082, 2
    %v2084 = vrot.slane %v1886, 7
    %v2085 = vrot.slane %v2084, 2
    %v2086 = vrot.slane %v1817, 7
    %v2087 = vrot.slane %v2086, 2
    %v2088 = vrot.slane %v1887, 7
    %v2089 = vrot.slane %v2088, 2
    %v2090 = vrot.slane %v1888, 7
    %v2091 = vrot.slane %v2090, 2
    %v2092 = vrot.slane %v1889, 7
    %v2093 = vrot.slane %v2092, 2
    %v2094 = vrot.slane %v1818, 7
    %v2095 = vrot.slane %v2094, 2
    %v2096 = vrot.slane %v1890, 7
    %v2097 = vrot.slane %v2096, 2
    %v2098 = vrot.slane %v1891, 7
    %v2099 = vrot.slane %v2098, 2
    %v2100 = vrot.slane %v1892, 7
    %v2101 = vrot.slane %v2100, 2
    %v2102 = vrot.slane %v1819, 7
    %v2103 = vrot.slane %v2102, 2
    %v2104 = vrot.slane %v1893, 7
    %v2105 = vrot.slane %v2104, 2
    %v2106 = vrot.slane %v1894, 7
    %v2107 = vrot.slane %v2106, 2
    %v2108 = vrot.slane %v1895, 7
    %v2109 = vrot.slane %v2108, 2
    %v2110 = vrot.slane %v1820, 7
    %v2111 = vrot.slane %v2110, 2
    %v2112 = vrot.slane %v1896, 7
    %v2113 = vrot.slane %v2112, 2
    %v2114 = vrot.slane %v1897, 7
    %v2115 = vrot.slane %v2114, 2
    %v2116 = vrot.slane %v1898, 7
    %v2117 = vrot.slane %v2116, 2
    %v2118 = vrot.slane %v1821, 7
    %v2119 = vrot.slane %v2118, 2
    %v2120 = vrot.slane %v1899, 7
    %v2121 = vrot.slane %v2120, 2
    %v2122 = vrot.slane %v1900, 7
    %v2123 = vrot.slane %v2122, 2
    %v2124 = vrot.slane %v1901, 7
    %v2125 = vrot.slane %v2124, 2
    %v2126 = vrot.slane %v1822, 7
    %v2127 = vrot.slane %v2126, 2
    %v2128 = vrot.slane %v1902, 7
    %v2129 = vrot.slane %v2128, 2
    %v2130 = vrot.slane %v1903, 7
    %v2131 = vrot.slane %v2130, 2
    %v2132 = vrot.slane %v1904, 7
    %v2133 = vrot.slane %v2132, 2
    %v2134 = vrot.slane %v1823, 7
    %v2135 = vrot.slane %v2134, 2
    %v2136 = vrot.slane %v1905, 7
    %v2137 = vrot.slane %v2136, 2
    %v2138 = vrot.slane %v1906, 7
    %v2139 = vrot.slane %v2138, 2
    %v2140 = vrot.slane %v1907, 7
    %v2141 = vrot.slane %v2140, 2
    %v2142 = vrot.slane %v1824, 7
    %v2143 = vrot.slane %v2142, 2
    %v2144 = vrot.slane %v1908, 7
    %v2145 = vrot.slane %v2144, 2
    %v2146 = vrot.slane %v1909, 7
    %v2147 = vrot.slane %v2146, 2
    %v2148 = vrot.slane %v1910, 7
    %v2149 = vrot.slane %v2148, 2
    %v2150 = vrot.slane %v1825, 7
    %v2151 = vrot.slane %v2150, 2
    %v2152 = vrot.slane %v1911, 7
    %v2153 = vrot.slane %v2152, 2
    %v2154 = vrot.slane %v1912, 7
    %v2155 = vrot.slane %v2154, 2
    %v2156 = vrot.slane %v1913, 7
    %v2157 = vrot.slane %v2156, 2
    %v2158 = vrot.slane %v1826, 7
    %v2159 = vrot.slane %v2158, 2
    %v2160 = vrot.slane %v1914, 7
    %v2161 = vrot.slane %v2160, 2
    %v2162 = vrot.slane %v1915, 7
    %v2163 = vrot.slane %v2162, 2
    %v2164 = vrot.slane %v1916, 7
    %v2165 = vrot.slane %v2164, 2
    %v2166 = vrot.slane %v1827, 7
    %v2167 = vrot.slane %v2166, 2
    %v2168 = vrot.slane %v1917, 7
    %v2169 = vrot.slane %v2168, 2
    %v2170 = vrot.slane %v1918, 7
    %v2171 = vrot.slane %v2170, 2
    %v2172 = vrot.slane %v1919, 7
    %v2173 = vrot.slane %v2172, 2
    %v2174 = vrot.slane %v1828, 7
    %v2175 = vrot.slane %v2174, 2
    %v2176 = vrot.slane %v1920, 7
    %v2177 = vrot.slane %v2176, 2
    %v2178 = vrot.slane %v1921, 7
    %v2179 = vrot.slane %v2178, 2
    %v2180 = vrot.slane %v1922, 7
    %v2181 = vrot.slane %v2180, 2
    %v2182 = vrot.slane %v1829, 7
    %v2183 = vrot.slane %v2182, 2
    %v2184 = vrot.slane %v1923, 7
    %v2185 = vrot.slane %v2184, 2
    %v2186 = vrot.slane %v1924, 7
    %v2187 = vrot.slane %v2186, 2
    %v2188 = vrot.slane %v1925, 7
    %v2189 = vrot.slane %v2188, 2
    %v2286 = vmax.f32 %v1806, %v1999
    %v2287 = vmax.f32 %v1854, %v2001
    %v2288 = vmax.f32 %v1855, %v2003
    %v2289 = vmax.f32 %v1856, %v2005
    %v2290 = vmax.f32 %v1807, %v2007
    %v2291 = vmax.f32 %v1857, %v2009
    %v2292 = vmax.f32 %v1858, %v2011
    %v2293 = vmax.f32 %v1859, %v2013
    %v2294 = vmax.f32 %v1808, %v2015
    %v2295 = vmax.f32 %v1860, %v2017
    %v2296 = vmax.f32 %v1861, %v2019
    %v2297 = vmax.f32 %v1862, %v2021
    %v2298 = vmax.f32 %v1809, %v2023
    %v2299 = vmax.f32 %v1863, %v2025
    %v2300 = vmax.f32 %v1864, %v2027
    %v2301 = vmax.f32 %v1865, %v2029
    %v2302 = vmax.f32 %v1810, %v2031
    %v2303 = vmax.f32 %v1866, %v2033
    %v2304 = vmax.f32 %v1867, %v2035
    %v2305 = vmax.f32 %v1868, %v2037
    %v2306 = vmax.f32 %v1811, %v2039
    %v2307 = vmax.f32 %v1869, %v2041
    %v2308 = vmax.f32 %v1870, %v2043
    %v2309 = vmax.f32 %v1871, %v2045
    %v2310 = vmax.f32 %v1812, %v2047
    %v2311 = vmax.f32 %v1872, %v2049
    %v2312 = vmax.f32 %v1873, %v2051
    %v2313 = vmax.f32 %v1874, %v2053
    %v2314 = vmax.f32 %v1813, %v2055
    %v2315 = vmax.f32 %v1875, %v2057
    %v2316 = vmax.f32 %v1876, %v2059
    %v2317 = vmax.f32 %v1877, %v2061
    %v2318 = vmax.f32 %v1814, %v2063
    %v2319 = vmax.f32 %v1878, %v2065
    %v2320 = vmax.f32 %v1879, %v2067
    %v2321 = vmax.f32 %v1880, %v2069
    %v2322 = vmax.f32 %v1815, %v2071
    %v2323 = vmax.f32 %v1881, %v2073
    %v2324 = vmax.f32 %v1882, %v2075
    %v2325 = vmax.f32 %v1883, %v2077
    %v2326 = vmax.f32 %v1816, %v2079
    %v2327 = vmax.f32 %v1884, %v2081
    %v2328 = vmax.f32 %v1885, %v2083
    %v2329 = vmax.f32 %v1886, %v2085
    %v2330 = vmax.f32 %v1817, %v2087
    %v2331 = vmax.f32 %v1887, %v2089
    %v2332 = vmax.f32 %v1888, %v2091
    %v2333 = vmax.f32 %v1889, %v2093
    %v2334 = vmax.f32 %v1818, %v2095
    %v2335 = vmax.f32 %v1890, %v2097
    %v2336 = vmax.f32 %v1891, %v2099
    %v2337 = vmax.f32 %v1892, %v2101
    %v2338 = vmax.f32 %v1819, %v2103
    %v2339 = vmax.f32 %v1893, %v2105
    %v2340 = vmax.f32 %v1894, %v2107
    %v2341 = vmax.f32 %v1895, %v2109
    %v2342 = vmax.f32 %v1820, %v2111
    %v2343 = vmax.f32 %v1896, %v2113
    %v2344 = vmax.f32 %v1897, %v2115
    %v2345 = vmax.f32 %v1898, %v2117
    %v2346 = vmax.f32 %v1821, %v2119
    %v2347 = vmax.f32 %v1899, %v2121
    %v2348 = vmax.f32 %v1900, %v2123
    %v2349 = vmax.f32 %v1901, %v2125
    %v2350 = vmax.f32 %v1822, %v2127
    %v2351 = vmax.f32 %v1902, %v2129
    %v2352 = vmax.f32 %v1903, %v2131
    %v2353 = vmax.f32 %v1904, %v2133
    %v2354 = vmax.f32 %v1823, %v2135
    %v2355 = vmax.f32 %v1905, %v2137
    %v2356 = vmax.f32 %v1906, %v2139
    %v2357 = vmax.f32 %v1907, %v2141
    %v2358 = vmax.f32 %v1824, %v2143
    %v2359 = vmax.f32 %v1908, %v2145
    %v2360 = vmax.f32 %v1909, %v2147
    %v2361 = vmax.f32 %v1910, %v2149
    %v2362 = vmax.f32 %v1825, %v2151
    %v2363 = vmax.f32 %v1911, %v2153
    %v2364 = vmax.f32 %v1912, %v2155
    %v2365 = vmax.f32 %v1913, %v2157
    %v2366 = vmax.f32 %v1826, %v2159
    %v2367 = vmax.f32 %v1914, %v2161
    %v2368 = vmax.f32 %v1915, %v2163
    %v2369 = vmax.f32 %v1916, %v2165
    %v2370 = vmax.f32 %v1827, %v2167
    %v2371 = vmax.f32 %v1917, %v2169
    %v2372 = vmax.f32 %v1918, %v2171
    %v2373 = vmax.f32 %v1919, %v2173
    %v2374 = vmax.f32 %v1828, %v2175
    %v2375 = vmax.f32 %v1920, %v2177
    %v2376 = vmax.f32 %v1921, %v2179
    %v2377 = vmax.f32 %v1922, %v2181
    %v2378 = vmax.f32 %v1829, %v2183
    %v2379 = vmax.f32 %v1923, %v2185
    %v2380 = vmax.f32 %v1924, %v2187
    %v2381 = vmax.f32 %v1925, %v2189
    %v2382 = vpack.c.bf16 %v2286, %v2286
    %v2383 = vpack.c.bf16 %v2287, %v2287
    %v2384 = vpack.c.bf16 %v2288, %v2288
    %v2385 = vpack.c.bf16 %v2289, %v2289
    %v2386 = vpack.c.bf16 %v2290, %v2290
    %v2387 = vpack.c.bf16 %v2291, %v2291
    %v2388 = vpack.c.bf16 %v2292, %v2292
    %v2389 = vpack.c.bf16 %v2293, %v2293
    %v2390 = vpack.c.bf16 %v2298, %v2298
    %v2391 = vpack.c.bf16 %v2299, %v2299
    %v2392 = vpack.c.bf16 %v2300, %v2300
    %v2393 = vpack.c.bf16 %v2301, %v2301
    %v2394 = vpack.c.bf16 %v2302, %v2302
    %v2395 = vpack.c.bf16 %v2303, %v2303
    %v2396 = vpack.c.bf16 %v2304, %v2304
    %v2397 = vpack.c.bf16 %v2305, %v2305
    %v2398 = vpack.c.bf16 %v2310, %v2310
    %v2399 = vpack.c.bf16 %v2311, %v2311
    %v2400 = vpack.c.bf16 %v2312, %v2312
    %v2401 = vpack.c.bf16 %v2313, %v2313
    %v2402 = vpack.c.bf16 %v2314, %v2314
    %v2403 = vpack.c.bf16 %v2315, %v2315
    %v2404 = vpack.c.bf16 %v2316, %v2316
    %v2405 = vpack.c.bf16 %v2317, %v2317
    %v2406 = vpack.c.bf16 %v2322, %v2322
    %v2407 = vpack.c.bf16 %v2323, %v2323
    %v2408 = vpack.c.bf16 %v2324, %v2324
    %v2409 = vpack.c.bf16 %v2325, %v2325
    %v2410 = vpack.c.bf16 %v2326, %v2326
    %v2411 = vpack.c.bf16 %v2327, %v2327
    %v2412 = vpack.c.bf16 %v2328, %v2328
    %v2413 = vpack.c.bf16 %v2329, %v2329
    %v2414 = vpack.c.bf16 %v2334, %v2334
    %v2415 = vpack.c.bf16 %v2335, %v2335
    %v2416 = vpack.c.bf16 %v2336, %v2336
    %v2417 = vpack.c.bf16 %v2337, %v2337
    %v2418 = vpack.c.bf16 %v2338, %v2338
    %v2419 = vpack.c.bf16 %v2339, %v2339
    %v2420 = vpack.c.bf16 %v2340, %v2340
    %v2421 = vpack.c.bf16 %v2341, %v2341
    %v2422 = vpack.c.bf16 %v2346, %v2346
    %v2423 = vpack.c.bf16 %v2347, %v2347
    %v2424 = vpack.c.bf16 %v2348, %v2348
    %v2425 = vpack.c.bf16 %v2349, %v2349
    %v2426 = vpack.c.bf16 %v2350, %v2350
    %v2427 = vpack.c.bf16 %v2351, %v2351
    %v2428 = vpack.c.bf16 %v2352, %v2352
    %v2429 = vpack.c.bf16 %v2353, %v2353
    %v2430 = vpack.c.bf16 %v2358, %v2358
    %v2431 = vpack.c.bf16 %v2359, %v2359
    %v2432 = vpack.c.bf16 %v2360, %v2360
    %v2433 = vpack.c.bf16 %v2361, %v2361
    %v2434 = vpack.c.bf16 %v2362, %v2362
    %v2435 = vpack.c.bf16 %v2363, %v2363
    %v2436 = vpack.c.bf16 %v2364, %v2364
    %v2437 = vpack.c.bf16 %v2365, %v2365
    %v2438 = vpack.c.bf16 %v2370, %v2370
    %v2439 = vpack.c.bf16 %v2371, %v2371
    %v2440 = vpack.c.bf16 %v2372, %v2372
    %v2441 = vpack.c.bf16 %v2373, %v2373
    %v2442 = vpack.c.bf16 %v2374, %v2374
    %v2443 = vpack.c.bf16 %v2375, %v2375
    %v2444 = vpack.c.bf16 %v2376, %v2376
    %v2445 = vpack.c.bf16 %v2377, %v2377
    %v2446 = vld [vmem:[#allocation2] sm:$0xff]
    %v2447 = vld [vmem:[#allocation2 + $0x8] sm:$0xff]
    %v2448 = vld [vmem:[#allocation2 + $0x10] sm:$0xff]
    %v2449 = vld [vmem:[#allocation2 + $0x18] sm:$0xff]
    %v2450 = vld [vmem:[#allocation2 + $0x20] sm:$0xff]
    %v2451 = vld [vmem:[#allocation2 + $0x28] sm:$0xff]
    %v2452 = vld [vmem:[#allocation2 + $0x30] sm:$0xff]
    %v2453 = vld [vmem:[#allocation2 + $0x38] sm:$0xff]
    %v2454 = vld [vmem:[#allocation2 + $0x40] sm:$0xff]
    %v2455 = vld [vmem:[#allocation2 + $0x48] sm:$0xff]
    %v2456 = vld [vmem:[#allocation2 + $0x50] sm:$0xff]
    %v2457 = vld [vmem:[#allocation2 + $0x58] sm:$0xff]
    %v2458 = vld [vmem:[#allocation2 + $0x60] sm:$0xff]
    %v2459 = vld [vmem:[#allocation2 + $0x68] sm:$0xff]
    %v2460 = vld [vmem:[#allocation2 + $0x70] sm:$0xff]
    %v2461 = vld [vmem:[#allocation2 + $0x78] sm:$0xff]
    %v2462 = vpack.c.bf16 %v2294, %v2294
    %v2463 = vpack.c.bf16 %v2306, %v2306
    %v2464 = vpack.c.bf16 %v2318, %v2318
    %v2465 = vpack.c.bf16 %v2330, %v2330
    %v2466 = vpack.c.bf16 %v2342, %v2342
    %v2467 = vpack.c.bf16 %v2354, %v2354
    %v2468 = vpack.c.bf16 %v2366, %v2366
    %v2469 = vpack.c.bf16 %v2378, %v2378
    %s2470 = scalar_lea.vmem [#allocation2], 128
    %v2471 = vld [vmem:[%s2470] sm:$0xff]
    %v2472 = vld [vmem:[%s2470 + $0x8] sm:$0xff]
    %v2473 = vld [vmem:[%s2470 + $0x10] sm:$0xff]
    %v2474 = vld [vmem:[%s2470 + $0x18] sm:$0xff]
    %v2475 = vld [vmem:[%s2470 + $0x20] sm:$0xff]
    %v2476 = vld [vmem:[%s2470 + $0x28] sm:$0xff]
    %v2477 = vld [vmem:[%s2470 + $0x30] sm:$0xff]
    %v2478 = vld [vmem:[%s2470 + $0x38] sm:$0xff]
    %v2479 = vld [vmem:[%s2470 + $0x40] sm:$0xff]
    %v2480 = vld [vmem:[%s2470 + $0x48] sm:$0xff]
    %v2481 = vld [vmem:[%s2470 + $0x50] sm:$0xff]
    %v2482 = vld [vmem:[%s2470 + $0x58] sm:$0xff]
    %v2483 = vld [vmem:[%s2470 + $0x60] sm:$0xff]
    %v2484 = vld [vmem:[%s2470 + $0x68] sm:$0xff]
    %v2485 = vld [vmem:[%s2470 + $0x70] sm:$0xff]
    %v2486 = vld [vmem:[%s2470 + $0x78] sm:$0xff]
    %v2551 = vunpack.c.l.b16 %v2383
    %v2552 = vunpack.c.l.b16 %v2384
    %v2553 = vunpack.c.l.b16 %v2385
    %v2554 = vunpack.c.l.b16 %v2386
    %v2555 = vunpack.c.l.b16 %v2387
    %v2556 = vunpack.c.l.b16 %v2388
    %v2557 = vunpack.c.l.b16 %v2389
    %v2558 = vunpack.c.l.b16 %v2462
    %v2559 = vunpack.c.l.b16 %v2391
    %v2560 = vunpack.c.l.b16 %v2392
    %v2561 = vunpack.c.l.b16 %v2393
    %v2562 = vunpack.c.l.b16 %v2394
    %v2563 = vunpack.c.l.b16 %v2395
    %v2564 = vunpack.c.l.b16 %v2396
    %v2565 = vunpack.c.l.b16 %v2397
    %v2566 = vunpack.c.l.b16 %v2463
    %v2567 = vunpack.c.l.b16 %v2399
    %v2568 = vunpack.c.l.b16 %v2400
    %v2569 = vunpack.c.l.b16 %v2401
    %v2570 = vunpack.c.l.b16 %v2402
    %v2571 = vunpack.c.l.b16 %v2403
    %v2572 = vunpack.c.l.b16 %v2404
    %v2573 = vunpack.c.l.b16 %v2405
    %v2574 = vunpack.c.l.b16 %v2464
    %v2575 = vunpack.c.l.b16 %v2407
    %v2576 = vunpack.c.l.b16 %v2408
    %v2577 = vunpack.c.l.b16 %v2409
    %v2578 = vunpack.c.l.b16 %v2410
    %v2579 = vunpack.c.l.b16 %v2411
    %v2580 = vunpack.c.l.b16 %v2412
    %v2581 = vunpack.c.l.b16 %v2413
    %v2582 = vunpack.c.l.b16 %v2465
    %v2583 = vunpack.c.l.b16 %v2415
    %v2584 = vunpack.c.l.b16 %v2416
    %v2585 = vunpack.c.l.b16 %v2417
    %v2586 = vunpack.c.l.b16 %v2418
    %v2587 = vunpack.c.l.b16 %v2419
    %v2588 = vunpack.c.l.b16 %v2420
    %v2589 = vunpack.c.l.b16 %v2421
    %v2590 = vunpack.c.l.b16 %v2466
    %v2591 = vunpack.c.l.b16 %v2423
    %v2592 = vunpack.c.l.b16 %v2424
    %v2593 = vunpack.c.l.b16 %v2425
    %v2594 = vunpack.c.l.b16 %v2426
    %v2595 = vunpack.c.l.b16 %v2427
    %v2596 = vunpack.c.l.b16 %v2428
    %v2597 = vunpack.c.l.b16 %v2429
    %v2598 = vunpack.c.l.b16 %v2467
    %v2599 = vunpack.c.l.b16 %v2431
    %v2600 = vunpack.c.l.b16 %v2432
    %v2601 = vunpack.c.l.b16 %v2433
    %v2602 = vunpack.c.l.b16 %v2434
    %v2603 = vunpack.c.l.b16 %v2435
    %v2604 = vunpack.c.l.b16 %v2436
    %v2605 = vunpack.c.l.b16 %v2437
    %v2606 = vunpack.c.l.b16 %v2468
    %v2607 = vunpack.c.l.b16 %v2439
    %v2608 = vunpack.c.l.b16 %v2440
    %v2609 = vunpack.c.l.b16 %v2441
    %v2610 = vunpack.c.l.b16 %v2442
    %v2611 = vunpack.c.l.b16 %v2443
    %v2612 = vunpack.c.l.b16 %v2444
    %v2613 = vunpack.c.l.b16 %v2445
    %v2614 = vunpack.c.l.b16 %v2469
    %v2615 = vrot.slane %v2552, 7
    %vm2616 = vcmask 1041409
    %v2617 = vsel %vm2616, %v2615, %v2551
    %v2618 = vrot.slane %v2553, 6
    %vm2619 = vcmask 1042434
    %v2620 = vsel %vm2619, %v2618, %v2617
    %v2621 = vrot.slane %v2554, 5
    %vm2622 = vcmask 1043459
    %v2623 = vsel %vm2622, %v2621, %v2620
    %v2624 = vrot.slane %v2555, 4
    %vm2625 = vcmask 1044484
    %v2626 = vsel %vm2625, %v2624, %v2623
    %v2627 = vrot.slane %v2556, 3
    %vm2628 = vcmask 1045509
    %v2629 = vsel %vm2628, %v2627, %v2626
    %v2630 = vrot.slane %v2557, 2
    %vm2631 = vcmask 1046534
    %v2632 = vsel %vm2631, %v2630, %v2629
    %v2633 = vrot.slane %v2558, 1
    %vm2634 = vcmask 1047559
    %v2635 = vsel %vm2634, %v2633, %v2632
    %v2636 = vrot.slane %v2560, 7
    %v2637 = vsel %vm2616, %v2636, %v2559
    %v2638 = vrot.slane %v2561, 6
    %v2639 = vsel %vm2619, %v2638, %v2637
    %v2640 = vrot.slane %v2562, 5
    %v2641 = vsel %vm2622, %v2640, %v2639
    %v2642 = vrot.slane %v2563, 4
    %v2643 = vsel %vm2625, %v2642, %v2641
    %v2644 = vrot.slane %v2564, 3
    %v2645 = vsel %vm2628, %v2644, %v2643
    %v2646 = vrot.slane %v2565, 2
    %v2647 = vsel %vm2631, %v2646, %v2645
    %v2648 = vrot.slane %v2566, 1
    %v2649 = vsel %vm2634, %v2648, %v2647
    %v2650 = vrot.slane %v2568, 7
    %v2651 = vsel %vm2616, %v2650, %v2567
    %v2652 = vrot.slane %v2569, 6
    %v2653 = vsel %vm2619, %v2652, %v2651
    %v2654 = vrot.slane %v2570, 5
    %v2655 = vsel %vm2622, %v2654, %v2653
    %v2656 = vrot.slane %v2571, 4
    %v2657 = vsel %vm2625, %v2656, %v2655
    %v2658 = vrot.slane %v2572, 3
    %v2659 = vsel %vm2628, %v2658, %v2657
    %v2660 = vrot.slane %v2573, 2
    %v2661 = vsel %vm2631, %v2660, %v2659
    %v2662 = vrot.slane %v2574, 1
    %v2663 = vsel %vm2634, %v2662, %v2661
    %v2664 = vrot.slane %v2576, 7
    %v2665 = vsel %vm2616, %v2664, %v2575
    %v2666 = vrot.slane %v2577, 6
    %v2667 = vsel %vm2619, %v2666, %v2665
    %v2668 = vrot.slane %v2578, 5
    %v2669 = vsel %vm2622, %v2668, %v2667
    %v2670 = vrot.slane %v2579, 4
    %v2671 = vsel %vm2625, %v2670, %v2669
    %v2672 = vrot.slane %v2580, 3
    %v2673 = vsel %vm2628, %v2672, %v2671
    %v2674 = vrot.slane %v2581, 2
    %v2675 = vsel %vm2631, %v2674, %v2673
    %v2676 = vrot.slane %v2582, 1
    %v2677 = vsel %vm2634, %v2676, %v2675
    %v2678 = vrot.slane %v2584, 7
    %v2679 = vsel %vm2616, %v2678, %v2583
    %v2680 = vrot.slane %v2585, 6
    %v2681 = vsel %vm2619, %v2680, %v2679
    %v2682 = vrot.slane %v2586, 5
    %v2683 = vsel %vm2622, %v2682, %v2681
    %v2684 = vrot.slane %v2587, 4
    %v2685 = vsel %vm2625, %v2684, %v2683
    %v2686 = vrot.slane %v2588, 3
    %v2687 = vsel %vm2628, %v2686, %v2685
    %v2688 = vrot.slane %v2589, 2
    %v2689 = vsel %vm2631, %v2688, %v2687
    %v2690 = vrot.slane %v2590, 1
    %v2691 = vsel %vm2634, %v2690, %v2689
    %v2692 = vrot.slane %v2592, 7
    %v2693 = vsel %vm2616, %v2692, %v2591
    %v2694 = vrot.slane %v2593, 6
    %v2695 = vsel %vm2619, %v2694, %v2693
    %v2696 = vrot.slane %v2594, 5
    %v2697 = vsel %vm2622, %v2696, %v2695
    %v2698 = vrot.slane %v2595, 4
    %v2699 = vsel %vm2625, %v2698, %v2697
    %v2700 = vrot.slane %v2596, 3
    %v2701 = vsel %vm2628, %v2700, %v2699
    %v2702 = vrot.slane %v2597, 2
    %v2703 = vsel %vm2631, %v2702, %v2701
    %v2704 = vrot.slane %v2598, 1
    %v2705 = vsel %vm2634, %v2704, %v2703
    %v2706 = vrot.slane %v2600, 7
    %v2707 = vsel %vm2616, %v2706, %v2599
    %v2708 = vrot.slane %v2601, 6
    %v2709 = vsel %vm2619, %v2708, %v2707
    %v2710 = vrot.slane %v2602, 5
    %v2711 = vsel %vm2622, %v2710, %v2709
    %v2712 = vrot.slane %v2603, 4
    %v2713 = vsel %vm2625, %v2712, %v2711
    %v2714 = vrot.slane %v2604, 3
    %v2715 = vsel %vm2628, %v2714, %v2713
    %v2716 = vrot.slane %v2605, 2
    %v2717 = vsel %vm2631, %v2716, %v2715
    %v2718 = vrot.slane %v2606, 1
    %v2719 = vsel %vm2634, %v2718, %v2717
    %v2720 = vrot.slane %v2608, 7
    %v2721 = vsel %vm2616, %v2720, %v2607
    %v2722 = vrot.slane %v2609, 6
    %v2723 = vsel %vm2619, %v2722, %v2721
    %v2724 = vrot.slane %v2610, 5
    %v2725 = vsel %vm2622, %v2724, %v2723
    %v2726 = vrot.slane %v2611, 4
    %v2727 = vsel %vm2625, %v2726, %v2725
    %v2728 = vrot.slane %v2612, 3
    %v2729 = vsel %vm2628, %v2728, %v2727
    %v2730 = vrot.slane %v2613, 2
    %v2731 = vsel %vm2631, %v2730, %v2729
    %v2732 = vrot.slane %v2614, 1
    %v2733 = vsel %vm2634, %v2732, %v2731
    %v2734 = vpack.c.b16 %v2649, %v2635
    %v2735 = vpack.c.b16 %v2677, %v2663
    %v2736 = vpack.c.b16 %v2705, %v2691
    %v2737 = vpack.c.b16 %v2733, %v2719
    %v2758 = vunpack.c.l.b16 %v2471
    %v2759 = vunpack.c.h.b16 %v2471
    %v2760 = vunpack.c.l.b16 %v2472
    %v2761 = vunpack.c.h.b16 %v2472
    %v2762 = vunpack.c.l.b16 %v2473
    %v2763 = vunpack.c.h.b16 %v2473
    %v2764 = vunpack.c.l.b16 %v2474
    %v2765 = vunpack.c.h.b16 %v2474
    %v2766 = vunpack.c.l.b16 %v2475
    %v2767 = vunpack.c.h.b16 %v2475
    %v2768 = vunpack.c.l.b16 %v2476
    %v2769 = vunpack.c.h.b16 %v2476
    %v2770 = vunpack.c.l.b16 %v2477
    %v2771 = vunpack.c.h.b16 %v2477
    %v2772 = vunpack.c.l.b16 %v2478
    %v2773 = vunpack.c.h.b16 %v2478
    %v2774 = vunpack.c.l.b16 %v2479
    %v2775 = vunpack.c.h.b16 %v2479
    %v2776 = vunpack.c.l.b16 %v2480
    %v2777 = vunpack.c.h.b16 %v2480
    %v2778 = vunpack.c.l.b16 %v2481
    %v2779 = vunpack.c.h.b16 %v2481
    %v2780 = vunpack.c.l.b16 %v2482
    %v2781 = vunpack.c.h.b16 %v2482
    %v2782 = vunpack.c.l.b16 %v2483
    %v2783 = vunpack.c.h.b16 %v2483
    %v2784 = vunpack.c.l.b16 %v2484
    %v2785 = vunpack.c.h.b16 %v2484
    %v2786 = vunpack.c.l.b16 %v2485
    %v2787 = vunpack.c.h.b16 %v2485
    %v2788 = vunpack.c.l.b16 %v2486
    %v2789 = vunpack.c.h.b16 %v2486
    %v2790 = vpack.c.b16 %v2760, %v2758
    %v2791 = vpack.c.b16 %v2761, %v2759
    %v2792 = vpack.c.b16 %v2764, %v2762
    %v2793 = vpack.c.b16 %v2765, %v2763
    %v2794 = vpack.c.b16 %v2768, %v2766
    %v2795 = vpack.c.b16 %v2769, %v2767
    %v2796 = vpack.c.b16 %v2772, %v2770
    %v2797 = vpack.c.b16 %v2773, %v2771
    %v2798 = vpack.c.b16 %v2776, %v2774
    %v2799 = vpack.c.b16 %v2777, %v2775
    %v2800 = vpack.c.b16 %v2780, %v2778
    %v2801 = vpack.c.b16 %v2781, %v2779
    %v2802 = vpack.c.b16 %v2784, %v2782
    %v2803 = vpack.c.b16 %v2785, %v2783
    %v2804 = vpack.c.b16 %v2788, %v2786
    %v2805 = vpack.c.b16 %v2789, %v2787
    %2822 = vmatpush.bf16.msra.mxu0 %v2804
    %2823 = vmatpush.bf16.msra.mxu0 %v2802
    %2824 = vmatpush.bf16.msra.mxu0 %v2800
    %2825 = vmatpush.bf16.msra.mxu0 %v2798
    %2826 = vmatpush.bf16.msra.mxu0 %v2796
    %2827 = vmatpush.bf16.msra.mxu0 %v2794
    %2828 = vmatpush.bf16.msra.mxu0 %v2792
    %2829 = vmatpush.bf16.msra.mxu0 %v2790
    %2830 = vmatmul.bf16.gmra.mxu0 %v2734
    %v2831 = vpop.f32.mrf.mxu0
    %v2832 = vadd.f32 0.0, %v2831
    %v2833 = vpop.f32.mrf.mxu0
    %v2834 = vadd.f32 0.0, %v2833
    %2835 = vmatmul.bf16.gmra.mxu0 %v2735
    %v2836 = vpop.f32.mrf.mxu0
    %v2837 = vadd.f32 0.0, %v2836
    %v2838 = vpop.f32.mrf.mxu0
    %v2839 = vadd.f32 0.0, %v2838
    %2840 = vmatmul.bf16.gmra.mxu0 %v2736
    %v2841 = vpop.f32.mrf.mxu0
    %v2842 = vadd.f32 0.0, %v2841
    %v2843 = vpop.f32.mrf.mxu0
    %v2844 = vadd.f32 0.0, %v2843
    %2845 = vmatmul.bf16.gmra.mxu0 %v2737
    %v2846 = vpop.f32.mrf.mxu0
    %v2847 = vadd.f32 0.0, %v2846
    %v2848 = vpop.f32.mrf.mxu0
    %v2849 = vadd.f32 0.0, %v2848
    %2850 = vdwg.mxu0
    %2851 = vmatpush.bf16.msra.mxu0 %v2805
    %2852 = vmatpush.bf16.msra.mxu0 %v2803
    %2853 = vmatpush.bf16.msra.mxu0 %v2801
    %2854 = vmatpush.bf16.msra.mxu0 %v2799
    %2855 = vmatpush.bf16.msra.mxu0 %v2797
    %2856 = vmatpush.bf16.msra.mxu0 %v2795
    %2857 = vmatpush.bf16.msra.mxu0 %v2793
    %2858 = vmatpush.bf16.msra.mxu0 %v2791
    %2859 = vmatmul.bf16.gmra.mxu0 %v2734
    %v2860 = vpop.f32.mrf.mxu0
    %v2861 = vadd.f32 0.0, %v2860
    %v2862 = vpop.f32.mrf.mxu0
    %v2863 = vadd.f32 0.0, %v2862
    %2864 = vmatmul.bf16.gmra.mxu0 %v2735
    %v2865 = vpop.f32.mrf.mxu0
    %v2866 = vadd.f32 0.0, %v2865
    %v2867 = vpop.f32.mrf.mxu0
    %v2868 = vadd.f32 0.0, %v2867
    %2869 = vmatmul.bf16.gmra.mxu0 %v2736
    %v2870 = vpop.f32.mrf.mxu0
    %v2871 = vadd.f32 0.0, %v2870
    %v2872 = vpop.f32.mrf.mxu0
    %v2873 = vadd.f32 0.0, %v2872
    %2874 = vmatmul.bf16.gmra.mxu0 %v2737
    %v2875 = vpop.f32.mrf.mxu0
    %v2876 = vadd.f32 0.0, %v2875
    %v2877 = vpop.f32.mrf.mxu0
    %v2878 = vadd.f32 0.0, %v2877
    %2879 = vdwg.mxu0
    %v2888 = vunpack.c.l.b16 %v2382
    %v2889 = vunpack.c.l.b16 %v2390
    %v2890 = vunpack.c.l.b16 %v2398
    %v2891 = vunpack.c.l.b16 %v2406
    %v2892 = vunpack.c.l.b16 %v2414
    %v2893 = vunpack.c.l.b16 %v2422
    %v2894 = vunpack.c.l.b16 %v2430
    %v2895 = vunpack.c.l.b16 %v2438
    %v2896 = vrot.slane %v2551, 7
    %v2897 = vsel %vm2616, %v2896, %v2888
    %v2898 = vrot.slane %v2552, 6
    %v2899 = vsel %vm2619, %v2898, %v2897
    %v2900 = vrot.slane %v2553, 5
    %v2901 = vsel %vm2622, %v2900, %v2899
    %v2902 = vrot.slane %v2554, 4
    %v2903 = vsel %vm2625, %v2902, %v2901
    %v2904 = vrot.slane %v2555, 3
    %v2905 = vsel %vm2628, %v2904, %v2903
    %v2906 = vrot.slane %v2556, 2
    %v2907 = vsel %vm2631, %v2906, %v2905
    %v2908 = vrot.slane %v2557, 1
    %v2909 = vsel %vm2634, %v2908, %v2907
    %v2910 = vrot.slane %v2559, 7
    %v2911 = vsel %vm2616, %v2910, %v2889
    %v2912 = vrot.slane %v2560, 6
    %v2913 = vsel %vm2619, %v2912, %v2911
    %v2914 = vrot.slane %v2561, 5
    %v2915 = vsel %vm2622, %v2914, %v2913
    %v2916 = vrot.slane %v2562, 4
    %v2917 = vsel %vm2625, %v2916, %v2915
    %v2918 = vrot.slane %v2563, 3
    %v2919 = vsel %vm2628, %v2918, %v2917
    %v2920 = vrot.slane %v2564, 2
    %v2921 = vsel %vm2631, %v2920, %v2919
    %v2922 = vrot.slane %v2565, 1
    %v2923 = vsel %vm2634, %v2922, %v2921
    %v2924 = vrot.slane %v2567, 7
    %v2925 = vsel %vm2616, %v2924, %v2890
    %v2926 = vrot.slane %v2568, 6
    %v2927 = vsel %vm2619, %v2926, %v2925
    %v2928 = vrot.slane %v2569, 5
    %v2929 = vsel %vm2622, %v2928, %v2927
    %v2930 = vrot.slane %v2570, 4
    %v2931 = vsel %vm2625, %v2930, %v2929
    %v2932 = vrot.slane %v2571, 3
    %v2933 = vsel %vm2628, %v2932, %v2931
    %v2934 = vrot.slane %v2572, 2
    %v2935 = vsel %vm2631, %v2934, %v2933
    %v2936 = vrot.slane %v2573, 1
    %v2937 = vsel %vm2634, %v2936, %v2935
    %v2938 = vrot.slane %v2575, 7
    %v2939 = vsel %vm2616, %v2938, %v2891
    %v2940 = vrot.slane %v2576, 6
    %v2941 = vsel %vm2619, %v2940, %v2939
    %v2942 = vrot.slane %v2577, 5
    %v2943 = vsel %vm2622, %v2942, %v2941
    %v2944 = vrot.slane %v2578, 4
    %v2945 = vsel %vm2625, %v2944, %v2943
    %v2946 = vrot.slane %v2579, 3
    %v2947 = vsel %vm2628, %v2946, %v2945
    %v2948 = vrot.slane %v2580, 2
    %v2949 = vsel %vm2631, %v2948, %v2947
    %v2950 = vrot.slane %v2581, 1
    %v2951 = vsel %vm2634, %v2950, %v2949
    %v2952 = vrot.slane %v2583, 7
    %v2953 = vsel %vm2616, %v2952, %v2892
    %v2954 = vrot.slane %v2584, 6
    %v2955 = vsel %vm2619, %v2954, %v2953
    %v2956 = vrot.slane %v2585, 5
    %v2957 = vsel %vm2622, %v2956, %v2955
    %v2958 = vrot.slane %v2586, 4
    %v2959 = vsel %vm2625, %v2958, %v2957
    %v2960 = vrot.slane %v2587, 3
    %v2961 = vsel %vm2628, %v2960, %v2959
    %v2962 = vrot.slane %v2588, 2
    %v2963 = vsel %vm2631, %v2962, %v2961
    %v2964 = vrot.slane %v2589, 1
    %v2965 = vsel %vm2634, %v2964, %v2963
    %v2966 = vrot.slane %v2591, 7
    %v2967 = vsel %vm2616, %v2966, %v2893
    %v2968 = vrot.slane %v2592, 6
    %v2969 = vsel %vm2619, %v2968, %v2967
    %v2970 = vrot.slane %v2593, 5
    %v2971 = vsel %vm2622, %v2970, %v2969
    %v2972 = vrot.slane %v2594, 4
    %v2973 = vsel %vm2625, %v2972, %v2971
    %v2974 = vrot.slane %v2595, 3
    %v2975 = vsel %vm2628, %v2974, %v2973
    %v2976 = vrot.slane %v2596, 2
    %v2977 = vsel %vm2631, %v2976, %v2975
    %v2978 = vrot.slane %v2597, 1
    %v2979 = vsel %vm2634, %v2978, %v2977
    %v2980 = vrot.slane %v2599, 7
    %v2981 = vsel %vm2616, %v2980, %v2894
    %v2982 = vrot.slane %v2600, 6
    %v2983 = vsel %vm2619, %v2982, %v2981
    %v2984 = vrot.slane %v2601, 5
    %v2985 = vsel %vm2622, %v2984, %v2983
    %v2986 = vrot.slane %v2602, 4
    %v2987 = vsel %vm2625, %v2986, %v2985
    %v2988 = vrot.slane %v2603, 3
    %v2989 = vsel %vm2628, %v2988, %v2987
    %v2990 = vrot.slane %v2604, 2
    %v2991 = vsel %vm2631, %v2990, %v2989
    %v2992 = vrot.slane %v2605, 1
    %v2993 = vsel %vm2634, %v2992, %v2991
    %v2994 = vrot.slane %v2607, 7
    %v2995 = vsel %vm2616, %v2994, %v2895
    %v2996 = vrot.slane %v2608, 6
    %v2997 = vsel %vm2619, %v2996, %v2995
    %v2998 = vrot.slane %v2609, 5
    %v2999 = vsel %vm2622, %v2998, %v2997
    %v3000 = vrot.slane %v2610, 4
    %v3001 = vsel %vm2625, %v3000, %v2999
    %v3002 = vrot.slane %v2611, 3
    %v3003 = vsel %vm2628, %v3002, %v3001
    %v3004 = vrot.slane %v2612, 2
    %v3005 = vsel %vm2631, %v3004, %v3003
    %v3006 = vrot.slane %v2613, 1
    %v3007 = vsel %vm2634, %v3006, %v3005
    %v3008 = vpack.c.b16 %v2923, %v2909
    %v3009 = vpack.c.b16 %v2951, %v2937
    %v3010 = vpack.c.b16 %v2979, %v2965
    %v3011 = vpack.c.b16 %v3007, %v2993
    %v3032 = vunpack.c.l.b16 %v2446
    %v3033 = vunpack.c.h.b16 %v2446
    %v3034 = vunpack.c.l.b16 %v2447
    %v3035 = vunpack.c.h.b16 %v2447
    %v3036 = vunpack.c.l.b16 %v2448
    %v3037 = vunpack.c.h.b16 %v2448
    %v3038 = vunpack.c.l.b16 %v2449
    %v3039 = vunpack.c.h.b16 %v2449
    %v3040 = vunpack.c.l.b16 %v2450
    %v3041 = vunpack.c.h.b16 %v2450
    %v3042 = vunpack.c.l.b16 %v2451
    %v3043 = vunpack.c.h.b16 %v2451
    %v3044 = vunpack.c.l.b16 %v2452
    %v3045 = vunpack.c.h.b16 %v2452
    %v3046 = vunpack.c.l.b16 %v2453
    %v3047 = vunpack.c.h.b16 %v2453
    %v3048 = vunpack.c.l.b16 %v2454
    %v3049 = vunpack.c.h.b16 %v2454
    %v3050 = vunpack.c.l.b16 %v2455
    %v3051 = vunpack.c.h.b16 %v2455
    %v3052 = vunpack.c.l.b16 %v2456
    %v3053 = vunpack.c.h.b16 %v2456
    %v3054 = vunpack.c.l.b16 %v2457
    %v3055 = vunpack.c.h.b16 %v2457
    %v3056 = vunpack.c.l.b16 %v2458
    %v3057 = vunpack.c.h.b16 %v2458
    %v3058 = vunpack.c.l.b16 %v2459
    %v3059 = vunpack.c.h.b16 %v2459
    %v3060 = vunpack.c.l.b16 %v2460
    %v3061 = vunpack.c.h.b16 %v2460
    %v3062 = vunpack.c.l.b16 %v2461
    %v3063 = vunpack.c.h.b16 %v2461
    %v3064 = vpack.c.b16 %v3034, %v3032
    %v3065 = vpack.c.b16 %v3035, %v3033
    %v3066 = vpack.c.b16 %v3038, %v3036
    %v3067 = vpack.c.b16 %v3039, %v3037
    %v3068 = vpack.c.b16 %v3042, %v3040
    %v3069 = vpack.c.b16 %v3043, %v3041
    %v3070 = vpack.c.b16 %v3046, %v3044
    %v3071 = vpack.c.b16 %v3047, %v3045
    %v3072 = vpack.c.b16 %v3050, %v3048
    %v3073 = vpack.c.b16 %v3051, %v3049
    %v3074 = vpack.c.b16 %v3054, %v3052
    %v3075 = vpack.c.b16 %v3055, %v3053
    %v3076 = vpack.c.b16 %v3058, %v3056
    %v3077 = vpack.c.b16 %v3059, %v3057
    %v3078 = vpack.c.b16 %v3062, %v3060
    %v3079 = vpack.c.b16 %v3063, %v3061
    %3096 = vmatpush.bf16.msra.mxu0 %v3078
    %3097 = vmatpush.bf16.msra.mxu0 %v3076
    %3098 = vmatpush.bf16.msra.mxu0 %v3074
    %3099 = vmatpush.bf16.msra.mxu0 %v3072
    %3100 = vmatpush.bf16.msra.mxu0 %v3070
    %3101 = vmatpush.bf16.msra.mxu0 %v3068
    %3102 = vmatpush.bf16.msra.mxu0 %v3066
    %3103 = vmatpush.bf16.msra.mxu0 %v3064
    %3104 = vmatmul.bf16.gmra.mxu0 %v3008
    %v3105 = vpop.f32.mrf.mxu0
    %v3106 = vadd.f32 %v2832, %v3105
    %v3107 = vpop.f32.mrf.mxu0
    %v3108 = vadd.f32 %v2834, %v3107
    %3109 = vmatmul.bf16.gmra.mxu0 %v3009
    %v3110 = vpop.f32.mrf.mxu0
    %v3111 = vadd.f32 %v2837, %v3110
    %v3112 = vpop.f32.mrf.mxu0
    %v3113 = vadd.f32 %v2839, %v3112
    %3114 = vmatmul.bf16.gmra.mxu0 %v3010
    %v3115 = vpop.f32.mrf.mxu0
    %v3116 = vadd.f32 %v2842, %v3115
    %v3117 = vpop.f32.mrf.mxu0
    %v3118 = vadd.f32 %v2844, %v3117
    %3119 = vmatmul.bf16.gmra.mxu0 %v3011
    %v3120 = vpop.f32.mrf.mxu0
    %v3121 = vadd.f32 %v2847, %v3120
    %v3122 = vpop.f32.mrf.mxu0
    %v3123 = vadd.f32 %v2849, %v3122
    %3124 = vdwg.mxu0
    %3125 = vmatpush.bf16.msra.mxu0 %v3079
    %3126 = vmatpush.bf16.msra.mxu0 %v3077
    %3127 = vmatpush.bf16.msra.mxu0 %v3075
    %3128 = vmatpush.bf16.msra.mxu0 %v3073
    %3129 = vmatpush.bf16.msra.mxu0 %v3071
    %3130 = vmatpush.bf16.msra.mxu0 %v3069
    %3131 = vmatpush.bf16.msra.mxu0 %v3067
    %3132 = vmatpush.bf16.msra.mxu0 %v3065
    %3133 = vmatmul.bf16.gmra.mxu0 %v3008
    %v3134 = vpop.f32.mrf.mxu0
    %v3135 = vadd.f32 %v2861, %v3134
    %v3136 = vpop.f32.mrf.mxu0
    %v3137 = vadd.f32 %v2863, %v3136
    %3138 = vmatmul.bf16.gmra.mxu0 %v3009
    %v3139 = vpop.f32.mrf.mxu0
    %v3140 = vadd.f32 %v2866, %v3139
    %v3141 = vpop.f32.mrf.mxu0
    %v3142 = vadd.f32 %v2868, %v3141
    %3143 = vmatmul.bf16.gmra.mxu0 %v3010
    %v3144 = vpop.f32.mrf.mxu0
    %v3145 = vadd.f32 %v2871, %v3144
    %v3146 = vpop.f32.mrf.mxu0
    %v3147 = vadd.f32 %v2873, %v3146
    %3148 = vmatmul.bf16.gmra.mxu0 %v3011
    %v3149 = vpop.f32.mrf.mxu0
    %v3150 = vadd.f32 %v2876, %v3149
    %v3151 = vpop.f32.mrf.mxu0
    %v3152 = vadd.f32 %v2878, %v3151
    %3153 = vdwg.mxu0
    %v3154 = vpack.c.bf16 %v2295, %v2295
    %v3155 = vpack.c.bf16 %v2307, %v2307
    %v3156 = vpack.c.bf16 %v2319, %v2319
    %v3157 = vpack.c.bf16 %v2331, %v2331
    %v3158 = vpack.c.bf16 %v2343, %v2343
    %v3159 = vpack.c.bf16 %v2355, %v2355
    %v3160 = vpack.c.bf16 %v2367, %v2367
    %v3161 = vpack.c.bf16 %v2379, %v2379
    %s3162 = scalar_lea.vmem [#allocation2], 256
    %v3163 = vld [vmem:[%s3162] sm:$0xff]
    %v3164 = vld [vmem:[%s3162 + $0x8] sm:$0xff]
    %v3165 = vld [vmem:[%s3162 + $0x10] sm:$0xff]
    %v3166 = vld [vmem:[%s3162 + $0x18] sm:$0xff]
    %v3167 = vld [vmem:[%s3162 + $0x20] sm:$0xff]
    %v3168 = vld [vmem:[%s3162 + $0x28] sm:$0xff]
    %v3169 = vld [vmem:[%s3162 + $0x30] sm:$0xff]
    %v3170 = vld [vmem:[%s3162 + $0x38] sm:$0xff]
    %v3171 = vld [vmem:[%s3162 + $0x40] sm:$0xff]
    %v3172 = vld [vmem:[%s3162 + $0x48] sm:$0xff]
    %v3173 = vld [vmem:[%s3162 + $0x50] sm:$0xff]
    %v3174 = vld [vmem:[%s3162 + $0x58] sm:$0xff]
    %v3175 = vld [vmem:[%s3162 + $0x60] sm:$0xff]
    %v3176 = vld [vmem:[%s3162 + $0x68] sm:$0xff]
    %v3177 = vld [vmem:[%s3162 + $0x70] sm:$0xff]
    %v3178 = vld [vmem:[%s3162 + $0x78] sm:$0xff]
    %v3187 = vunpack.c.l.b16 %v3154
    %v3188 = vunpack.c.l.b16 %v3155
    %v3189 = vunpack.c.l.b16 %v3156
    %v3190 = vunpack.c.l.b16 %v3157
    %v3191 = vunpack.c.l.b16 %v3158
    %v3192 = vunpack.c.l.b16 %v3159
    %v3193 = vunpack.c.l.b16 %v3160
    %v3194 = vunpack.c.l.b16 %v3161
    %v3195 = vrot.slane %v2553, 7
    %v3196 = vsel %vm2616, %v3195, %v2552
    %v3197 = vrot.slane %v2554, 6
    %v3198 = vsel %vm2619, %v3197, %v3196
    %v3199 = vrot.slane %v2555, 5
    %v3200 = vsel %vm2622, %v3199, %v3198
    %v3201 = vrot.slane %v2556, 4
    %v3202 = vsel %vm2625, %v3201, %v3200
    %v3203 = vrot.slane %v2557, 3
    %v3204 = vsel %vm2628, %v3203, %v3202
    %v3205 = vrot.slane %v2558, 2
    %v3206 = vsel %vm2631, %v3205, %v3204
    %v3207 = vrot.slane %v3187, 1
    %v3208 = vsel %vm2634, %v3207, %v3206
    %v3209 = vrot.slane %v2561, 7
    %v3210 = vsel %vm2616, %v3209, %v2560
    %v3211 = vrot.slane %v2562, 6
    %v3212 = vsel %vm2619, %v3211, %v3210
    %v3213 = vrot.slane %v2563, 5
    %v3214 = vsel %vm2622, %v3213, %v3212
    %v3215 = vrot.slane %v2564, 4
    %v3216 = vsel %vm2625, %v3215, %v3214
    %v3217 = vrot.slane %v2565, 3
    %v3218 = vsel %vm2628, %v3217, %v3216
    %v3219 = vrot.slane %v2566, 2
    %v3220 = vsel %vm2631, %v3219, %v3218
    %v3221 = vrot.slane %v3188, 1
    %v3222 = vsel %vm2634, %v3221, %v3220
    %v3223 = vrot.slane %v2569, 7
    %v3224 = vsel %vm2616, %v3223, %v2568
    %v3225 = vrot.slane %v2570, 6
    %v3226 = vsel %vm2619, %v3225, %v3224
    %v3227 = vrot.slane %v2571, 5
    %v3228 = vsel %vm2622, %v3227, %v3226
    %v3229 = vrot.slane %v2572, 4
    %v3230 = vsel %vm2625, %v3229, %v3228
    %v3231 = vrot.slane %v2573, 3
    %v3232 = vsel %vm2628, %v3231, %v3230
    %v3233 = vrot.slane %v2574, 2
    %v3234 = vsel %vm2631, %v3233, %v3232
    %v3235 = vrot.slane %v3189, 1
    %v3236 = vsel %vm2634, %v3235, %v3234
    %v3237 = vrot.slane %v2577, 7
    %v3238 = vsel %vm2616, %v3237, %v2576
    %v3239 = vrot.slane %v2578, 6
    %v3240 = vsel %vm2619, %v3239, %v3238
    %v3241 = vrot.slane %v2579, 5
    %v3242 = vsel %vm2622, %v3241, %v3240
    %v3243 = vrot.slane %v2580, 4
    %v3244 = vsel %vm2625, %v3243, %v3242
    %v3245 = vrot.slane %v2581, 3
    %v3246 = vsel %vm2628, %v3245, %v3244
    %v3247 = vrot.slane %v2582, 2
    %v3248 = vsel %vm2631, %v3247, %v3246
    %v3249 = vrot.slane %v3190, 1
    %v3250 = vsel %vm2634, %v3249, %v3248
    %v3251 = vrot.slane %v2585, 7
    %v3252 = vsel %vm2616, %v3251, %v2584
    %v3253 = vrot.slane %v2586, 6
    %v3254 = vsel %vm2619, %v3253, %v3252
    %v3255 = vrot.slane %v2587, 5
    %v3256 = vsel %vm2622, %v3255, %v3254
    %v3257 = vrot.slane %v2588, 4
    %v3258 = vsel %vm2625, %v3257, %v3256
    %v3259 = vrot.slane %v2589, 3
    %v3260 = vsel %vm2628, %v3259, %v3258
    %v3261 = vrot.slane %v2590, 2
    %v3262 = vsel %vm2631, %v3261, %v3260
    %v3263 = vrot.slane %v3191, 1
    %v3264 = vsel %vm2634, %v3263, %v3262
    %v3265 = vrot.slane %v2593, 7
    %v3266 = vsel %vm2616, %v3265, %v2592
    %v3267 = vrot.slane %v2594, 6
    %v3268 = vsel %vm2619, %v3267, %v3266
    %v3269 = vrot.slane %v2595, 5
    %v3270 = vsel %vm2622, %v3269, %v3268
    %v3271 = vrot.slane %v2596, 4
    %v3272 = vsel %vm2625, %v3271, %v3270
    %v3273 = vrot.slane %v2597, 3
    %v3274 = vsel %vm2628, %v3273, %v3272
    %v3275 = vrot.slane %v2598, 2
    %v3276 = vsel %vm2631, %v3275, %v3274
    %v3277 = vrot.slane %v3192, 1
    %v3278 = vsel %vm2634, %v3277, %v3276
    %v3279 = vrot.slane %v2601, 7
    %v3280 = vsel %vm2616, %v3279, %v2600
    %v3281 = vrot.slane %v2602, 6
    %v3282 = vsel %vm2619, %v3281, %v3280
    %v3283 = vrot.slane %v2603, 5
    %v3284 = vsel %vm2622, %v3283, %v3282
    %v3285 = vrot.slane %v2604, 4
    %v3286 = vsel %vm2625, %v3285, %v3284
    %v3287 = vrot.slane %v2605, 3
    %v3288 = vsel %vm2628, %v3287, %v3286
    %v3289 = vrot.slane %v2606, 2
    %v3290 = vsel %vm2631, %v3289, %v3288
    %v3291 = vrot.slane %v3193, 1
    %v3292 = vsel %vm2634, %v3291, %v3290
    %v3293 = vrot.slane %v2609, 7
    %v3294 = vsel %vm2616, %v3293, %v2608
    %v3295 = vrot.slane %v2610, 6
    %v3296 = vsel %vm2619, %v3295, %v3294
    %v3297 = vrot.slane %v2611, 5
    %v3298 = vsel %vm2622, %v3297, %v3296
    %v3299 = vrot.slane %v2612, 4
    %v3300 = vsel %vm2625, %v3299, %v3298
    %v3301 = vrot.slane %v2613, 3
    %v3302 = vsel %vm2628, %v3301, %v3300
    %v3303 = vrot.slane %v2614, 2
    %v3304 = vsel %vm2631, %v3303, %v3302
    %v3305 = vrot.slane %v3194, 1
    %v3306 = vsel %vm2634, %v3305, %v3304
    %v3307 = vpack.c.b16 %v3222, %v3208
    %v3308 = vpack.c.b16 %v3250, %v3236
    %v3309 = vpack.c.b16 %v3278, %v3264
    %v3310 = vpack.c.b16 %v3306, %v3292
    %v3331 = vunpack.c.l.b16 %v3163
    %v3332 = vunpack.c.h.b16 %v3163
    %v3333 = vunpack.c.l.b16 %v3164
    %v3334 = vunpack.c.h.b16 %v3164
    %v3335 = vunpack.c.l.b16 %v3165
    %v3336 = vunpack.c.h.b16 %v3165
    %v3337 = vunpack.c.l.b16 %v3166
    %v3338 = vunpack.c.h.b16 %v3166
    %v3339 = vunpack.c.l.b16 %v3167
    %v3340 = vunpack.c.h.b16 %v3167
    %v3341 = vunpack.c.l.b16 %v3168
    %v3342 = vunpack.c.h.b16 %v3168
    %v3343 = vunpack.c.l.b16 %v3169
    %v3344 = vunpack.c.h.b16 %v3169
    %v3345 = vunpack.c.l.b16 %v3170
    %v3346 = vunpack.c.h.b16 %v3170
    %v3347 = vunpack.c.l.b16 %v3171
    %v3348 = vunpack.c.h.b16 %v3171
    %v3349 = vunpack.c.l.b16 %v3172
    %v3350 = vunpack.c.h.b16 %v3172
    %v3351 = vunpack.c.l.b16 %v3173
    %v3352 = vunpack.c.h.b16 %v3173
    %v3353 = vunpack.c.l.b16 %v3174
    %v3354 = vunpack.c.h.b16 %v3174
    %v3355 = vunpack.c.l.b16 %v3175
    %v3356 = vunpack.c.h.b16 %v3175
    %v3357 = vunpack.c.l.b16 %v3176
    %v3358 = vunpack.c.h.b16 %v3176
    %v3359 = vunpack.c.l.b16 %v3177
    %v3360 = vunpack.c.h.b16 %v3177
    %v3361 = vunpack.c.l.b16 %v3178
    %v3362 = vunpack.c.h.b16 %v3178
    %v3363 = vpack.c.b16 %v3333, %v3331
    %v3364 = vpack.c.b16 %v3334, %v3332
    %v3365 = vpack.c.b16 %v3337, %v3335
    %v3366 = vpack.c.b16 %v3338, %v3336
    %v3367 = vpack.c.b16 %v3341, %v3339
    %v3368 = vpack.c.b16 %v3342, %v3340
    %v3369 = vpack.c.b16 %v3345, %v3343
    %v3370 = vpack.c.b16 %v3346, %v3344
    %v3371 = vpack.c.b16 %v3349, %v3347
    %v3372 = vpack.c.b16 %v3350, %v3348
    %v3373 = vpack.c.b16 %v3353, %v3351
    %v3374 = vpack.c.b16 %v3354, %v3352
    %v3375 = vpack.c.b16 %v3357, %v3355
    %v3376 = vpack.c.b16 %v3358, %v3356
    %v3377 = vpack.c.b16 %v3361, %v3359
    %v3378 = vpack.c.b16 %v3362, %v3360
    %3395 = vmatpush.bf16.msra.mxu0 %v3377
    %3396 = vmatpush.bf16.msra.mxu0 %v3375
    %3397 = vmatpush.bf16.msra.mxu0 %v3373
    %3398 = vmatpush.bf16.msra.mxu0 %v3371
    %3399 = vmatpush.bf16.msra.mxu0 %v3369
    %3400 = vmatpush.bf16.msra.mxu0 %v3367
    %3401 = vmatpush.bf16.msra.mxu0 %v3365
    %3402 = vmatpush.bf16.msra.mxu0 %v3363
    %3403 = vmatmul.bf16.gmra.mxu0 %v3307
    %v3404 = vpop.f32.mrf.mxu0
    %v3405 = vadd.f32 0.0, %v3404
    %v3406 = vpop.f32.mrf.mxu0
    %v3407 = vadd.f32 0.0, %v3406
    %3408 = vmatmul.bf16.gmra.mxu0 %v3308
    %v3409 = vpop.f32.mrf.mxu0
    %v3410 = vadd.f32 0.0, %v3409
    %v3411 = vpop.f32.mrf.mxu0
    %v3412 = vadd.f32 0.0, %v3411
    %3413 = vmatmul.bf16.gmra.mxu0 %v3309
    %v3414 = vpop.f32.mrf.mxu0
    %v3415 = vadd.f32 0.0, %v3414
    %v3416 = vpop.f32.mrf.mxu0
    %v3417 = vadd.f32 0.0, %v3416
    %3418 = vmatmul.bf16.gmra.mxu0 %v3310
    %v3419 = vpop.f32.mrf.mxu0
    %v3420 = vadd.f32 0.0, %v3419
    %v3421 = vpop.f32.mrf.mxu0
    %v3422 = vadd.f32 0.0, %v3421
    %3423 = vdwg.mxu0
    %3424 = vmatpush.bf16.msra.mxu0 %v3378
    %3425 = vmatpush.bf16.msra.mxu0 %v3376
    %3426 = vmatpush.bf16.msra.mxu0 %v3374
    %3427 = vmatpush.bf16.msra.mxu0 %v3372
    %3428 = vmatpush.bf16.msra.mxu0 %v3370
    %3429 = vmatpush.bf16.msra.mxu0 %v3368
    %3430 = vmatpush.bf16.msra.mxu0 %v3366
    %3431 = vmatpush.bf16.msra.mxu0 %v3364
    %3432 = vmatmul.bf16.gmra.mxu0 %v3307
    %v3433 = vpop.f32.mrf.mxu0
    %v3434 = vadd.f32 0.0, %v3433
    %v3435 = vpop.f32.mrf.mxu0
    %v3436 = vadd.f32 0.0, %v3435
    %3437 = vmatmul.bf16.gmra.mxu0 %v3308
    %v3438 = vpop.f32.mrf.mxu0
    %v3439 = vadd.f32 0.0, %v3438
    %v3440 = vpop.f32.mrf.mxu0
    %v3441 = vadd.f32 0.0, %v3440
    %3442 = vmatmul.bf16.gmra.mxu0 %v3309
    %v3443 = vpop.f32.mrf.mxu0
    %v3444 = vadd.f32 0.0, %v3443
    %v3445 = vpop.f32.mrf.mxu0
    %v3446 = vadd.f32 0.0, %v3445
    %3447 = vmatmul.bf16.gmra.mxu0 %v3310
    %v3448 = vpop.f32.mrf.mxu0
    %v3449 = vadd.f32 0.0, %v3448
    %v3450 = vpop.f32.mrf.mxu0
    %v3451 = vadd.f32 0.0, %v3450
    %3452 = vdwg.mxu0
    %v3453 = vadd.f32 %v3106, %v3405
    %v3454 = vadd.f32 %v3135, %v3434
    %v3455 = vadd.f32 %v3108, %v3407
    %v3456 = vadd.f32 %v3137, %v3436
    %v3457 = vadd.f32 %v3111, %v3410
    %v3458 = vadd.f32 %v3140, %v3439
    %v3459 = vadd.f32 %v3113, %v3412
    %v3460 = vadd.f32 %v3142, %v3441
    %v3461 = vadd.f32 %v3116, %v3415
    %v3462 = vadd.f32 %v3145, %v3444
    %v3463 = vadd.f32 %v3118, %v3417
    %v3464 = vadd.f32 %v3147, %v3446
    %v3465 = vadd.f32 %v3121, %v3420
    %v3466 = vadd.f32 %v3150, %v3449
    %v3467 = vadd.f32 %v3123, %v3422
    %v3468 = vadd.f32 %v3152, %v3451
    %v3469 = vpack.c.bf16 %v2296, %v2296
    %v3470 = vpack.c.bf16 %v2308, %v2308
    %v3471 = vpack.c.bf16 %v2320, %v2320
    %v3472 = vpack.c.bf16 %v2332, %v2332
    %v3473 = vpack.c.bf16 %v2344, %v2344
    %v3474 = vpack.c.bf16 %v2356, %v2356
    %v3475 = vpack.c.bf16 %v2368, %v2368
    %v3476 = vpack.c.bf16 %v2380, %v2380
    %s3477 = scalar_lea.vmem [#allocation2], 384
    %v3478 = vld [vmem:[%s3477] sm:$0xff]
    %v3479 = vld [vmem:[%s3477 + $0x8] sm:$0xff]
    %v3480 = vld [vmem:[%s3477 + $0x10] sm:$0xff]
    %v3481 = vld [vmem:[%s3477 + $0x18] sm:$0xff]
    %v3482 = vld [vmem:[%s3477 + $0x20] sm:$0xff]
    %v3483 = vld [vmem:[%s3477 + $0x28] sm:$0xff]
    %v3484 = vld [vmem:[%s3477 + $0x30] sm:$0xff]
    %v3485 = vld [vmem:[%s3477 + $0x38] sm:$0xff]
    %v3486 = vld [vmem:[%s3477 + $0x40] sm:$0xff]
    %v3487 = vld [vmem:[%s3477 + $0x48] sm:$0xff]
    %v3488 = vld [vmem:[%s3477 + $0x50] sm:$0xff]
    %v3489 = vld [vmem:[%s3477 + $0x58] sm:$0xff]
    %v3490 = vld [vmem:[%s3477 + $0x60] sm:$0xff]
    %v3491 = vld [vmem:[%s3477 + $0x68] sm:$0xff]
    %v3492 = vld [vmem:[%s3477 + $0x70] sm:$0xff]
    %v3493 = vld [vmem:[%s3477 + $0x78] sm:$0xff]
    %v3502 = vunpack.c.l.b16 %v3469
    %v3503 = vunpack.c.l.b16 %v3470
    %v3504 = vunpack.c.l.b16 %v3471
    %v3505 = vunpack.c.l.b16 %v3472
    %v3506 = vunpack.c.l.b16 %v3473
    %v3507 = vunpack.c.l.b16 %v3474
    %v3508 = vunpack.c.l.b16 %v3475
    %v3509 = vunpack.c.l.b16 %v3476
    %v3510 = vrot.slane %v2554, 7
    %v3511 = vsel %vm2616, %v3510, %v2553
    %v3512 = vrot.slane %v2555, 6
    %v3513 = vsel %vm2619, %v3512, %v3511
    %v3514 = vrot.slane %v2556, 5
    %v3515 = vsel %vm2622, %v3514, %v3513
    %v3516 = vrot.slane %v2557, 4
    %v3517 = vsel %vm2625, %v3516, %v3515
    %v3518 = vrot.slane %v2558, 3
    %v3519 = vsel %vm2628, %v3518, %v3517
    %v3520 = vrot.slane %v3187, 2
    %v3521 = vsel %vm2631, %v3520, %v3519
    %v3522 = vrot.slane %v3502, 1
    %v3523 = vsel %vm2634, %v3522, %v3521
    %v3524 = vrot.slane %v2562, 7
    %v3525 = vsel %vm2616, %v3524, %v2561
    %v3526 = vrot.slane %v2563, 6
    %v3527 = vsel %vm2619, %v3526, %v3525
    %v3528 = vrot.slane %v2564, 5
    %v3529 = vsel %vm2622, %v3528, %v3527
    %v3530 = vrot.slane %v2565, 4
    %v3531 = vsel %vm2625, %v3530, %v3529
    %v3532 = vrot.slane %v2566, 3
    %v3533 = vsel %vm2628, %v3532, %v3531
    %v3534 = vrot.slane %v3188, 2
    %v3535 = vsel %vm2631, %v3534, %v3533
    %v3536 = vrot.slane %v3503, 1
    %v3537 = vsel %vm2634, %v3536, %v3535
    %v3538 = vrot.slane %v2570, 7
    %v3539 = vsel %vm2616, %v3538, %v2569
    %v3540 = vrot.slane %v2571, 6
    %v3541 = vsel %vm2619, %v3540, %v3539
    %v3542 = vrot.slane %v2572, 5
    %v3543 = vsel %vm2622, %v3542, %v3541
    %v3544 = vrot.slane %v2573, 4
    %v3545 = vsel %vm2625, %v3544, %v3543
    %v3546 = vrot.slane %v2574, 3
    %v3547 = vsel %vm2628, %v3546, %v3545
    %v3548 = vrot.slane %v3189, 2
    %v3549 = vsel %vm2631, %v3548, %v3547
    %v3550 = vrot.slane %v3504, 1
    %v3551 = vsel %vm2634, %v3550, %v3549
    %v3552 = vrot.slane %v2578, 7
    %v3553 = vsel %vm2616, %v3552, %v2577
    %v3554 = vrot.slane %v2579, 6
    %v3555 = vsel %vm2619, %v3554, %v3553
    %v3556 = vrot.slane %v2580, 5
    %v3557 = vsel %vm2622, %v3556, %v3555
    %v3558 = vrot.slane %v2581, 4
    %v3559 = vsel %vm2625, %v3558, %v3557
    %v3560 = vrot.slane %v2582, 3
    %v3561 = vsel %vm2628, %v3560, %v3559
    %v3562 = vrot.slane %v3190, 2
    %v3563 = vsel %vm2631, %v3562, %v3561
    %v3564 = vrot.slane %v3505, 1
    %v3565 = vsel %vm2634, %v3564, %v3563
    %v3566 = vrot.slane %v2586, 7
    %v3567 = vsel %vm2616, %v3566, %v2585
    %v3568 = vrot.slane %v2587, 6
    %v3569 = vsel %vm2619, %v3568, %v3567
    %v3570 = vrot.slane %v2588, 5
    %v3571 = vsel %vm2622, %v3570, %v3569
    %v3572 = vrot.slane %v2589, 4
    %v3573 = vsel %vm2625, %v3572, %v3571
    %v3574 = vrot.slane %v2590, 3
    %v3575 = vsel %vm2628, %v3574, %v3573
    %v3576 = vrot.slane %v3191, 2
    %v3577 = vsel %vm2631, %v3576, %v3575
    %v3578 = vrot.slane %v3506, 1
    %v3579 = vsel %vm2634, %v3578, %v3577
    %v3580 = vrot.slane %v2594, 7
    %v3581 = vsel %vm2616, %v3580, %v2593
    %v3582 = vrot.slane %v2595, 6
    %v3583 = vsel %vm2619, %v3582, %v3581
    %v3584 = vrot.slane %v2596, 5
    %v3585 = vsel %vm2622, %v3584, %v3583
    %v3586 = vrot.slane %v2597, 4
    %v3587 = vsel %vm2625, %v3586, %v3585
    %v3588 = vrot.slane %v2598, 3
    %v3589 = vsel %vm2628, %v3588, %v3587
    %v3590 = vrot.slane %v3192, 2
    %v3591 = vsel %vm2631, %v3590, %v3589
    %v3592 = vrot.slane %v3507, 1
    %v3593 = vsel %vm2634, %v3592, %v3591
    %v3594 = vrot.slane %v2602, 7
    %v3595 = vsel %vm2616, %v3594, %v2601
    %v3596 = vrot.slane %v2603, 6
    %v3597 = vsel %vm2619, %v3596, %v3595
    %v3598 = vrot.slane %v2604, 5
    %v3599 = vsel %vm2622, %v3598, %v3597
    %v3600 = vrot.slane %v2605, 4
    %v3601 = vsel %vm2625, %v3600, %v3599
    %v3602 = vrot.slane %v2606, 3
    %v3603 = vsel %vm2628, %v3602, %v3601
    %v3604 = vrot.slane %v3193, 2
    %v3605 = vsel %vm2631, %v3604, %v3603
    %v3606 = vrot.slane %v3508, 1
    %v3607 = vsel %vm2634, %v3606, %v3605
    %v3608 = vrot.slane %v2610, 7
    %v3609 = vsel %vm2616, %v3608, %v2609
    %v3610 = vrot.slane %v2611, 6
    %v3611 = vsel %vm2619, %v3610, %v3609
    %v3612 = vrot.slane %v2612, 5
    %v3613 = vsel %vm2622, %v3612, %v3611
    %v3614 = vrot.slane %v2613, 4
    %v3615 = vsel %vm2625, %v3614, %v3613
    %v3616 = vrot.slane %v2614, 3
    %v3617 = vsel %vm2628, %v3616, %v3615
    %v3618 = vrot.slane %v3194, 2
    %v3619 = vsel %vm2631, %v3618, %v3617
    %v3620 = vrot.slane %v3509, 1
    %v3621 = vsel %vm2634, %v3620, %v3619
    %v3622 = vpack.c.b16 %v3537, %v3523
    %v3623 = vpack.c.b16 %v3565, %v3551
    %v3624 = vpack.c.b16 %v3593, %v3579
    %v3625 = vpack.c.b16 %v3621, %v3607
    %v3646 = vunpack.c.l.b16 %v3478
    %v3647 = vunpack.c.h.b16 %v3478
    %v3648 = vunpack.c.l.b16 %v3479
    %v3649 = vunpack.c.h.b16 %v3479
    %v3650 = vunpack.c.l.b16 %v3480
    %v3651 = vunpack.c.h.b16 %v3480
    %v3652 = vunpack.c.l.b16 %v3481
    %v3653 = vunpack.c.h.b16 %v3481
    %v3654 = vunpack.c.l.b16 %v3482
    %v3655 = vunpack.c.h.b16 %v3482
    %v3656 = vunpack.c.l.b16 %v3483
    %v3657 = vunpack.c.h.b16 %v3483
    %v3658 = vunpack.c.l.b16 %v3484
    %v3659 = vunpack.c.h.b16 %v3484
    %v3660 = vunpack.c.l.b16 %v3485
    %v3661 = vunpack.c.h.b16 %v3485
    %v3662 = vunpack.c.l.b16 %v3486
    %v3663 = vunpack.c.h.b16 %v3486
    %v3664 = vunpack.c.l.b16 %v3487
    %v3665 = vunpack.c.h.b16 %v3487
    %v3666 = vunpack.c.l.b16 %v3488
    %v3667 = vunpack.c.h.b16 %v3488
    %v3668 = vunpack.c.l.b16 %v3489
    %v3669 = vunpack.c.h.b16 %v3489
    %v3670 = vunpack.c.l.b16 %v3490
    %v3671 = vunpack.c.h.b16 %v3490
    %v3672 = vunpack.c.l.b16 %v3491
    %v3673 = vunpack.c.h.b16 %v3491
    %v3674 = vunpack.c.l.b16 %v3492
    %v3675 = vunpack.c.h.b16 %v3492
    %v3676 = vunpack.c.l.b16 %v3493
    %v3677 = vunpack.c.h.b16 %v3493
    %v3678 = vpack.c.b16 %v3648, %v3646
    %v3679 = vpack.c.b16 %v3649, %v3647
    %v3680 = vpack.c.b16 %v3652, %v3650
    %v3681 = vpack.c.b16 %v3653, %v3651
    %v3682 = vpack.c.b16 %v3656, %v3654
    %v3683 = vpack.c.b16 %v3657, %v3655
    %v3684 = vpack.c.b16 %v3660, %v3658
    %v3685 = vpack.c.b16 %v3661, %v3659
    %v3686 = vpack.c.b16 %v3664, %v3662
    %v3687 = vpack.c.b16 %v3665, %v3663
    %v3688 = vpack.c.b16 %v3668, %v3666
    %v3689 = vpack.c.b16 %v3669, %v3667
    %v3690 = vpack.c.b16 %v3672, %v3670
    %v3691 = vpack.c.b16 %v3673, %v3671
    %v3692 = vpack.c.b16 %v3676, %v3674
    %v3693 = vpack.c.b16 %v3677, %v3675
    %3710 = vmatpush.bf16.msra.mxu0 %v3692
    %3711 = vmatpush.bf16.msra.mxu0 %v3690
    %3712 = vmatpush.bf16.msra.mxu0 %v3688
    %3713 = vmatpush.bf16.msra.mxu0 %v3686
    %3714 = vmatpush.bf16.msra.mxu0 %v3684
    %3715 = vmatpush.bf16.msra.mxu0 %v3682
    %3716 = vmatpush.bf16.msra.mxu0 %v3680
    %3717 = vmatpush.bf16.msra.mxu0 %v3678
    %3718 = vmatmul.bf16.gmra.mxu0 %v3622
    %v3719 = vpop.f32.mrf.mxu0
    %v3720 = vadd.f32 0.0, %v3719
    %v3721 = vpop.f32.mrf.mxu0
    %v3722 = vadd.f32 0.0, %v3721
    %3723 = vmatmul.bf16.gmra.mxu0 %v3623
    %v3724 = vpop.f32.mrf.mxu0
    %v3725 = vadd.f32 0.0, %v3724
    %v3726 = vpop.f32.mrf.mxu0
    %v3727 = vadd.f32 0.0, %v3726
    %3728 = vmatmul.bf16.gmra.mxu0 %v3624
    %v3729 = vpop.f32.mrf.mxu0
    %v3730 = vadd.f32 0.0, %v3729
    %v3731 = vpop.f32.mrf.mxu0
    %v3732 = vadd.f32 0.0, %v3731
    %3733 = vmatmul.bf16.gmra.mxu0 %v3625
    %v3734 = vpop.f32.mrf.mxu0
    %v3735 = vadd.f32 0.0, %v3734
    %v3736 = vpop.f32.mrf.mxu0
    %v3737 = vadd.f32 0.0, %v3736
    %3738 = vdwg.mxu0
    %3739 = vmatpush.bf16.msra.mxu0 %v3693
    %3740 = vmatpush.bf16.msra.mxu0 %v3691
    %3741 = vmatpush.bf16.msra.mxu0 %v3689
    %3742 = vmatpush.bf16.msra.mxu0 %v3687
    %3743 = vmatpush.bf16.msra.mxu0 %v3685
    %3744 = vmatpush.bf16.msra.mxu0 %v3683
    %3745 = vmatpush.bf16.msra.mxu0 %v3681
    %3746 = vmatpush.bf16.msra.mxu0 %v3679
    %3747 = vmatmul.bf16.gmra.mxu0 %v3622
    %v3748 = vpop.f32.mrf.mxu0
    %v3749 = vadd.f32 0.0, %v3748
    %v3750 = vpop.f32.mrf.mxu0
    %v3751 = vadd.f32 0.0, %v3750
    %3752 = vmatmul.bf16.gmra.mxu0 %v3623
    %v3753 = vpop.f32.mrf.mxu0
    %v3754 = vadd.f32 0.0, %v3753
    %v3755 = vpop.f32.mrf.mxu0
    %v3756 = vadd.f32 0.0, %v3755
    %3757 = vmatmul.bf16.gmra.mxu0 %v3624
    %v3758 = vpop.f32.mrf.mxu0
    %v3759 = vadd.f32 0.0, %v3758
    %v3760 = vpop.f32.mrf.mxu0
    %v3761 = vadd.f32 0.0, %v3760
    %3762 = vmatmul.bf16.gmra.mxu0 %v3625
    %v3763 = vpop.f32.mrf.mxu0
    %v3764 = vadd.f32 0.0, %v3763
    %v3765 = vpop.f32.mrf.mxu0
    %v3766 = vadd.f32 0.0, %v3765
    %3767 = vdwg.mxu0
    %v3768 = vadd.f32 %v3453, %v3720
    %v3769 = vadd.f32 %v3454, %v3749
    %v3770 = vadd.f32 %v3455, %v3722
    %v3771 = vadd.f32 %v3456, %v3751
    %v3772 = vadd.f32 %v3457, %v3725
    %v3773 = vadd.f32 %v3458, %v3754
    %v3774 = vadd.f32 %v3459, %v3727
    %v3775 = vadd.f32 %v3460, %v3756
    %v3776 = vadd.f32 %v3461, %v3730
    %v3777 = vadd.f32 %v3462, %v3759
    %v3778 = vadd.f32 %v3463, %v3732
    %v3779 = vadd.f32 %v3464, %v3761
    %v3780 = vadd.f32 %v3465, %v3735
    %v3781 = vadd.f32 %v3466, %v3764
    %v3782 = vadd.f32 %v3467, %v3737
    %v3783 = vadd.f32 %v3468, %v3766
    %v3784 = vpack.c.bf16 %v2297, %v2297
    %v3785 = vpack.c.bf16 %v2309, %v2309
    %v3786 = vpack.c.bf16 %v2321, %v2321
    %v3787 = vpack.c.bf16 %v2333, %v2333
    %v3788 = vpack.c.bf16 %v2345, %v2345
    %v3789 = vpack.c.bf16 %v2357, %v2357
    %v3790 = vpack.c.bf16 %v2369, %v2369
    %v3791 = vpack.c.bf16 %v2381, %v2381
    %s3792 = scalar_lea.vmem [#allocation2], 512
    %v3793 = vld [vmem:[%s3792] sm:$0xff]
    %v3794 = vld [vmem:[%s3792 + $0x8] sm:$0xff]
    %v3795 = vld [vmem:[%s3792 + $0x10] sm:$0xff]
    %v3796 = vld [vmem:[%s3792 + $0x18] sm:$0xff]
    %v3797 = vld [vmem:[%s3792 + $0x20] sm:$0xff]
    %v3798 = vld [vmem:[%s3792 + $0x28] sm:$0xff]
    %v3799 = vld [vmem:[%s3792 + $0x30] sm:$0xff]
    %v3800 = vld [vmem:[%s3792 + $0x38] sm:$0xff]
    %v3801 = vld [vmem:[%s3792 + $0x40] sm:$0xff]
    %v3802 = vld [vmem:[%s3792 + $0x48] sm:$0xff]
    %v3803 = vld [vmem:[%s3792 + $0x50] sm:$0xff]
    %v3804 = vld [vmem:[%s3792 + $0x58] sm:$0xff]
    %v3805 = vld [vmem:[%s3792 + $0x60] sm:$0xff]
    %v3806 = vld [vmem:[%s3792 + $0x68] sm:$0xff]
    %v3807 = vld [vmem:[%s3792 + $0x70] sm:$0xff]
    %v3808 = vld [vmem:[%s3792 + $0x78] sm:$0xff]
    %v3817 = vunpack.c.l.b16 %v3784
    %v3818 = vunpack.c.l.b16 %v3785
    %v3819 = vunpack.c.l.b16 %v3786
    %v3820 = vunpack.c.l.b16 %v3787
    %v3821 = vunpack.c.l.b16 %v3788
    %v3822 = vunpack.c.l.b16 %v3789
    %v3823 = vunpack.c.l.b16 %v3790
    %v3824 = vunpack.c.l.b16 %v3791
    %v3825 = vrot.slane %v2555, 7
    %v3826 = vsel %vm2616, %v3825, %v2554
    %v3827 = vrot.slane %v2556, 6
    %v3828 = vsel %vm2619, %v3827, %v3826
    %v3829 = vrot.slane %v2557, 5
    %v3830 = vsel %vm2622, %v3829, %v3828
    %v3831 = vrot.slane %v2558, 4
    %v3832 = vsel %vm2625, %v3831, %v3830
    %v3833 = vrot.slane %v3187, 3
    %v3834 = vsel %vm2628, %v3833, %v3832
    %v3835 = vrot.slane %v3502, 2
    %v3836 = vsel %vm2631, %v3835, %v3834
    %v3837 = vrot.slane %v3817, 1
    %v3838 = vsel %vm2634, %v3837, %v3836
    %v3839 = vrot.slane %v2563, 7
    %v3840 = vsel %vm2616, %v3839, %v2562
    %v3841 = vrot.slane %v2564, 6
    %v3842 = vsel %vm2619, %v3841, %v3840
    %v3843 = vrot.slane %v2565, 5
    %v3844 = vsel %vm2622, %v3843, %v3842
    %v3845 = vrot.slane %v2566, 4
    %v3846 = vsel %vm2625, %v3845, %v3844
    %v3847 = vrot.slane %v3188, 3
    %v3848 = vsel %vm2628, %v3847, %v3846
    %v3849 = vrot.slane %v3503, 2
    %v3850 = vsel %vm2631, %v3849, %v3848
    %v3851 = vrot.slane %v3818, 1
    %v3852 = vsel %vm2634, %v3851, %v3850
    %v3853 = vrot.slane %v2571, 7
    %v3854 = vsel %vm2616, %v3853, %v2570
    %v3855 = vrot.slane %v2572, 6
    %v3856 = vsel %vm2619, %v3855, %v3854
    %v3857 = vrot.slane %v2573, 5
    %v3858 = vsel %vm2622, %v3857, %v3856
    %v3859 = vrot.slane %v2574, 4
    %v3860 = vsel %vm2625, %v3859, %v3858
    %v3861 = vrot.slane %v3189, 3
    %v3862 = vsel %vm2628, %v3861, %v3860
    %v3863 = vrot.slane %v3504, 2
    %v3864 = vsel %vm2631, %v3863, %v3862
    %v3865 = vrot.slane %v3819, 1
    %v3866 = vsel %vm2634, %v3865, %v3864
    %v3867 = vrot.slane %v2579, 7
    %v3868 = vsel %vm2616, %v3867, %v2578
    %v3869 = vrot.slane %v2580, 6
    %v3870 = vsel %vm2619, %v3869, %v3868
    %v3871 = vrot.slane %v2581, 5
    %v3872 = vsel %vm2622, %v3871, %v3870
    %v3873 = vrot.slane %v2582, 4
    %v3874 = vsel %vm2625, %v3873, %v3872
    %v3875 = vrot.slane %v3190, 3
    %v3876 = vsel %vm2628, %v3875, %v3874
    %v3877 = vrot.slane %v3505, 2
    %v3878 = vsel %vm2631, %v3877, %v3876
    %v3879 = vrot.slane %v3820, 1
    %v3880 = vsel %vm2634, %v3879, %v3878
    %v3881 = vrot.slane %v2587, 7
    %v3882 = vsel %vm2616, %v3881, %v2586
    %v3883 = vrot.slane %v2588, 6
    %v3884 = vsel %vm2619, %v3883, %v3882
    %v3885 = vrot.slane %v2589, 5
    %v3886 = vsel %vm2622, %v3885, %v3884
    %v3887 = vrot.slane %v2590, 4
    %v3888 = vsel %vm2625, %v3887, %v3886
    %v3889 = vrot.slane %v3191, 3
    %v3890 = vsel %vm2628, %v3889, %v3888
    %v3891 = vrot.slane %v3506, 2
    %v3892 = vsel %vm2631, %v3891, %v3890
    %v3893 = vrot.slane %v3821, 1
    %v3894 = vsel %vm2634, %v3893, %v3892
    %v3895 = vrot.slane %v2595, 7
    %v3896 = vsel %vm2616, %v3895, %v2594
    %v3897 = vrot.slane %v2596, 6
    %v3898 = vsel %vm2619, %v3897, %v3896
    %v3899 = vrot.slane %v2597, 5
    %v3900 = vsel %vm2622, %v3899, %v3898
    %v3901 = vrot.slane %v2598, 4
    %v3902 = vsel %vm2625, %v3901, %v3900
    %v3903 = vrot.slane %v3192, 3
    %v3904 = vsel %vm2628, %v3903, %v3902
    %v3905 = vrot.slane %v3507, 2
    %v3906 = vsel %vm2631, %v3905, %v3904
    %v3907 = vrot.slane %v3822, 1
    %v3908 = vsel %vm2634, %v3907, %v3906
    %v3909 = vrot.slane %v2603, 7
    %v3910 = vsel %vm2616, %v3909, %v2602
    %v3911 = vrot.slane %v2604, 6
    %v3912 = vsel %vm2619, %v3911, %v3910
    %v3913 = vrot.slane %v2605, 5
    %v3914 = vsel %vm2622, %v3913, %v3912
    %v3915 = vrot.slane %v2606, 4
    %v3916 = vsel %vm2625, %v3915, %v3914
    %v3917 = vrot.slane %v3193, 3
    %v3918 = vsel %vm2628, %v3917, %v3916
    %v3919 = vrot.slane %v3508, 2
    %v3920 = vsel %vm2631, %v3919, %v3918
    %v3921 = vrot.slane %v3823, 1
    %v3922 = vsel %vm2634, %v3921, %v3920
    %v3923 = vrot.slane %v2611, 7
    %v3924 = vsel %vm2616, %v3923, %v2610
    %v3925 = vrot.slane %v2612, 6
    %v3926 = vsel %vm2619, %v3925, %v3924
    %v3927 = vrot.slane %v2613, 5
    %v3928 = vsel %vm2622, %v3927, %v3926
    %v3929 = vrot.slane %v2614, 4
    %v3930 = vsel %vm2625, %v3929, %v3928
    %v3931 = vrot.slane %v3194, 3
    %v3932 = vsel %vm2628, %v3931, %v3930
    %v3933 = vrot.slane %v3509, 2
    %v3934 = vsel %vm2631, %v3933, %v3932
    %v3935 = vrot.slane %v3824, 1
    %v3936 = vsel %vm2634, %v3935, %v3934
    %v3937 = vpack.c.b16 %v3852, %v3838
    %v3938 = vpack.c.b16 %v3880, %v3866
    %v3939 = vpack.c.b16 %v3908, %v3894
    %v3940 = vpack.c.b16 %v3936, %v3922
    %v3961 = vunpack.c.l.b16 %v3793
    %v3962 = vunpack.c.h.b16 %v3793
    %v3963 = vunpack.c.l.b16 %v3794
    %v3964 = vunpack.c.h.b16 %v3794
    %v3965 = vunpack.c.l.b16 %v3795
    %v3966 = vunpack.c.h.b16 %v3795
    %v3967 = vunpack.c.l.b16 %v3796
    %v3968 = vunpack.c.h.b16 %v3796
    %v3969 = vunpack.c.l.b16 %v3797
    %v3970 = vunpack.c.h.b16 %v3797
    %v3971 = vunpack.c.l.b16 %v3798
    %v3972 = vunpack.c.h.b16 %v3798
    %v3973 = vunpack.c.l.b16 %v3799
    %v3974 = vunpack.c.h.b16 %v3799
    %v3975 = vunpack.c.l.b16 %v3800
    %v3976 = vunpack.c.h.b16 %v3800
    %v3977 = vunpack.c.l.b16 %v3801
    %v3978 = vunpack.c.h.b16 %v3801
    %v3979 = vunpack.c.l.b16 %v3802
    %v3980 = vunpack.c.h.b16 %v3802
    %v3981 = vunpack.c.l.b16 %v3803
    %v3982 = vunpack.c.h.b16 %v3803
    %v3983 = vunpack.c.l.b16 %v3804
    %v3984 = vunpack.c.h.b16 %v3804
    %v3985 = vunpack.c.l.b16 %v3805
    %v3986 = vunpack.c.h.b16 %v3805
    %v3987 = vunpack.c.l.b16 %v3806
    %v3988 = vunpack.c.h.b16 %v3806
    %v3989 = vunpack.c.l.b16 %v3807
    %v3990 = vunpack.c.h.b16 %v3807
    %v3991 = vunpack.c.l.b16 %v3808
    %v3992 = vunpack.c.h.b16 %v3808
    %v3993 = vpack.c.b16 %v3963, %v3961
    %v3994 = vpack.c.b16 %v3964, %v3962
    %v3995 = vpack.c.b16 %v3967, %v3965
    %v3996 = vpack.c.b16 %v3968, %v3966
    %v3997 = vpack.c.b16 %v3971, %v3969
    %v3998 = vpack.c.b16 %v3972, %v3970
    %v3999 = vpack.c.b16 %v3975, %v3973
    %v4000 = vpack.c.b16 %v3976, %v3974
    %v4001 = vpack.c.b16 %v3979, %v3977
    %v4002 = vpack.c.b16 %v3980, %v3978
    %v4003 = vpack.c.b16 %v3983, %v3981
    %v4004 = vpack.c.b16 %v3984, %v3982
    %v4005 = vpack.c.b16 %v3987, %v3985
    %v4006 = vpack.c.b16 %v3988, %v3986
    %v4007 = vpack.c.b16 %v3991, %v3989
    %v4008 = vpack.c.b16 %v3992, %v3990
    %4025 = vmatpush.bf16.msra.mxu0 %v4007
    %4026 = vmatpush.bf16.msra.mxu0 %v4005
    %4027 = vmatpush.bf16.msra.mxu0 %v4003
    %4028 = vmatpush.bf16.msra.mxu0 %v4001
    %4029 = vmatpush.bf16.msra.mxu0 %v3999
    %4030 = vmatpush.bf16.msra.mxu0 %v3997
    %4031 = vmatpush.bf16.msra.mxu0 %v3995
    %4032 = vmatpush.bf16.msra.mxu0 %v3993
    %4033 = vmatmul.bf16.gmra.mxu0 %v3937
    %v4034 = vpop.f32.mrf.mxu0
    %v4035 = vadd.f32 0.0, %v4034
    %v4036 = vpop.f32.mrf.mxu0
    %v4037 = vadd.f32 0.0, %v4036
    %4038 = vmatmul.bf16.gmra.mxu0 %v3938
    %v4039 = vpop.f32.mrf.mxu0
    %v4040 = vadd.f32 0.0, %v4039
    %v4041 = vpop.f32.mrf.mxu0
    %v4042 = vadd.f32 0.0, %v4041
    %4043 = vmatmul.bf16.gmra.mxu0 %v3939
    %v4044 = vpop.f32.mrf.mxu0
    %v4045 = vadd.f32 0.0, %v4044
    %v4046 = vpop.f32.mrf.mxu0
    %v4047 = vadd.f32 0.0, %v4046
    %4048 = vmatmul.bf16.gmra.mxu0 %v3940
    %v4049 = vpop.f32.mrf.mxu0
    %v4050 = vadd.f32 0.0, %v4049
    %v4051 = vpop.f32.mrf.mxu0
    %v4052 = vadd.f32 0.0, %v4051
    %4053 = vdwg.mxu0
    %4054 = vmatpush.bf16.msra.mxu0 %v4008
    %4055 = vmatpush.bf16.msra.mxu0 %v4006
    %4056 = vmatpush.bf16.msra.mxu0 %v4004
    %4057 = vmatpush.bf16.msra.mxu0 %v4002
    %4058 = vmatpush.bf16.msra.mxu0 %v4000
    %4059 = vmatpush.bf16.msra.mxu0 %v3998
    %4060 = vmatpush.bf16.msra.mxu0 %v3996
    %4061 = vmatpush.bf16.msra.mxu0 %v3994
    %4062 = vmatmul.bf16.gmra.mxu0 %v3937
    %v4063 = vpop.f32.mrf.mxu0
    %v4064 = vadd.f32 0.0, %v4063
    %v4065 = vpop.f32.mrf.mxu0
    %v4066 = vadd.f32 0.0, %v4065
    %4067 = vmatmul.bf16.gmra.mxu0 %v3938
    %v4068 = vpop.f32.mrf.mxu0
    %v4069 = vadd.f32 0.0, %v4068
    %v4070 = vpop.f32.mrf.mxu0
    %v4071 = vadd.f32 0.0, %v4070
    %4072 = vmatmul.bf16.gmra.mxu0 %v3939
    %v4073 = vpop.f32.mrf.mxu0
    %v4074 = vadd.f32 0.0, %v4073
    %v4075 = vpop.f32.mrf.mxu0
    %v4076 = vadd.f32 0.0, %v4075
    %4077 = vmatmul.bf16.gmra.mxu0 %v3940
    %v4078 = vpop.f32.mrf.mxu0
    %v4079 = vadd.f32 0.0, %v4078
    %v4080 = vpop.f32.mrf.mxu0
    %v4081 = vadd.f32 0.0, %v4080
    %4082 = vdwg.mxu0
    %v4083 = vadd.f32 %v3768, %v4035
    %v4084 = vadd.f32 %v3769, %v4064
    %v4085 = vadd.f32 %v3770, %v4037
    %v4086 = vadd.f32 %v3771, %v4066
    %v4087 = vadd.f32 %v3772, %v4040
    %v4088 = vadd.f32 %v3773, %v4069
    %v4089 = vadd.f32 %v3774, %v4042
    %v4090 = vadd.f32 %v3775, %v4071
    %v4091 = vadd.f32 %v3776, %v4045
    %v4092 = vadd.f32 %v3777, %v4074
    %v4093 = vadd.f32 %v3778, %v4047
    %v4094 = vadd.f32 %v3779, %v4076
    %v4095 = vadd.f32 %v3780, %v4050
    %v4096 = vadd.f32 %v3781, %v4079
    %v4097 = vadd.f32 %v3782, %v4052
    %v4098 = vadd.f32 %v3783, %v4081
    %v4099 = vld [vmem:[%s4] sm:$0x3]
    %v4101 = vperm.slane %v4099, 0
    %v4102 = vperm.slane %v4099, 1
    %v4105 = vadd.f32 %v4083, %v4101
    %v4106 = vadd.f32 %v4084, %v4102
    %v4107 = vadd.f32 %v4085, %v4101
    %v4108 = vadd.f32 %v4086, %v4102
    %v4109 = vadd.f32 %v4087, %v4101
    %v4110 = vadd.f32 %v4088, %v4102
    %v4111 = vadd.f32 %v4089, %v4101
    %v4112 = vadd.f32 %v4090, %v4102
    %v4113 = vadd.f32 %v4091, %v4101
    %v4114 = vadd.f32 %v4092, %v4102
    %v4115 = vadd.f32 %v4093, %v4101
    %v4116 = vadd.f32 %v4094, %v4102
    %v4117 = vadd.f32 %v4095, %v4101
    %v4118 = vadd.f32 %v4096, %v4102
    %v4119 = vadd.f32 %v4097, %v4101
    %v4120 = vadd.f32 %v4098, %v4102
    %v4121 = vmax.f32 %v4105, 0.0
    %v4122 = vmax.f32 %v4106, 0.0
    %v4123 = vmax.f32 %v4107, 0.0
    %v4124 = vmax.f32 %v4108, 0.0
    %v4125 = vmax.f32 %v4109, 0.0
    %v4126 = vmax.f32 %v4110, 0.0
    %v4127 = vmax.f32 %v4111, 0.0
    %v4128 = vmax.f32 %v4112, 0.0
    %v4129 = vmax.f32 %v4113, 0.0
    %v4130 = vmax.f32 %v4114, 0.0
    %v4131 = vmax.f32 %v4115, 0.0
    %v4132 = vmax.f32 %v4116, 0.0
    %v4133 = vmax.f32 %v4117, 0.0
    %v4134 = vmax.f32 %v4118, 0.0
    %v4135 = vmax.f32 %v4119, 0.0
    %v4136 = vmax.f32 %v4120, 0.0
    %v4137 = vmax.f32 %v4121, %v4122
    %v4138 = vmax.f32 %v4123, %v4124
    %v4139 = vmax.f32 %v4125, %v4126
    %v4140 = vmax.f32 %v4127, %v4128
    %v4141 = vmax.f32 %v4129, %v4130
    %v4142 = vmax.f32 %v4131, %v4132
    %v4143 = vmax.f32 %v4133, %v4134
    %v4144 = vmax.f32 %v4135, %v4136
    %v4153 = vrot.slane %v4137, 2
    %v4154 = vrot.slane %v4137, 4
    %v4155 = vrot.slane %v4137, 6
    %v4156 = vrot.slane %v4138, 2
    %v4157 = vrot.slane %v4138, 4
    %v4158 = vrot.slane %v4138, 6
    %v4159 = vrot.slane %v4139, 2
    %v4160 = vrot.slane %v4139, 4
    %v4161 = vrot.slane %v4139, 6
    %v4162 = vrot.slane %v4140, 2
    %v4163 = vrot.slane %v4140, 4
    %v4164 = vrot.slane %v4140, 6
    %v4165 = vrot.slane %v4141, 2
    %v4166 = vrot.slane %v4141, 4
    %v4167 = vrot.slane %v4141, 6
    %v4168 = vrot.slane %v4142, 2
    %v4169 = vrot.slane %v4142, 4
    %v4170 = vrot.slane %v4142, 6
    %v4171 = vrot.slane %v4143, 2
    %v4172 = vrot.slane %v4143, 4
    %v4173 = vrot.slane %v4143, 6
    %v4174 = vrot.slane %v4144, 2
    %v4175 = vrot.slane %v4144, 4
    %v4176 = vrot.slane %v4144, 6
    %v4201 = vrot.slane %v4137, 7
    %v4202 = vrot.slane %v4201, 2
    %v4203 = vrot.slane %v4153, 7
    %v4204 = vrot.slane %v4203, 2
    %v4205 = vrot.slane %v4154, 7
    %v4206 = vrot.slane %v4205, 2
    %v4207 = vrot.slane %v4155, 7
    %v4208 = vrot.slane %v4207, 2
    %v4209 = vrot.slane %v4138, 7
    %v4210 = vrot.slane %v4209, 2
    %v4211 = vrot.slane %v4156, 7
    %v4212 = vrot.slane %v4211, 2
    %v4213 = vrot.slane %v4157, 7
    %v4214 = vrot.slane %v4213, 2
    %v4215 = vrot.slane %v4158, 7
    %v4216 = vrot.slane %v4215, 2
    %v4217 = vrot.slane %v4139, 7
    %v4218 = vrot.slane %v4217, 2
    %v4219 = vrot.slane %v4159, 7
    %v4220 = vrot.slane %v4219, 2
    %v4221 = vrot.slane %v4160, 7
    %v4222 = vrot.slane %v4221, 2
    %v4223 = vrot.slane %v4161, 7
    %v4224 = vrot.slane %v4223, 2
    %v4225 = vrot.slane %v4140, 7
    %v4226 = vrot.slane %v4225, 2
    %v4227 = vrot.slane %v4162, 7
    %v4228 = vrot.slane %v4227, 2
    %v4229 = vrot.slane %v4163, 7
    %v4230 = vrot.slane %v4229, 2
    %v4231 = vrot.slane %v4164, 7
    %v4232 = vrot.slane %v4231, 2
    %v4233 = vrot.slane %v4141, 7
    %v4234 = vrot.slane %v4233, 2
    %v4235 = vrot.slane %v4165, 7
    %v4236 = vrot.slane %v4235, 2
    %v4237 = vrot.slane %v4166, 7
    %v4238 = vrot.slane %v4237, 2
    %v4239 = vrot.slane %v4167, 7
    %v4240 = vrot.slane %v4239, 2
    %v4241 = vrot.slane %v4142, 7
    %v4242 = vrot.slane %v4241, 2
    %v4243 = vrot.slane %v4168, 7
    %v4244 = vrot.slane %v4243, 2
    %v4245 = vrot.slane %v4169, 7
    %v4246 = vrot.slane %v4245, 2
    %v4247 = vrot.slane %v4170, 7
    %v4248 = vrot.slane %v4247, 2
    %v4249 = vrot.slane %v4143, 7
    %v4250 = vrot.slane %v4249, 2
    %v4251 = vrot.slane %v4171, 7
    %v4252 = vrot.slane %v4251, 2
    %v4253 = vrot.slane %v4172, 7
    %v4254 = vrot.slane %v4253, 2
    %v4255 = vrot.slane %v4173, 7
    %v4256 = vrot.slane %v4255, 2
    %v4257 = vrot.slane %v4144, 7
    %v4258 = vrot.slane %v4257, 2
    %v4259 = vrot.slane %v4174, 7
    %v4260 = vrot.slane %v4259, 2
    %v4261 = vrot.slane %v4175, 7
    %v4262 = vrot.slane %v4261, 2
    %v4263 = vrot.slane %v4176, 7
    %v4264 = vrot.slane %v4263, 2
    %v4297 = vmax.f32 %v4137, %v4202
    %v4298 = vmax.f32 %v4153, %v4204
    %v4299 = vmax.f32 %v4154, %v4206
    %v4300 = vmax.f32 %v4155, %v4208
    %v4301 = vmax.f32 %v4138, %v4210
    %v4302 = vmax.f32 %v4156, %v4212
    %v4303 = vmax.f32 %v4157, %v4214
    %v4304 = vmax.f32 %v4158, %v4216
    %v4305 = vmax.f32 %v4139, %v4218
    %v4306 = vmax.f32 %v4159, %v4220
    %v4307 = vmax.f32 %v4160, %v4222
    %v4308 = vmax.f32 %v4161, %v4224
    %v4309 = vmax.f32 %v4140, %v4226
    %v4310 = vmax.f32 %v4162, %v4228
    %v4311 = vmax.f32 %v4163, %v4230
    %v4312 = vmax.f32 %v4164, %v4232
    %v4313 = vmax.f32 %v4141, %v4234
    %v4314 = vmax.f32 %v4165, %v4236
    %v4315 = vmax.f32 %v4166, %v4238
    %v4316 = vmax.f32 %v4167, %v4240
    %v4317 = vmax.f32 %v4142, %v4242
    %v4318 = vmax.f32 %v4168, %v4244
    %v4319 = vmax.f32 %v4169, %v4246
    %v4320 = vmax.f32 %v4170, %v4248
    %v4321 = vmax.f32 %v4143, %v4250
    %v4322 = vmax.f32 %v4171, %v4252
    %v4323 = vmax.f32 %v4172, %v4254
    %v4324 = vmax.f32 %v4173, %v4256
    %v4325 = vmax.f32 %v4144, %v4258
    %v4326 = vmax.f32 %v4174, %v4260
    %v4327 = vmax.f32 %v4175, %v4262
    %v4328 = vmax.f32 %v4176, %v4264
    %v4329 = vpack.c.bf16 %v4297, %v4297
    %v4330 = vpack.c.bf16 %v4301, %v4301
    %v4331 = vpack.c.bf16 %v4305, %v4305
    %v4332 = vpack.c.bf16 %v4309, %v4309
    %v4333 = vpack.c.bf16 %v4313, %v4313
    %v4334 = vpack.c.bf16 %v4317, %v4317
    %v4335 = vpack.c.bf16 %v4321, %v4321
    %v4336 = vpack.c.bf16 %v4325, %v4325
    %v4337 = vld [vmem:[#allocation4] sm:$0xf]
    %v4338 = vld [vmem:[#allocation4 + $0x4] sm:$0xf]
    %v4339 = vld [vmem:[#allocation4 + $0x8] sm:$0xf]
    %v4340 = vld [vmem:[#allocation4 + $0xc] sm:$0xf]
    %v4341 = vld [vmem:[#allocation4 + $0x10] sm:$0xf]
    %v4342 = vld [vmem:[#allocation4 + $0x14] sm:$0xf]
    %v4343 = vld [vmem:[#allocation4 + $0x18] sm:$0xf]
    %v4344 = vld [vmem:[#allocation4 + $0x1c] sm:$0xf]
    %v4345 = vld [vmem:[#allocation4 + $0x20] sm:$0xf]
    %v4346 = vld [vmem:[#allocation4 + $0x24] sm:$0xf]
    %v4347 = vld [vmem:[#allocation4 + $0x28] sm:$0xf]
    %v4348 = vld [vmem:[#allocation4 + $0x2c] sm:$0xf]
    %v4349 = vld [vmem:[#allocation4 + $0x30] sm:$0xf]
    %v4350 = vld [vmem:[#allocation4 + $0x34] sm:$0xf]
    %v4351 = vld [vmem:[#allocation4 + $0x38] sm:$0xf]
    %v4352 = vld [vmem:[#allocation4 + $0x3c] sm:$0xf]
    %v4353 = vpack.c.bf16 %v4298, %v4298
    %v4354 = vpack.c.bf16 %v4302, %v4302
    %v4355 = vpack.c.bf16 %v4306, %v4306
    %v4356 = vpack.c.bf16 %v4310, %v4310
    %v4357 = vpack.c.bf16 %v4314, %v4314
    %v4358 = vpack.c.bf16 %v4318, %v4318
    %v4359 = vpack.c.bf16 %v4322, %v4322
    %v4360 = vpack.c.bf16 %v4326, %v4326
    %s4361 = scalar_lea.vmem [#allocation4], 64
    %v4362 = vld [vmem:[%s4361] sm:$0xf]
    %v4363 = vld [vmem:[%s4361 + $0x4] sm:$0xf]
    %v4364 = vld [vmem:[%s4361 + $0x8] sm:$0xf]
    %v4365 = vld [vmem:[%s4361 + $0xc] sm:$0xf]
    %v4366 = vld [vmem:[%s4361 + $0x10] sm:$0xf]
    %v4367 = vld [vmem:[%s4361 + $0x14] sm:$0xf]
    %v4368 = vld [vmem:[%s4361 + $0x18] sm:$0xf]
    %v4369 = vld [vmem:[%s4361 + $0x1c] sm:$0xf]
    %v4370 = vld [vmem:[%s4361 + $0x20] sm:$0xf]
    %v4371 = vld [vmem:[%s4361 + $0x24] sm:$0xf]
    %v4372 = vld [vmem:[%s4361 + $0x28] sm:$0xf]
    %v4373 = vld [vmem:[%s4361 + $0x2c] sm:$0xf]
    %v4374 = vld [vmem:[%s4361 + $0x30] sm:$0xf]
    %v4375 = vld [vmem:[%s4361 + $0x34] sm:$0xf]
    %v4376 = vld [vmem:[%s4361 + $0x38] sm:$0xf]
    %v4377 = vld [vmem:[%s4361 + $0x3c] sm:$0xf]
    %v4386 = vunpack.c.l.b16 %v4353
    %v4387 = vunpack.c.l.b16 %v4354
    %v4388 = vunpack.c.l.b16 %v4355
    %v4389 = vunpack.c.l.b16 %v4356
    %v4390 = vunpack.c.l.b16 %v4357
    %v4391 = vunpack.c.l.b16 %v4358
    %v4392 = vunpack.c.l.b16 %v4359
    %v4393 = vunpack.c.l.b16 %v4360
    %v4394 = vrot.slane %v4387, 7
    %v4395 = vsel %vm2616, %v4394, %v4386
    %v4396 = vrot.slane %v4388, 6
    %v4397 = vsel %vm2619, %v4396, %v4395
    %v4398 = vrot.slane %v4389, 5
    %v4399 = vsel %vm2622, %v4398, %v4397
    %v4400 = vrot.slane %v4390, 4
    %v4401 = vsel %vm2625, %v4400, %v4399
    %v4402 = vrot.slane %v4391, 3
    %v4403 = vsel %vm2628, %v4402, %v4401
    %v4404 = vrot.slane %v4392, 2
    %v4405 = vsel %vm2631, %v4404, %v4403
    %v4406 = vrot.slane %v4393, 1
    %v4407 = vsel %vm2634, %v4406, %v4405
    %v4408 = vpack.c.b16 %v4407, %v4407
    %v4426 = vunpack.c.l.b16 %v4362
    %v4427 = vunpack.c.l.b16 %v4363
    %v4428 = vunpack.c.l.b16 %v4364
    %v4429 = vunpack.c.l.b16 %v4365
    %v4430 = vunpack.c.l.b16 %v4366
    %v4431 = vunpack.c.l.b16 %v4367
    %v4432 = vunpack.c.l.b16 %v4368
    %v4433 = vunpack.c.l.b16 %v4369
    %v4434 = vunpack.c.l.b16 %v4370
    %v4435 = vunpack.c.l.b16 %v4371
    %v4436 = vunpack.c.l.b16 %v4372
    %v4437 = vunpack.c.l.b16 %v4373
    %v4438 = vunpack.c.l.b16 %v4374
    %v4439 = vunpack.c.l.b16 %v4375
    %v4440 = vunpack.c.l.b16 %v4376
    %v4441 = vunpack.c.l.b16 %v4377
    %v4442 = vpack.c.b16 %v4427, %v4426
    %v4443 = vpack.c.b16 %v4429, %v4428
    %v4444 = vpack.c.b16 %v4431, %v4430
    %v4445 = vpack.c.b16 %v4433, %v4432
    %v4446 = vpack.c.b16 %v4435, %v4434
    %v4447 = vpack.c.b16 %v4437, %v4436
    %v4448 = vpack.c.b16 %v4439, %v4438
    %v4449 = vpack.c.b16 %v4441, %v4440
    %4458 = vmatpush.bf16.msra.mxu0 %v4449
    %4459 = vmatpush.bf16.msra.mxu0 %v4448
    %4460 = vmatpush.bf16.msra.mxu0 %v4447
    %4461 = vmatpush.bf16.msra.mxu0 %v4446
    %4462 = vmatpush.bf16.msra.mxu0 %v4445
    %4463 = vmatpush.bf16.msra.mxu0 %v4444
    %4464 = vmatpush.bf16.msra.mxu0 %v4443
    %4465 = vmatpush.bf16.msra.mxu0 %v4442
    %4466 = vmatmul.bf16.gmra.mxu0 %v4408
    %v4467 = vpop.f32.mrf.mxu0
    %v4468 = vadd.f32 0.0, %v4467
    %v4469 = vpop.f32.mrf.mxu0
    %4470 = vdwg.mxu0
    %v4479 = vunpack.c.l.b16 %v4329
    %v4480 = vunpack.c.l.b16 %v4330
    %v4481 = vunpack.c.l.b16 %v4331
    %v4482 = vunpack.c.l.b16 %v4332
    %v4483 = vunpack.c.l.b16 %v4333
    %v4484 = vunpack.c.l.b16 %v4334
    %v4485 = vunpack.c.l.b16 %v4335
    %v4486 = vunpack.c.l.b16 %v4336
    %v4487 = vrot.slane %v4480, 7
    %v4488 = vsel %vm2616, %v4487, %v4479
    %v4489 = vrot.slane %v4481, 6
    %v4490 = vsel %vm2619, %v4489, %v4488
    %v4491 = vrot.slane %v4482, 5
    %v4492 = vsel %vm2622, %v4491, %v4490
    %v4493 = vrot.slane %v4483, 4
    %v4494 = vsel %vm2625, %v4493, %v4492
    %v4495 = vrot.slane %v4484, 3
    %v4496 = vsel %vm2628, %v4495, %v4494
    %v4497 = vrot.slane %v4485, 2
    %v4498 = vsel %vm2631, %v4497, %v4496
    %v4499 = vrot.slane %v4486, 1
    %v4500 = vsel %vm2634, %v4499, %v4498
    %v4501 = vpack.c.b16 %v4500, %v4500
    %v4519 = vunpack.c.l.b16 %v4337
    %v4520 = vunpack.c.l.b16 %v4338
    %v4521 = vunpack.c.l.b16 %v4339
    %v4522 = vunpack.c.l.b16 %v4340
    %v4523 = vunpack.c.l.b16 %v4341
    %v4524 = vunpack.c.l.b16 %v4342
    %v4525 = vunpack.c.l.b16 %v4343
    %v4526 = vunpack.c.l.b16 %v4344
    %v4527 = vunpack.c.l.b16 %v4345
    %v4528 = vunpack.c.l.b16 %v4346
    %v4529 = vunpack.c.l.b16 %v4347
    %v4530 = vunpack.c.l.b16 %v4348
    %v4531 = vunpack.c.l.b16 %v4349
    %v4532 = vunpack.c.l.b16 %v4350
    %v4533 = vunpack.c.l.b16 %v4351
    %v4534 = vunpack.c.l.b16 %v4352
    %v4535 = vpack.c.b16 %v4520, %v4519
    %v4536 = vpack.c.b16 %v4522, %v4521
    %v4537 = vpack.c.b16 %v4524, %v4523
    %v4538 = vpack.c.b16 %v4526, %v4525
    %v4539 = vpack.c.b16 %v4528, %v4527
    %v4540 = vpack.c.b16 %v4530, %v4529
    %v4541 = vpack.c.b16 %v4532, %v4531
    %v4542 = vpack.c.b16 %v4534, %v4533
    %4551 = vmatpush.bf16.msra.mxu0 %v4542
    %4552 = vmatpush.bf16.msra.mxu0 %v4541
    %4553 = vmatpush.bf16.msra.mxu0 %v4540
    %4554 = vmatpush.bf16.msra.mxu0 %v4539
    %4555 = vmatpush.bf16.msra.mxu0 %v4538
    %4556 = vmatpush.bf16.msra.mxu0 %v4537
    %4557 = vmatpush.bf16.msra.mxu0 %v4536
    %4558 = vmatpush.bf16.msra.mxu0 %v4535
    %4559 = vmatmul.bf16.gmra.mxu0 %v4501
    %v4560 = vpop.f32.mrf.mxu0
    %v4561 = vadd.f32 %v4468, %v4560
    %v4562 = vpop.f32.mrf.mxu0
    %4563 = vdwg.mxu0
    %v4564 = vpack.c.bf16 %v4299, %v4299
    %v4565 = vpack.c.bf16 %v4303, %v4303
    %v4566 = vpack.c.bf16 %v4307, %v4307
    %v4567 = vpack.c.bf16 %v4311, %v4311
    %v4568 = vpack.c.bf16 %v4315, %v4315
    %v4569 = vpack.c.bf16 %v4319, %v4319
    %v4570 = vpack.c.bf16 %v4323, %v4323
    %v4571 = vpack.c.bf16 %v4327, %v4327
    %s4572 = scalar_lea.vmem [#allocation4], 128
    %v4573 = vld [vmem:[%s4572] sm:$0xf]
    %v4574 = vld [vmem:[%s4572 + $0x4] sm:$0xf]
    %v4575 = vld [vmem:[%s4572 + $0x8] sm:$0xf]
    %v4576 = vld [vmem:[%s4572 + $0xc] sm:$0xf]
    %v4577 = vld [vmem:[%s4572 + $0x10] sm:$0xf]
    %v4578 = vld [vmem:[%s4572 + $0x14] sm:$0xf]
    %v4579 = vld [vmem:[%s4572 + $0x18] sm:$0xf]
    %v4580 = vld [vmem:[%s4572 + $0x1c] sm:$0xf]
    %v4581 = vld [vmem:[%s4572 + $0x20] sm:$0xf]
    %v4582 = vld [vmem:[%s4572 + $0x24] sm:$0xf]
    %v4583 = vld [vmem:[%s4572 + $0x28] sm:$0xf]
    %v4584 = vld [vmem:[%s4572 + $0x2c] sm:$0xf]
    %v4585 = vld [vmem:[%s4572 + $0x30] sm:$0xf]
    %v4586 = vld [vmem:[%s4572 + $0x34] sm:$0xf]
    %v4587 = vld [vmem:[%s4572 + $0x38] sm:$0xf]
    %v4588 = vld [vmem:[%s4572 + $0x3c] sm:$0xf]
    %v4597 = vunpack.c.l.b16 %v4564
    %v4598 = vunpack.c.l.b16 %v4565
    %v4599 = vunpack.c.l.b16 %v4566
    %v4600 = vunpack.c.l.b16 %v4567
    %v4601 = vunpack.c.l.b16 %v4568
    %v4602 = vunpack.c.l.b16 %v4569
    %v4603 = vunpack.c.l.b16 %v4570
    %v4604 = vunpack.c.l.b16 %v4571
    %v4605 = vrot.slane %v4598, 7
    %v4606 = vsel %vm2616, %v4605, %v4597
    %v4607 = vrot.slane %v4599, 6
    %v4608 = vsel %vm2619, %v4607, %v4606
    %v4609 = vrot.slane %v4600, 5
    %v4610 = vsel %vm2622, %v4609, %v4608
    %v4611 = vrot.slane %v4601, 4
    %v4612 = vsel %vm2625, %v4611, %v4610
    %v4613 = vrot.slane %v4602, 3
    %v4614 = vsel %vm2628, %v4613, %v4612
    %v4615 = vrot.slane %v4603, 2
    %v4616 = vsel %vm2631, %v4615, %v4614
    %v4617 = vrot.slane %v4604, 1
    %v4618 = vsel %vm2634, %v4617, %v4616
    %v4619 = vpack.c.b16 %v4618, %v4618
    %v4637 = vunpack.c.l.b16 %v4573
    %v4638 = vunpack.c.l.b16 %v4574
    %v4639 = vunpack.c.l.b16 %v4575
    %v4640 = vunpack.c.l.b16 %v4576
    %v4641 = vunpack.c.l.b16 %v4577
    %v4642 = vunpack.c.l.b16 %v4578
    %v4643 = vunpack.c.l.b16 %v4579
    %v4644 = vunpack.c.l.b16 %v4580
    %v4645 = vunpack.c.l.b16 %v4581
    %v4646 = vunpack.c.l.b16 %v4582
    %v4647 = vunpack.c.l.b16 %v4583
    %v4648 = vunpack.c.l.b16 %v4584
    %v4649 = vunpack.c.l.b16 %v4585
    %v4650 = vunpack.c.l.b16 %v4586
    %v4651 = vunpack.c.l.b16 %v4587
    %v4652 = vunpack.c.l.b16 %v4588
    %v4653 = vpack.c.b16 %v4638, %v4637
    %v4654 = vpack.c.b16 %v4640, %v4639
    %v4655 = vpack.c.b16 %v4642, %v4641
    %v4656 = vpack.c.b16 %v4644, %v4643
    %v4657 = vpack.c.b16 %v4646, %v4645
    %v4658 = vpack.c.b16 %v4648, %v4647
    %v4659 = vpack.c.b16 %v4650, %v4649
    %v4660 = vpack.c.b16 %v4652, %v4651
    %4669 = vmatpush.bf16.msra.mxu0 %v4660
    %4670 = vmatpush.bf16.msra.mxu0 %v4659
    %4671 = vmatpush.bf16.msra.mxu0 %v4658
    %4672 = vmatpush.bf16.msra.mxu0 %v4657
    %4673 = vmatpush.bf16.msra.mxu0 %v4656
    %4674 = vmatpush.bf16.msra.mxu0 %v4655
    %4675 = vmatpush.bf16.msra.mxu0 %v4654
    %4676 = vmatpush.bf16.msra.mxu0 %v4653
    %4677 = vmatmul.bf16.gmra.mxu0 %v4619
    %v4678 = vpop.f32.mrf.mxu0
    %v4679 = vadd.f32 0.0, %v4678
    %v4680 = vpop.f32.mrf.mxu0
    %4681 = vdwg.mxu0
    %v4682 = vadd.f32 %v4561, %v4679
    %v4683 = vpack.c.bf16 %v4300, %v4300
    %v4684 = vpack.c.bf16 %v4304, %v4304
    %v4685 = vpack.c.bf16 %v4308, %v4308
    %v4686 = vpack.c.bf16 %v4312, %v4312
    %v4687 = vpack.c.bf16 %v4316, %v4316
    %v4688 = vpack.c.bf16 %v4320, %v4320
    %v4689 = vpack.c.bf16 %v4324, %v4324
    %v4690 = vpack.c.bf16 %v4328, %v4328
    %s4691 = scalar_lea.vmem [#allocation4], 192
    %v4692 = vld [vmem:[%s4691] sm:$0xf]
    %v4693 = vld [vmem:[%s4691 + $0x4] sm:$0xf]
    %v4694 = vld [vmem:[%s4691 + $0x8] sm:$0xf]
    %v4695 = vld [vmem:[%s4691 + $0xc] sm:$0xf]
    %v4696 = vld [vmem:[%s4691 + $0x10] sm:$0xf]
    %v4697 = vld [vmem:[%s4691 + $0x14] sm:$0xf]
    %v4698 = vld [vmem:[%s4691 + $0x18] sm:$0xf]
    %v4699 = vld [vmem:[%s4691 + $0x1c] sm:$0xf]
    %v4700 = vld [vmem:[%s4691 + $0x20] sm:$0xf]
    %v4701 = vld [vmem:[%s4691 + $0x24] sm:$0xf]
    %v4702 = vld [vmem:[%s4691 + $0x28] sm:$0xf]
    %v4703 = vld [vmem:[%s4691 + $0x2c] sm:$0xf]
    %v4704 = vld [vmem:[%s4691 + $0x30] sm:$0xf]
    %v4705 = vld [vmem:[%s4691 + $0x34] sm:$0xf]
    %v4706 = vld [vmem:[%s4691 + $0x38] sm:$0xf]
    %v4707 = vld [vmem:[%s4691 + $0x3c] sm:$0xf]
    %v4716 = vunpack.c.l.b16 %v4683
    %v4717 = vunpack.c.l.b16 %v4684
    %v4718 = vunpack.c.l.b16 %v4685
    %v4719 = vunpack.c.l.b16 %v4686
    %v4720 = vunpack.c.l.b16 %v4687
    %v4721 = vunpack.c.l.b16 %v4688
    %v4722 = vunpack.c.l.b16 %v4689
    %v4723 = vunpack.c.l.b16 %v4690
    %v4724 = vrot.slane %v4717, 7
    %v4725 = vsel %vm2616, %v4724, %v4716
    %v4726 = vrot.slane %v4718, 6
    %v4727 = vsel %vm2619, %v4726, %v4725
    %v4728 = vrot.slane %v4719, 5
    %v4729 = vsel %vm2622, %v4728, %v4727
    %v4730 = vrot.slane %v4720, 4
    %v4731 = vsel %vm2625, %v4730, %v4729
    %v4732 = vrot.slane %v4721, 3
    %v4733 = vsel %vm2628, %v4732, %v4731
    %v4734 = vrot.slane %v4722, 2
    %v4735 = vsel %vm2631, %v4734, %v4733
    %v4736 = vrot.slane %v4723, 1
    %v4737 = vsel %vm2634, %v4736, %v4735
    %v4738 = vpack.c.b16 %v4737, %v4737
    %v4756 = vunpack.c.l.b16 %v4692
    %v4757 = vunpack.c.l.b16 %v4693
    %v4758 = vunpack.c.l.b16 %v4694
    %v4759 = vunpack.c.l.b16 %v4695
    %v4760 = vunpack.c.l.b16 %v4696
    %v4761 = vunpack.c.l.b16 %v4697
    %v4762 = vunpack.c.l.b16 %v4698
    %v4763 = vunpack.c.l.b16 %v4699
    %v4764 = vunpack.c.l.b16 %v4700
    %v4765 = vunpack.c.l.b16 %v4701
    %v4766 = vunpack.c.l.b16 %v4702
    %v4767 = vunpack.c.l.b16 %v4703
    %v4768 = vunpack.c.l.b16 %v4704
    %v4769 = vunpack.c.l.b16 %v4705
    %v4770 = vunpack.c.l.b16 %v4706
    %v4771 = vunpack.c.l.b16 %v4707
    %v4772 = vpack.c.b16 %v4757, %v4756
    %v4773 = vpack.c.b16 %v4759, %v4758
    %v4774 = vpack.c.b16 %v4761, %v4760
    %v4775 = vpack.c.b16 %v4763, %v4762
    %v4776 = vpack.c.b16 %v4765, %v4764
    %v4777 = vpack.c.b16 %v4767, %v4766
    %v4778 = vpack.c.b16 %v4769, %v4768
    %v4779 = vpack.c.b16 %v4771, %v4770
    %4788 = vmatpush.bf16.msra.mxu0 %v4779
    %4789 = vmatpush.bf16.msra.mxu0 %v4778
    %4790 = vmatpush.bf16.msra.mxu0 %v4777
    %4791 = vmatpush.bf16.msra.mxu0 %v4776
    %4792 = vmatpush.bf16.msra.mxu0 %v4775
    %4793 = vmatpush.bf16.msra.mxu0 %v4774
    %4794 = vmatpush.bf16.msra.mxu0 %v4773
    %4795 = vmatpush.bf16.msra.mxu0 %v4772
    %4796 = vmatmul.bf16.gmra.mxu0 %v4738
    %v4797 = vpop.f32.mrf.mxu0
    %v4798 = vadd.f32 0.0, %v4797
    %v4799 = vpop.f32.mrf.mxu0
    %4800 = vdwg.mxu0
    %v4801 = vadd.f32 %v4682, %v4798
    %v4802 = vld [vmem:[%s6] sm:$0x1]
    %v4804 = vperm.slane %v4802, 0
    %v4806 = vadd.f32 %v4801, %v4804
    %v4807 = vmax.f32 %v4806, 0.0
    %v4808 = vpack.c.bf16 %v4807, %v4807
    %v4809 = vld [vmem:[%s7] sm:$0xf]
    %v4810 = vld [vmem:[%s7 + $0x4] sm:$0xf]
    %v4811 = vld [vmem:[%s7 + $0x8] sm:$0xf]
    %v4812 = vld [vmem:[%s7 + $0xc] sm:$0xf]
    %v4813 = vld [vmem:[%s7 + $0x10] sm:$0xf]
    %v4814 = vld [vmem:[%s7 + $0x14] sm:$0xf]
    %v4815 = vld [vmem:[%s7 + $0x18] sm:$0xf]
    %v4816 = vld [vmem:[%s7 + $0x1c] sm:$0xf]
    %v4817 = vld [vmem:[%s7 + $0x20] sm:$0xf]
    %v4818 = vld [vmem:[%s7 + $0x24] sm:$0xf]
    %v4819 = vld [vmem:[%s7 + $0x28] sm:$0xf]
    %v4820 = vld [vmem:[%s7 + $0x2c] sm:$0xf]
    %v4821 = vld [vmem:[%s7 + $0x30] sm:$0xf]
    %v4822 = vld [vmem:[%s7 + $0x34] sm:$0xf]
    %v4823 = vld [vmem:[%s7 + $0x38] sm:$0xf]
    %v4824 = vld [vmem:[%s7 + $0x3c] sm:$0xf]
    %v4825 = vld [vmem:[%s8] sm:$0x1]
    %v4827 = vperm.slane %v4825, 0
    %v4845 = vunpack.c.l.b16 %v4809
    %v4846 = vunpack.c.l.b16 %v4810
    %v4847 = vunpack.c.l.b16 %v4811
    %v4848 = vunpack.c.l.b16 %v4812
    %v4849 = vunpack.c.l.b16 %v4813
    %v4850 = vunpack.c.l.b16 %v4814
    %v4851 = vunpack.c.l.b16 %v4815
    %v4852 = vunpack.c.l.b16 %v4816
    %v4853 = vunpack.c.l.b16 %v4817
    %v4854 = vunpack.c.l.b16 %v4818
    %v4855 = vunpack.c.l.b16 %v4819
    %v4856 = vunpack.c.l.b16 %v4820
    %v4857 = vunpack.c.l.b16 %v4821
    %v4858 = vunpack.c.l.b16 %v4822
    %v4859 = vunpack.c.l.b16 %v4823
    %v4860 = vunpack.c.l.b16 %v4824
    %v4861 = vpack.c.b16 %v4846, %v4845
    %v4862 = vpack.c.b16 %v4848, %v4847
    %v4863 = vpack.c.b16 %v4850, %v4849
    %v4864 = vpack.c.b16 %v4852, %v4851
    %v4865 = vpack.c.b16 %v4854, %v4853
    %v4866 = vpack.c.b16 %v4856, %v4855
    %v4867 = vpack.c.b16 %v4858, %v4857
    %v4868 = vpack.c.b16 %v4860, %v4859
    %4877 = vmatpush.bf16.msra.mxu0 %v4868
    %4878 = vmatpush.bf16.msra.mxu0 %v4867
    %4879 = vmatpush.bf16.msra.mxu0 %v4866
    %4880 = vmatpush.bf16.msra.mxu0 %v4865
    %4881 = vmatpush.bf16.msra.mxu0 %v4864
    %4882 = vmatpush.bf16.msra.mxu0 %v4863
    %4883 = vmatpush.bf16.msra.mxu0 %v4862
    %4884 = vmatpush.bf16.msra.mxu0 %v4861
    %4885 = vmatmul.bf16.gmra.mxu0 %v4808
    %v4886 = vpop.f32.mrf.mxu0
    %v4887 = vadd.f32 %v4827, %v4886
    %v4888 = vpop.f32.mrf.mxu0
    %4889 = vdwg.mxu0
    %4890 = vmax.xlane.f32.xlu0 %v4887
    %v4891 = vpop.xlane.xlu0 %4890
    %v4892 = vsub.f32 %v4887, %v4891
    %v4893 = vmul.f32 %v4892, 1.442695
    %v4894 = vpow.pop %v4893
    %4895 = vadd.xlane.f32.xlu0 %v4894
    %v4896 = vpop.xlane.xlu0 %4895
    %v4897 = vlog2.pop %v4896
    %v4898 = vmul.f32 %v4897, 0.6931472
    %v4899 = vsub.f32 %v4892, %v4898
    %4900 = vst [vmem:[%s9] sm:$0xff] %v4899
    // Predicated region
    $region46: #{net_forward.1} parent=1 // pred_check
      _
    $region47: #{net_forward.1} parent=1 // pred_check_branch
      %4902 = sbr.rel (0) target = $region49
    $region48: #{net_forward.1} parent=1 // pred_region
      _
    $region49: #{net_forward.1} parent=1 // pred_fallthru
      _
    // Predicated region
    $region50: #{net_forward.1} parent=1 // pred_check
      _
    $region51: #{net_forward.1} parent=1 // pred_check_branch
      %4904 = sbr.rel (0) target = $region53
    $region52: #{net_forward.1} parent=1 // pred_region
      _
    $region53: #{net_forward.1} parent=1 // pred_fallthru
      _
    %4905 = vsyncpa [#allocation3], 1
    %4906 = vsyncpa [#allocation5], 1

</llo_original>
